<compile_context>
chip_gen: v7x
topology: tpu7x:2x2x1
jax: 0.10.0
libtpu: 0.0.40
codegen_flags: <defaults>
</compile_context>

<pallas_src>
import functools

import jax
import jax.numpy as jnp
from jax.experimental import pallas as pl
from jax.experimental.pallas import tpu as pltpu


OUT_FEATURES = 4
BN_EPS = 1e-5


# ------------------------------ fused kernel --------------------------------

def _distance_head_kernel(num_conv, num_fc, x_ref, *refs):
    """Fused DistanceHead forward for one tile of proposals.

    Argument order (after x_ref):
      num_conv x (w3 (3, W*Cmax, W*Cmax) bf16, scale (1, W*Cmax) f32,
                  shift (1, W*Cmax) f32)
      fc0        (w (H, W*Cmax, F) bf16, b (1, F) f32)      # flatten folded in
      fc i>=1    (w (F, F) bf16, b (1, F) f32)
      head_w (F, 4) bf16, head_b (1, 4) f32
      o_ref (TILE_N, 4) f32
      scratch: pad_ref (TILE_N, H+2, W*Cmax) bf16           # padded activations
    """
    n_conv = 3 * num_conv
    n_fc = 2 * num_fc
    conv_refs = refs[:n_conv]
    fc_refs = refs[n_conv:n_conv + n_fc]
    head_w_ref = refs[n_conv + n_fc]
    head_b_ref = refs[n_conv + n_fc + 1]
    o_ref = refs[n_conv + n_fc + 2]
    pad_ref = refs[n_conv + n_fc + 3]

    tn, H, WK = x_ref.shape          # WK = W * Cmax (lane-dense row width)
    M = tn * H

    # Zero only the two spatial-border rows; the interior is fully
    # overwritten by every layer below.
    zrow = jnp.zeros((tn, WK), dtype=pad_ref.dtype)
    pad_ref[:, 0, :] = zrow
    pad_ref[:, H + 1, :] = zrow

    # Layer-0 input (already lane-dense, channel-padded, bf16).
    pad_ref[:, 1:H + 1, :] = x_ref[...]

    # ------------------- conv + BN + ReLU stack (lane-dense) -----------------
    for layer in range(num_conv):
        w_ref = conv_refs[3 * layer]         # (3, WK, WK) bf16
        sc_ref = conv_refs[3 * layer + 1]    # (1, WK) f32
        sh_ref = conv_refs[3 * layer + 2]    # (1, WK) f32

        # One dense MXU matmul per kh tap; kw taps + left/right zero padding
        # are already folded into the weight's row indices.
        acc = jnp.dot(pad_ref[:, 0:H, :].reshape(M, WK), w_ref[0],
                      preferred_element_type=jnp.float32)
        acc = acc + jnp.dot(pad_ref[:, 1:H + 1, :].reshape(M, WK), w_ref[1],
                            preferred_element_type=jnp.float32)
        acc = acc + jnp.dot(pad_ref[:, 2:H + 2, :].reshape(M, WK), w_ref[2],
                            preferred_element_type=jnp.float32)

        y = jnp.maximum(acc * sc_ref[...] + sh_ref[...], 0.0)
        pad_ref[:, 1:H + 1, :] = y.reshape(tn, H, WK).astype(pad_ref.dtype)

    # --------------- FC1: flatten folded into H accumulated matmuls ----------
    w1_ref = fc_refs[0]                      # (H, WK, F) bf16 (permuted at init)
    b1_ref = fc_refs[1]                      # (1, F) f32
    F = w1_ref.shape[-1]
    acc = jnp.zeros((tn, F), jnp.float32)
    for h in range(H):
        acc = acc + jnp.dot(pad_ref[:, 1 + h, :], w1_ref[h],
                            preferred_element_type=jnp.float32)
    hact = jnp.maximum(acc + b1_ref[...], 0.0)

    # ------------------------- remaining FCs + head ---------------------------
    for i in range(1, num_fc):
        w_ref = fc_refs[2 * i]
        b_ref = fc_refs[2 * i + 1]
        hact = jnp.maximum(
            jnp.dot(hact.astype(jnp.bfloat16), w_ref[...],
                    preferred_element_type=jnp.float32) + b_ref[...], 0.0)

    o_ref[...] = (jnp.dot(hact.astype(jnp.bfloat16), head_w_ref[...],
                          preferred_element_type=jnp.float32)
                  + head_b_ref[...]).astype(o_ref.dtype)


# ------------------------------ pallas wrapper -------------------------------

def _const_spec(arr):
    """Full-array block that never changes with the grid index (stays resident)."""
    zero = (0,) * arr.ndim
    return pl.BlockSpec(arr.shape, lambda i, _z=zero: _z)


def distance_head_forward(pooled_proposals_nchw, params, *, tile_n=128):
    """pooled_proposals_nchw: (N, rpn_output_channels, H, W) float array."""
    convs = params["convs"]
    fcs = params["fcs"]
    WK = convs[0][0].shape[-1]               # W * cmax
    N, cin0, H, W = pooled_proposals_nchw.shape
    cmax = WK // W

    # NCHW (torch layout) -> NHWC -> channel-pad to cmax -> lane-dense
    # (N, H, W*cmax) bf16.  One-time boundary prep on a tiny tensor.
    x = jnp.transpose(pooled_proposals_nchw, (0, 2, 3, 1)).astype(jnp.float32)
    if cin0 < cmax:
        x = jnp.pad(x, ((0, 0), (0, 0), (0, 0), (0, cmax - cin0)))
    x = x.reshape(N, H, W * cmax).astype(jnp.bfloat16)

    # Tile the proposal dim.  tile_n=128 keeps scratch + resident weights well
    # under v5e's 16 MiB / v7x's 32 MiB default scoped VMEM; raise it (and
    # vmem_limit_bytes) on v6e if desired.
    tn = min(tile_n, N)
    grid = (pl.cdiv(N, tn),)

    args = [x]
    in_specs = [pl.BlockSpec((tn, H, WK), lambda i: (i, 0, 0))]
    for w3, sc, sh in convs:
        args += [w3, sc, sh]
        in_specs += [_const_spec(w3), _const_spec(sc), _const_spec(sh)]
    for w, b in fcs:
        args += [w, b]
        in_specs += [_const_spec(w), _const_spec(b)]
    args += [params["head_w"], params["head_b"]]
    in_specs += [_const_spec(params["head_w"]), _const_spec(params["head_b"])]

    kernel = functools.partial(_distance_head_kernel, len(convs), len(fcs))
    return pl.pallas_call(
        kernel,
        out_shape=jax.ShapeDtypeStruct((N, OUT_FEATURES), jnp.float32),
        grid=grid,
        in_specs=in_specs,
        out_specs=pl.BlockSpec((tn, OUT_FEATURES), lambda i: (i, 0)),
        scratch_shapes=[pltpu.VMEM((tn, H + 2, WK), jnp.bfloat16)],
        compiler_params=pltpu.CompilerParams(
            dimension_semantics=("parallel",)),
    )(*args)


# ------------------------------ parameter setup ------------------------------

def init_params(key, num_conv_layers, num_channels, num_fc_layers,
                rpn_output_channels, pool_output_size, fc_features):
    H, W = pool_output_size
    cmax = max(rpn_output_channels, num_channels)
    WK = W * cmax
    params = {"convs": [], "fcs": []}

    for i in range(num_conv_layers):
        cin = rpn_output_channels if i == 0 else num_channels
        key, k_w, k_b, k_g, k_be, k_m, k_v = jax.random.split(key, 7)
        # HWIO layout == torch conv weight (Cout,Cin,3,3).permute(2,3,1,0)
        conv_w = 0.05 * jax.random.normal(k_w, (3, 3, cin, num_channels), jnp.float32)
        conv_b = 0.05 * jax.random.normal(k_b, (num_channels,), jnp.float32)
        gamma = 1.0 + 0.1 * jax.random.normal(k_g, (num_channels,), jnp.float32)
        beta = 0.1 * jax.random.normal(k_be, (num_channels,), jnp.float32)
        run_mean = 0.05 * jax.random.normal(k_m, (num_channels,), jnp.float32)
        run_var = 1.0 + 0.1 * jnp.abs(jax.random.normal(k_v, (num_channels,), jnp.float32))
        # Fold conv bias + eval-mode BN into a per-channel affine.
        scale = gamma / jnp.sqrt(run_var + BN_EPS)
        shift = (conv_b - run_mean) * scale + beta

        # Lane-dense conv weight: per kh tap, a (W*cmax, W*cmax) matrix whose
        # row (src*cmax + ci) / column (w*cmax + co) entry is conv_w[kh,kw,ci,co]
        # with src = w + kw - 1 (out-of-range taps == zero padding -> omitted).
        w3 = jnp.zeros((3, WK, WK), jnp.float32)
        for kh in range(3):
            for kw in range(3):
                for wpos in range(W):
                    src = wpos + kw - 1
                    if 0 <= src < W:
                        w3 = w3.at[kh,
                                   src * cmax:src * cmax + cin,
                                   wpos * cmax:wpos * cmax + num_channels].set(
                                       conv_w[kh, kw])
        # BN affine tiled over the W lane groups (zero in padded-channel slots
        # so padded lanes stay exactly zero for the next layer).
        sc = jnp.zeros((W, cmax), jnp.float32).at[:, :num_channels].set(scale)
        sh = jnp.zeros((W, cmax), jnp.float32).at[:, :num_channels].set(shift)
        params["convs"].append((w3.astype(jnp.bfloat16),
                                sc.reshape(1, WK), sh.reshape(1, WK)))

    flat_in = num_channels * H * W
    for i in range(num_fc_layers):
        fan_in = flat_in if i == 0 else fc_features
        key, k_w, k_b = jax.random.split(key, 3)
        # (in, out) == transpose of the torch (out, in) Linear weight.
        w = (1.0 / jnp.sqrt(fan_in)) * jax.random.normal(
            k_w, (fan_in, fc_features), jnp.float32)
        b = 0.01 * jax.random.normal(k_b, (fc_features,), jnp.float32)
        if i == 0:
            # Rows are (conceptually) in torch NCHW-flatten order
            # (c*H*W + h*W + w).  Rearrange once to (H, W*cmax, F) so the
            # kernel folds the flatten into H accumulated matmuls over the
            # lane-dense activation rows (zero rows for padded channels).
            w = w.reshape(num_channels, H, W, fc_features).transpose(1, 2, 0, 3)
            w_pad = jnp.zeros((H, W, cmax, fc_features), jnp.float32)
            w_pad = w_pad.at[:, :, :num_channels, :].set(w)
            w = w_pad.reshape(H, WK, fc_features)
        params["fcs"].append((w.astype(jnp.bfloat16), b.reshape(1, -1)))

    key, k_h = jax.random.split(key)
    # head: nn.init.normal_(weight, std=0.001); bias = 0
    params["head_w"] = (0.001 * jax.random.normal(
        k_h, (fc_features, OUT_FEATURES), jnp.float32)).astype(jnp.bfloat16)
    params["head_b"] = jnp.zeros((1, OUT_FEATURES), jnp.float32)
    return params


# ----------------------------------- main ------------------------------------

if __name__ == "__main__":
    num_conv_layers = 2
    num_channels = 32
    num_fc_layers = 2
    rpn_output_channels = 16
    pool_output_size = (8, 8)
    fc_features = 64
    batch = 2  # number of pooled proposals

    key = jax.random.PRNGKey(0)
    key, k_x = jax.random.split(key)
    params = init_params(key, num_conv_layers, num_channels, num_fc_layers,
                         rpn_output_channels, pool_output_size, fc_features)

    # PyTorch conv input layout is NCHW
    x = jax.random.normal(
        k_x, (batch, rpn_output_channels, *pool_output_size), jnp.float32)

    out = distance_head_forward(x, params)
    out = jax.block_until_ready(out)
    assert out.shape == (batch, OUT_FEATURES), out.shape
    assert out.dtype == jnp.float32
    print("KERNEL_OK")
</pallas_src>

<mosaic_0001>
module attributes {stable_mosaic.version = 11 : i64} {
  func.func @_distance_head_kernel(%arg0: i32, %arg1: memref<2x8x256xbf16, #tpu.memory_space<vmem>>, %arg2: memref<3x256x256xbf16, #tpu.memory_space<vmem>>, %arg3: memref<1x256xf32, #tpu.memory_space<vmem>>, %arg4: memref<1x256xf32, #tpu.memory_space<vmem>>, %arg5: memref<3x256x256xbf16, #tpu.memory_space<vmem>>, %arg6: memref<1x256xf32, #tpu.memory_space<vmem>>, %arg7: memref<1x256xf32, #tpu.memory_space<vmem>>, %arg8: memref<8x256x64xbf16, #tpu.memory_space<vmem>>, %arg9: memref<1x64xf32, #tpu.memory_space<vmem>>, %arg10: memref<64x64xbf16, #tpu.memory_space<vmem>>, %arg11: memref<1x64xf32, #tpu.memory_space<vmem>>, %arg12: memref<64x4xbf16, #tpu.memory_space<vmem>>, %arg13: memref<1x4xf32, #tpu.memory_space<vmem>>, %arg14: memref<2x4xf32, #tpu.memory_space<vmem>>, %arg15: memref<2x10x256xbf16, #tpu.memory_space<vmem>>) attributes {dimension_semantics = [#tpu.dimension_semantics<parallel>], iteration_bounds = array<i64: 1>, scalar_prefetch = 0 : i64, scratch_operands = 1 : i64, tpu.core_type = #tpu.core_type<tc>, window_params = [{transform_indices = @transform_0, window_bounds = array<i64: 2, 8, 256>}, {pipeline_mode = #tpu.pipeline_mode<synchronous>, transform_indices = @transform_1, window_bounds = array<i64: 3, 256, 256>}, {pipeline_mode = #tpu.pipeline_mode<synchronous>, transform_indices = @transform_2, window_bounds = array<i64: 1, 256>}, {pipeline_mode = #tpu.pipeline_mode<synchronous>, transform_indices = @transform_3, window_bounds = array<i64: 1, 256>}, {pipeline_mode = #tpu.pipeline_mode<synchronous>, transform_indices = @transform_4, window_bounds = array<i64: 3, 256, 256>}, {pipeline_mode = #tpu.pipeline_mode<synchronous>, transform_indices = @transform_5, window_bounds = array<i64: 1, 256>}, {pipeline_mode = #tpu.pipeline_mode<synchronous>, transform_indices = @transform_6, window_bounds = array<i64: 1, 256>}, {pipeline_mode = #tpu.pipeline_mode<synchronous>, transform_indices = @transform_7, window_bounds = array<i64: 8, 256, 64>}, {pipeline_mode = #tpu.pipeline_mode<synchronous>, transform_indices = @transform_8, window_bounds = array<i64: 1, 64>}, {pipeline_mode = #tpu.pipeline_mode<synchronous>, transform_indices = @transform_9, window_bounds = array<i64: 64, 64>}, {pipeline_mode = #tpu.pipeline_mode<synchronous>, transform_indices = @transform_10, window_bounds = array<i64: 1, 64>}, {pipeline_mode = #tpu.pipeline_mode<synchronous>, transform_indices = @transform_11, window_bounds = array<i64: 64, 4>}, {pipeline_mode = #tpu.pipeline_mode<synchronous>, transform_indices = @transform_12, window_bounds = array<i64: 1, 4>}, {transform_indices = @transform_13, window_bounds = array<i64: 2, 4>}]} {
    %cst = arith.constant 0.000000e+00 : bf16
    %0 = vector.broadcast %cst : bf16 to vector<2x256xbf16>
    %c0 = arith.constant 0 : index
    %c0_0 = arith.constant 0 : index
    %c0_1 = arith.constant 0 : index
    %1 = vector.load %arg15[%c0, %c0_0, %c0_1] : memref<2x10x256xbf16, #tpu.memory_space<vmem>>, vector<2x1x256xbf16>
    %2 = vector.shape_cast %1 : vector<2x1x256xbf16> to vector<2x256xbf16>
    %3 = vector.shape_cast %0 : vector<2x256xbf16> to vector<2x1x256xbf16>
    tpu.vector_store %arg15[%c0, %c0_0, %c0_1], %3 {strides = array<i32>} : memref<2x10x256xbf16, #tpu.memory_space<vmem>>, vector<2x1x256xbf16>,
    %c0_2 = arith.constant 0 : index
    %c9 = arith.constant 9 : index
    %c0_3 = arith.constant 0 : index
    %4 = vector.load %arg15[%c0_2, %c9, %c0_3] : memref<2x10x256xbf16, #tpu.memory_space<vmem>>, vector<2x1x256xbf16>
    %5 = vector.shape_cast %4 : vector<2x1x256xbf16> to vector<2x256xbf16>
    %6 = vector.shape_cast %0 : vector<2x256xbf16> to vector<2x1x256xbf16>
    tpu.vector_store %arg15[%c0_2, %c9, %c0_3], %6 {strides = array<i32>} : memref<2x10x256xbf16, #tpu.memory_space<vmem>>, vector<2x1x256xbf16>,
    %c0_4 = arith.constant 0 : index
    %c0_5 = arith.constant 0 : index
    %c0_6 = arith.constant 0 : index
    %7 = vector.load %arg1[%c0_4, %c0_5, %c0_6] : memref<2x8x256xbf16, #tpu.memory_space<vmem>>, vector<2x8x256xbf16>
    %c0_7 = arith.constant 0 : index
    %c1 = arith.constant 1 : index
    %c0_8 = arith.constant 0 : index
    %8 = vector.load %arg15[%c0_7, %c1, %c0_8] : memref<2x10x256xbf16, #tpu.memory_space<vmem>>, vector<2x8x256xbf16>
    tpu.vector_store %arg15[%c0_7, %c1, %c0_8], %7 {strides = array<i32>} : memref<2x10x256xbf16, #tpu.memory_space<vmem>>, vector<2x8x256xbf16>,
    %c0_9 = arith.constant 0 : index
    %c0_10 = arith.constant 0 : index
    %c0_11 = arith.constant 0 : index
    %9 = vector.load %arg15[%c0_9, %c0_10, %c0_11] : memref<2x10x256xbf16, #tpu.memory_space<vmem>>, vector<2x8x256xbf16>
    %10 = vector.shape_cast %9 : vector<2x8x256xbf16> to vector<16x256xbf16>
    %c0_12 = arith.constant 0 : index
    %c0_13 = arith.constant 0 : index
    %c0_14 = arith.constant 0 : index
    %11 = vector.load %arg2[%c0_12, %c0_13, %c0_14] : memref<3x256x256xbf16, #tpu.memory_space<vmem>>, vector<1x256x256xbf16>
    %12 = vector.shape_cast %11 : vector<1x256x256xbf16> to vector<256x256xbf16>
    %cst_15 = arith.constant dense<0.000000e+00> : vector<16x256xf32>
    %13 = tpu.matmul %10, %12, %cst_15 {dimension_numbers = #tpu.dot_dimension_numbers<[1], [0], [0], [1], [0, 0, 1, 1], [], []>} : vector<16x256xbf16>, vector<256x256xbf16>, vector<16x256xf32> -> vector<16x256xf32>
    %c0_16 = arith.constant 0 : index
    %c1_17 = arith.constant 1 : index
    %c0_18 = arith.constant 0 : index
    %14 = vector.load %arg15[%c0_16, %c1_17, %c0_18] : memref<2x10x256xbf16, #tpu.memory_space<vmem>>, vector<2x8x256xbf16>
    %15 = vector.shape_cast %14 : vector<2x8x256xbf16> to vector<16x256xbf16>
    %c1_19 = arith.constant 1 : index
    %c0_20 = arith.constant 0 : index
    %c0_21 = arith.constant 0 : index
    %16 = vector.load %arg2[%c1_19, %c0_20, %c0_21] : memref<3x256x256xbf16, #tpu.memory_space<vmem>>, vector<1x256x256xbf16>
    %17 = vector.shape_cast %16 : vector<1x256x256xbf16> to vector<256x256xbf16>
    %cst_22 = arith.constant dense<0.000000e+00> : vector<16x256xf32>
    %18 = tpu.matmul %15, %17, %cst_22 {dimension_numbers = #tpu.dot_dimension_numbers<[1], [0], [0], [1], [0, 0, 1, 1], [], []>} : vector<16x256xbf16>, vector<256x256xbf16>, vector<16x256xf32> -> vector<16x256xf32>
    %19 = arith.addf %13, %18 : vector<16x256xf32>
    %c0_23 = arith.constant 0 : index
    %c2 = arith.constant 2 : index
    %c0_24 = arith.constant 0 : index
    %20 = vector.load %arg15[%c0_23, %c2, %c0_24] : memref<2x10x256xbf16, #tpu.memory_space<vmem>>, vector<2x8x256xbf16>
    %21 = vector.shape_cast %20 : vector<2x8x256xbf16> to vector<16x256xbf16>
    %c2_25 = arith.constant 2 : index
    %c0_26 = arith.constant 0 : index
    %c0_27 = arith.constant 0 : index
    %22 = vector.load %arg2[%c2_25, %c0_26, %c0_27] : memref<3x256x256xbf16, #tpu.memory_space<vmem>>, vector<1x256x256xbf16>
    %23 = vector.shape_cast %22 : vector<1x256x256xbf16> to vector<256x256xbf16>
    %cst_28 = arith.constant dense<0.000000e+00> : vector<16x256xf32>
    %24 = tpu.matmul %21, %23, %cst_28 {dimension_numbers = #tpu.dot_dimension_numbers<[1], [0], [0], [1], [0, 0, 1, 1], [], []>} : vector<16x256xbf16>, vector<256x256xbf16>, vector<16x256xf32> -> vector<16x256xf32>
    %25 = arith.addf %19, %24 : vector<16x256xf32>
    %c0_29 = arith.constant 0 : index
    %c0_30 = arith.constant 0 : index
    %26 = vector.load %arg3[%c0_29, %c0_30] : memref<1x256xf32, #tpu.memory_space<vmem>>, vector<1x256xf32>
    %27 = vector.broadcast %26 : vector<1x256xf32> to vector<16x256xf32>
    %28 = arith.mulf %25, %27 : vector<16x256xf32>
    %c0_31 = arith.constant 0 : index
    %c0_32 = arith.constant 0 : index
    %29 = vector.load %arg4[%c0_31, %c0_32] : memref<1x256xf32, #tpu.memory_space<vmem>>, vector<1x256xf32>
    %30 = vector.broadcast %29 : vector<1x256xf32> to vector<16x256xf32>
    %31 = arith.addf %28, %30 : vector<16x256xf32>
    %cst_33 = arith.constant 0.000000e+00 : f32
    %32 = vector.broadcast %cst_33 : f32 to vector<16x256xf32>
    %33 = arith.maximumf %31, %32 : vector<16x256xf32>
    %34 = vector.shape_cast %33 : vector<16x256xf32> to vector<2x8x256xf32>
    %35 = arith.truncf %34 : vector<2x8x256xf32> to vector<2x8x256xbf16>
    %c0_34 = arith.constant 0 : index
    %c1_35 = arith.constant 1 : index
    %c0_36 = arith.constant 0 : index
    %36 = vector.load %arg15[%c0_34, %c1_35, %c0_36] : memref<2x10x256xbf16, #tpu.memory_space<vmem>>, vector<2x8x256xbf16>
    tpu.vector_store %arg15[%c0_34, %c1_35, %c0_36], %35 {strides = array<i32>} : memref<2x10x256xbf16, #tpu.memory_space<vmem>>, vector<2x8x256xbf16>,
    %c0_37 = arith.constant 0 : index
    %c0_38 = arith.constant 0 : index
    %c0_39 = arith.constant 0 : index
    %37 = vector.load %arg15[%c0_37, %c0_38, %c0_39] : memref<2x10x256xbf16, #tpu.memory_space<vmem>>, vector<2x8x256xbf16>
    %38 = vector.shape_cast %37 : vector<2x8x256xbf16> to vector<16x256xbf16>
    %c0_40 = arith.constant 0 : index
    %c0_41 = arith.constant 0 : index
    %c0_42 = arith.constant 0 : index
    %39 = vector.load %arg5[%c0_40, %c0_41, %c0_42] : memref<3x256x256xbf16, #tpu.memory_space<vmem>>, vector<1x256x256xbf16>
    %40 = vector.shape_cast %39 : vector<1x256x256xbf16> to vector<256x256xbf16>
    %cst_43 = arith.constant dense<0.000000e+00> : vector<16x256xf32>
    %41 = tpu.matmul %38, %40, %cst_43 {dimension_numbers = #tpu.dot_dimension_numbers<[1], [0], [0], [1], [0, 0, 1, 1], [], []>} : vector<16x256xbf16>, vector<256x256xbf16>, vector<16x256xf32> -> vector<16x256xf32>
    %c0_44 = arith.constant 0 : index
    %c1_45 = arith.constant 1 : index
    %c0_46 = arith.constant 0 : index
    %42 = vector.load %arg15[%c0_44, %c1_45, %c0_46] : memref<2x10x256xbf16, #tpu.memory_space<vmem>>, vector<2x8x256xbf16>
    %43 = vector.shape_cast %42 : vector<2x8x256xbf16> to vector<16x256xbf16>
    %c1_47 = arith.constant 1 : index
    %c0_48 = arith.constant 0 : index
    %c0_49 = arith.constant 0 : index
    %44 = vector.load %arg5[%c1_47, %c0_48, %c0_49] : memref<3x256x256xbf16, #tpu.memory_space<vmem>>, vector<1x256x256xbf16>
    %45 = vector.shape_cast %44 : vector<1x256x256xbf16> to vector<256x256xbf16>
    %cst_50 = arith.constant dense<0.000000e+00> : vector<16x256xf32>
    %46 = tpu.matmul %43, %45, %cst_50 {dimension_numbers = #tpu.dot_dimension_numbers<[1], [0], [0], [1], [0, 0, 1, 1], [], []>} : vector<16x256xbf16>, vector<256x256xbf16>, vector<16x256xf32> -> vector<16x256xf32>
    %47 = arith.addf %41, %46 : vector<16x256xf32>
    %c0_51 = arith.constant 0 : index
    %c2_52 = arith.constant 2 : index
    %c0_53 = arith.constant 0 : index
    %48 = vector.load %arg15[%c0_51, %c2_52, %c0_53] : memref<2x10x256xbf16, #tpu.memory_space<vmem>>, vector<2x8x256xbf16>
    %49 = vector.shape_cast %48 : vector<2x8x256xbf16> to vector<16x256xbf16>
    %c2_54 = arith.constant 2 : index
    %c0_55 = arith.constant 0 : index
    %c0_56 = arith.constant 0 : index
    %50 = vector.load %arg5[%c2_54, %c0_55, %c0_56] : memref<3x256x256xbf16, #tpu.memory_space<vmem>>, vector<1x256x256xbf16>
    %51 = vector.shape_cast %50 : vector<1x256x256xbf16> to vector<256x256xbf16>
    %cst_57 = arith.constant dense<0.000000e+00> : vector<16x256xf32>
    %52 = tpu.matmul %49, %51, %cst_57 {dimension_numbers = #tpu.dot_dimension_numbers<[1], [0], [0], [1], [0, 0, 1, 1], [], []>} : vector<16x256xbf16>, vector<256x256xbf16>, vector<16x256xf32> -> vector<16x256xf32>
    %53 = arith.addf %47, %52 : vector<16x256xf32>
    %c0_58 = arith.constant 0 : index
    %c0_59 = arith.constant 0 : index
    %54 = vector.load %arg6[%c0_58, %c0_59] : memref<1x256xf32, #tpu.memory_space<vmem>>, vector<1x256xf32>
    %55 = vector.broadcast %54 : vector<1x256xf32> to vector<16x256xf32>
    %56 = arith.mulf %53, %55 : vector<16x256xf32>
    %c0_60 = arith.constant 0 : index
    %c0_61 = arith.constant 0 : index
    %57 = vector.load %arg7[%c0_60, %c0_61] : memref<1x256xf32, #tpu.memory_space<vmem>>, vector<1x256xf32>
    %58 = vector.broadcast %57 : vector<1x256xf32> to vector<16x256xf32>
    %59 = arith.addf %56, %58 : vector<16x256xf32>
    %cst_62 = arith.constant 0.000000e+00 : f32
    %60 = vector.broadcast %cst_62 : f32 to vector<16x256xf32>
    %61 = arith.maximumf %59, %60 : vector<16x256xf32>
    %62 = vector.shape_cast %61 : vector<16x256xf32> to vector<2x8x256xf32>
    %63 = arith.truncf %62 : vector<2x8x256xf32> to vector<2x8x256xbf16>
    %c0_63 = arith.constant 0 : index
    %c1_64 = arith.constant 1 : index
    %c0_65 = arith.constant 0 : index
    %64 = vector.load %arg15[%c0_63, %c1_64, %c0_65] : memref<2x10x256xbf16, #tpu.memory_space<vmem>>, vector<2x8x256xbf16>
    tpu.vector_store %arg15[%c0_63, %c1_64, %c0_65], %63 {strides = array<i32>} : memref<2x10x256xbf16, #tpu.memory_space<vmem>>, vector<2x8x256xbf16>,
    %cst_66 = arith.constant 0.000000e+00 : f32
    %65 = vector.broadcast %cst_66 : f32 to vector<2x64xf32>
    %c0_67 = arith.constant 0 : index
    %c1_68 = arith.constant 1 : index
    %c0_69 = arith.constant 0 : index
    %66 = vector.load %arg15[%c0_67, %c1_68, %c0_69] : memref<2x10x256xbf16, #tpu.memory_space<vmem>>, vector<2x1x256xbf16>
    %67 = vector.shape_cast %66 : vector<2x1x256xbf16> to vector<2x256xbf16>
    %c0_70 = arith.constant 0 : index
    %c0_71 = arith.constant 0 : index
    %c0_72 = arith.constant 0 : index
    %68 = vector.load %arg8[%c0_70, %c0_71, %c0_72] : memref<8x256x64xbf16, #tpu.memory_space<vmem>>, vector<1x256x64xbf16>
    %69 = vector.shape_cast %68 : vector<1x256x64xbf16> to vector<256x64xbf16>
    %cst_73 = arith.constant dense<0.000000e+00> : vector<2x64xf32>
    %70 = tpu.matmul %67, %69, %cst_73 {dimension_numbers = #tpu.dot_dimension_numbers<[1], [0], [0], [1], [0, 0, 1, 1], [], []>} : vector<2x256xbf16>, vector<256x64xbf16>, vector<2x64xf32> -> vector<2x64xf32>
    %71 = arith.addf %65, %70 : vector<2x64xf32>
    %c0_74 = arith.constant 0 : index
    %c2_75 = arith.constant 2 : index
    %c0_76 = arith.constant 0 : index
    %72 = vector.load %arg15[%c0_74, %c2_75, %c0_76] : memref<2x10x256xbf16, #tpu.memory_space<vmem>>, vector<2x1x256xbf16>
    %73 = vector.shape_cast %72 : vector<2x1x256xbf16> to vector<2x256xbf16>
    %c1_77 = arith.constant 1 : index
    %c0_78 = arith.constant 0 : index
    %c0_79 = arith.constant 0 : index
    %74 = vector.load %arg8[%c1_77, %c0_78, %c0_79] : memref<8x256x64xbf16, #tpu.memory_space<vmem>>, vector<1x256x64xbf16>
    %75 = vector.shape_cast %74 : vector<1x256x64xbf16> to vector<256x64xbf16>
    %cst_80 = arith.constant dense<0.000000e+00> : vector<2x64xf32>
    %76 = tpu.matmul %73, %75, %cst_80 {dimension_numbers = #tpu.dot_dimension_numbers<[1], [0], [0], [1], [0, 0, 1, 1], [], []>} : vector<2x256xbf16>, vector<256x64xbf16>, vector<2x64xf32> -> vector<2x64xf32>
    %77 = arith.addf %71, %76 : vector<2x64xf32>
    %c0_81 = arith.constant 0 : index
    %c3 = arith.constant 3 : index
    %c0_82 = arith.constant 0 : index
    %78 = vector.load %arg15[%c0_81, %c3, %c0_82] : memref<2x10x256xbf16, #tpu.memory_space<vmem>>, vector<2x1x256xbf16>
    %79 = vector.shape_cast %78 : vector<2x1x256xbf16> to vector<2x256xbf16>
    %c2_83 = arith.constant 2 : index
    %c0_84 = arith.constant 0 : index
    %c0_85 = arith.constant 0 : index
    %80 = vector.load %arg8[%c2_83, %c0_84, %c0_85] : memref<8x256x64xbf16, #tpu.memory_space<vmem>>, vector<1x256x64xbf16>
    %81 = vector.shape_cast %80 : vector<1x256x64xbf16> to vector<256x64xbf16>
    %cst_86 = arith.constant dense<0.000000e+00> : vector<2x64xf32>
    %82 = tpu.matmul %79, %81, %cst_86 {dimension_numbers = #tpu.dot_dimension_numbers<[1], [0], [0], [1], [0, 0, 1, 1], [], []>} : vector<2x256xbf16>, vector<256x64xbf16>, vector<2x64xf32> -> vector<2x64xf32>
    %83 = arith.addf %77, %82 : vector<2x64xf32>
    %c0_87 = arith.constant 0 : index
    %c4 = arith.constant 4 : index
    %c0_88 = arith.constant 0 : index
    %84 = vector.load %arg15[%c0_87, %c4, %c0_88] : memref<2x10x256xbf16, #tpu.memory_space<vmem>>, vector<2x1x256xbf16>
    %85 = vector.shape_cast %84 : vector<2x1x256xbf16> to vector<2x256xbf16>
    %c3_89 = arith.constant 3 : index
    %c0_90 = arith.constant 0 : index
    %c0_91 = arith.constant 0 : index
    %86 = vector.load %arg8[%c3_89, %c0_90, %c0_91] : memref<8x256x64xbf16, #tpu.memory_space<vmem>>, vector<1x256x64xbf16>
    %87 = vector.shape_cast %86 : vector<1x256x64xbf16> to vector<256x64xbf16>
    %cst_92 = arith.constant dense<0.000000e+00> : vector<2x64xf32>
    %88 = tpu.matmul %85, %87, %cst_92 {dimension_numbers = #tpu.dot_dimension_numbers<[1], [0], [0], [1], [0, 0, 1, 1], [], []>} : vector<2x256xbf16>, vector<256x64xbf16>, vector<2x64xf32> -> vector<2x64xf32>
    %89 = arith.addf %83, %88 : vector<2x64xf32>
    %c0_93 = arith.constant 0 : index
    %c5 = arith.constant 5 : index
    %c0_94 = arith.constant 0 : index
    %90 = vector.load %arg15[%c0_93, %c5, %c0_94] : memref<2x10x256xbf16, #tpu.memory_space<vmem>>, vector<2x1x256xbf16>
    %91 = vector.shape_cast %90 : vector<2x1x256xbf16> to vector<2x256xbf16>
    %c4_95 = arith.constant 4 : index
    %c0_96 = arith.constant 0 : index
    %c0_97 = arith.constant 0 : index
    %92 = vector.load %arg8[%c4_95, %c0_96, %c0_97] : memref<8x256x64xbf16, #tpu.memory_space<vmem>>, vector<1x256x64xbf16>
    %93 = vector.shape_cast %92 : vector<1x256x64xbf16> to vector<256x64xbf16>
    %cst_98 = arith.constant dense<0.000000e+00> : vector<2x64xf32>
    %94 = tpu.matmul %91, %93, %cst_98 {dimension_numbers = #tpu.dot_dimension_numbers<[1], [0], [0], [1], [0, 0, 1, 1], [], []>} : vector<2x256xbf16>, vector<256x64xbf16>, vector<2x64xf32> -> vector<2x64xf32>
    %95 = arith.addf %89, %94 : vector<2x64xf32>
    %c0_99 = arith.constant 0 : index
    %c6 = arith.constant 6 : index
    %c0_100 = arith.constant 0 : index
    %96 = vector.load %arg15[%c0_99, %c6, %c0_100] : memref<2x10x256xbf16, #tpu.memory_space<vmem>>, vector<2x1x256xbf16>
    %97 = vector.shape_cast %96 : vector<2x1x256xbf16> to vector<2x256xbf16>
    %c5_101 = arith.constant 5 : index
    %c0_102 = arith.constant 0 : index
    %c0_103 = arith.constant 0 : index
    %98 = vector.load %arg8[%c5_101, %c0_102, %c0_103] : memref<8x256x64xbf16, #tpu.memory_space<vmem>>, vector<1x256x64xbf16>
    %99 = vector.shape_cast %98 : vector<1x256x64xbf16> to vector<256x64xbf16>
    %cst_104 = arith.constant dense<0.000000e+00> : vector<2x64xf32>
    %100 = tpu.matmul %97, %99, %cst_104 {dimension_numbers = #tpu.dot_dimension_numbers<[1], [0], [0], [1], [0, 0, 1, 1], [], []>} : vector<2x256xbf16>, vector<256x64xbf16>, vector<2x64xf32> -> vector<2x64xf32>
    %101 = arith.addf %95, %100 : vector<2x64xf32>
    %c0_105 = arith.constant 0 : index
    %c7 = arith.constant 7 : index
    %c0_106 = arith.constant 0 : index
    %102 = vector.load %arg15[%c0_105, %c7, %c0_106] : memref<2x10x256xbf16, #tpu.memory_space<vmem>>, vector<2x1x256xbf16>
    %103 = vector.shape_cast %102 : vector<2x1x256xbf16> to vector<2x256xbf16>
    %c6_107 = arith.constant 6 : index
    %c0_108 = arith.constant 0 : index
    %c0_109 = arith.constant 0 : index
    %104 = vector.load %arg8[%c6_107, %c0_108, %c0_109] : memref<8x256x64xbf16, #tpu.memory_space<vmem>>, vector<1x256x64xbf16>
    %105 = vector.shape_cast %104 : vector<1x256x64xbf16> to vector<256x64xbf16>
    %cst_110 = arith.constant dense<0.000000e+00> : vector<2x64xf32>
    %106 = tpu.matmul %103, %105, %cst_110 {dimension_numbers = #tpu.dot_dimension_numbers<[1], [0], [0], [1], [0, 0, 1, 1], [], []>} : vector<2x256xbf16>, vector<256x64xbf16>, vector<2x64xf32> -> vector<2x64xf32>
    %107 = arith.addf %101, %106 : vector<2x64xf32>
    %c0_111 = arith.constant 0 : index
    %c8 = arith.constant 8 : index
    %c0_112 = arith.constant 0 : index
    %108 = vector.load %arg15[%c0_111, %c8, %c0_112] : memref<2x10x256xbf16, #tpu.memory_space<vmem>>, vector<2x1x256xbf16>
    %109 = vector.shape_cast %108 : vector<2x1x256xbf16> to vector<2x256xbf16>
    %c7_113 = arith.constant 7 : index
    %c0_114 = arith.constant 0 : index
    %c0_115 = arith.constant 0 : index
    %110 = vector.load %arg8[%c7_113, %c0_114, %c0_115] : memref<8x256x64xbf16, #tpu.memory_space<vmem>>, vector<1x256x64xbf16>
    %111 = vector.shape_cast %110 : vector<1x256x64xbf16> to vector<256x64xbf16>
    %cst_116 = arith.constant dense<0.000000e+00> : vector<2x64xf32>
    %112 = tpu.matmul %109, %111, %cst_116 {dimension_numbers = #tpu.dot_dimension_numbers<[1], [0], [0], [1], [0, 0, 1, 1], [], []>} : vector<2x256xbf16>, vector<256x64xbf16>, vector<2x64xf32> -> vector<2x64xf32>
    %113 = arith.addf %107, %112 : vector<2x64xf32>
    %c0_117 = arith.constant 0 : index
    %c0_118 = arith.constant 0 : index
    %114 = vector.load %arg9[%c0_117, %c0_118] : memref<1x64xf32, #tpu.memory_space<vmem>>, vector<1x64xf32>
    %115 = vector.broadcast %114 : vector<1x64xf32> to vector<2x64xf32>
    %116 = arith.addf %113, %115 : vector<2x64xf32>
    %cst_119 = arith.constant 0.000000e+00 : f32
    %117 = vector.broadcast %cst_119 : f32 to vector<2x64xf32>
    %118 = arith.maximumf %116, %117 : vector<2x64xf32>
    %119 = arith.truncf %118 : vector<2x64xf32> to vector<2x64xbf16>
    %c0_120 = arith.constant 0 : index
    %c0_121 = arith.constant 0 : index
    %120 = vector.load %arg10[%c0_120, %c0_121] : memref<64x64xbf16, #tpu.memory_space<vmem>>, vector<64x64xbf16>
    %cst_122 = arith.constant dense<0.000000e+00> : vector<2x64xf32>
    %121 = tpu.matmul %119, %120, %cst_122 {dimension_numbers = #tpu.dot_dimension_numbers<[1], [0], [0], [1], [0, 0, 1, 1], [], []>} : vector<2x64xbf16>, vector<64x64xbf16>, vector<2x64xf32> -> vector<2x64xf32>
    %c0_123 = arith.constant 0 : index
    %c0_124 = arith.constant 0 : index
    %122 = vector.load %arg11[%c0_123, %c0_124] : memref<1x64xf32, #tpu.memory_space<vmem>>, vector<1x64xf32>
    %123 = vector.broadcast %122 : vector<1x64xf32> to vector<2x64xf32>
    %124 = arith.addf %121, %123 : vector<2x64xf32>
    %cst_125 = arith.constant 0.000000e+00 : f32
    %125 = vector.broadcast %cst_125 : f32 to vector<2x64xf32>
    %126 = arith.maximumf %124, %125 : vector<2x64xf32>
    %127 = arith.truncf %126 : vector<2x64xf32> to vector<2x64xbf16>
    %c0_126 = arith.constant 0 : index
    %c0_127 = arith.constant 0 : index
    %128 = vector.load %arg12[%c0_126, %c0_127] : memref<64x4xbf16, #tpu.memory_space<vmem>>, vector<64x4xbf16>
    %cst_128 = arith.constant dense<0.000000e+00> : vector<2x4xf32>
    %129 = tpu.matmul %127, %128, %cst_128 {dimension_numbers = #tpu.dot_dimension_numbers<[1], [0], [0], [1], [0, 0, 1, 1], [], []>} : vector<2x64xbf16>, vector<64x4xbf16>, vector<2x4xf32> -> vector<2x4xf32>
    %c0_129 = arith.constant 0 : index
    %c0_130 = arith.constant 0 : index
    %130 = vector.load %arg13[%c0_129, %c0_130] : memref<1x4xf32, #tpu.memory_space<vmem>>, vector<1x4xf32>
    %131 = vector.broadcast %130 : vector<1x4xf32> to vector<2x4xf32>
    %132 = arith.addf %129, %131 : vector<2x4xf32>
    %c0_131 = arith.constant 0 : index
    %c0_132 = arith.constant 0 : index
    %133 = vector.load %arg14[%c0_131, %c0_132] : memref<2x4xf32, #tpu.memory_space<vmem>>, vector<2x4xf32>
    tpu.vector_store %arg14[%c0_131, %c0_132], %132 {strides = array<i32>} : memref<2x4xf32, #tpu.memory_space<vmem>>, vector<2x4xf32>,
    return
  }
  func.func @transform_0(%arg0: i32) -> (i32, i32, i32) {
    %c0_i32 = arith.constant 0 : i32
    %c0_i32_0 = arith.constant 0 : i32
    %c0_i32_1 = arith.constant 0 : i32
    return %arg0, %c0_i32, %c0_i32_0 : i32, i32, i32
  }
  func.func @transform_1(%arg0: i32) -> (i32, i32, i32) {
    %c0_i32 = arith.constant 0 : i32
    %c0_i32_0 = arith.constant 0 : i32
    %c0_i32_1 = arith.constant 0 : i32
    %c0_i32_2 = arith.constant 0 : i32
    return %c0_i32, %c0_i32_0, %c0_i32_1 : i32, i32, i32
  }
  func.func @transform_2(%arg0: i32) -> (i32, i32) {
    %c0_i32 = arith.constant 0 : i32
    %c0_i32_0 = arith.constant 0 : i32
    %c0_i32_1 = arith.constant 0 : i32
    return %c0_i32, %c0_i32_0 : i32, i32
  }
  func.func @transform_3(%arg0: i32) -> (i32, i32) {
    %c0_i32 = arith.constant 0 : i32
    %c0_i32_0 = arith.constant 0 : i32
    %c0_i32_1 = arith.constant 0 : i32
    return %c0_i32, %c0_i32_0 : i32, i32
  }
  func.func @transform_4(%arg0: i32) -> (i32, i32, i32) {
    %c0_i32 = arith.constant 0 : i32
    %c0_i32_0 = arith.constant 0 : i32
    %c0_i32_1 = arith.constant 0 : i32
    %c0_i32_2 = arith.constant 0 : i32
    return %c0_i32, %c0_i32_0, %c0_i32_1 : i32, i32, i32
  }
  func.func @transform_5(%arg0: i32) -> (i32, i32) {
    %c0_i32 = arith.constant 0 : i32
    %c0_i32_0 = arith.constant 0 : i32
    %c0_i32_1 = arith.constant 0 : i32
    return %c0_i32, %c0_i32_0 : i32, i32
  }
  func.func @transform_6(%arg0: i32) -> (i32, i32) {
    %c0_i32 = arith.constant 0 : i32
    %c0_i32_0 = arith.constant 0 : i32
    %c0_i32_1 = arith.constant 0 : i32
    return %c0_i32, %c0_i32_0 : i32, i32
  }
  func.func @transform_7(%arg0: i32) -> (i32, i32, i32) {
    %c0_i32 = arith.constant 0 : i32
    %c0_i32_0 = arith.constant 0 : i32
    %c0_i32_1 = arith.constant 0 : i32
    %c0_i32_2 = arith.constant 0 : i32
    return %c0_i32, %c0_i32_0, %c0_i32_1 : i32, i32, i32
  }
  func.func @transform_8(%arg0: i32) -> (i32, i32) {
    %c0_i32 = arith.constant 0 : i32
    %c0_i32_0 = arith.constant 0 : i32
    %c0_i32_1 = arith.constant 0 : i32
    return %c0_i32, %c0_i32_0 : i32, i32
  }
  func.func @transform_9(%arg0: i32) -> (i32, i32) {
    %c0_i32 = arith.constant 0 : i32
    %c0_i32_0 = arith.constant 0 : i32
    %c0_i32_1 = arith.constant 0 : i32
    return %c0_i32, %c0_i32_0 : i32, i32
  }
  func.func @transform_10(%arg0: i32) -> (i32, i32) {
    %c0_i32 = arith.constant 0 : i32
    %c0_i32_0 = arith.constant 0 : i32
    %c0_i32_1 = arith.constant 0 : i32
    return %c0_i32, %c0_i32_0 : i32, i32
  }
  func.func @transform_11(%arg0: i32) -> (i32, i32) {
    %c0_i32 = arith.constant 0 : i32
    %c0_i32_0 = arith.constant 0 : i32
    %c0_i32_1 = arith.constant 0 : i32
    return %c0_i32, %c0_i32_0 : i32, i32
  }
  func.func @transform_12(%arg0: i32) -> (i32, i32) {
    %c0_i32 = arith.constant 0 : i32
    %c0_i32_0 = arith.constant 0 : i32
    %c0_i32_1 = arith.constant 0 : i32
    return %c0_i32, %c0_i32_0 : i32, i32
  }
  func.func @transform_13(%arg0: i32) -> (i32, i32) {
    %c0_i32 = arith.constant 0 : i32
    %c0_i32_0 = arith.constant 0 : i32
    return %arg0, %c0_i32 : i32, i32
  }
}

</mosaic_0001>

<llo_original>
// kernel: tpu_custom_call.1
$region0: #{tpu_custom_call.1}
  #allocation0 [shape = 'u32[]', space=smem, size = 0x4, offset = 0x4, fixed_abs, tag = 'smem constant byte address 0x4 - core index']
  #allocation1 [shape = 'u32[144,128]{1,0:T(1,128)}', space=vmem, size = 0x12000, scoped, tag = 'internal scratch']
  #allocation2 [shape = 'bf16[2,10,256]{2,1,0:T(8,128)(2,1)}', space=vmem, size = 0x4000, scoped, tag = 'scratch operand']
  %s0 = inlined_call_operand.hbm [shape: bf16[2,8,256], index: 0, kind: input, shape index: {}]
  %s1 = inlined_call_operand.vmem [shape: bf16[3,256,256], index: 1, kind: input, shape index: {}]
  %s2 = inlined_call_operand.vmem [shape: f32[1,256], index: 2, kind: input, shape index: {}]
  %s3 = inlined_call_operand.hbm [shape: f32[1,256], index: 3, kind: input, shape index: {}]
  %s4 = inlined_call_operand.vmem [shape: bf16[3,256,256], index: 4, kind: input, shape index: {}]
  %s5 = inlined_call_operand.vmem [shape: f32[1,256], index: 5, kind: input, shape index: {}]
  %s6 = inlined_call_operand.vmem [shape: f32[1,256], index: 6, kind: input, shape index: {}]
  %s7 = inlined_call_operand.vmem [shape: bf16[8,256,64], index: 7, kind: input, shape index: {}]
  %s8 = inlined_call_operand.vmem [shape: f32[1,64], index: 8, kind: input, shape index: {}]
  %s9 = inlined_call_operand.vmem [shape: bf16[64,64], index: 9, kind: input, shape index: {}]
  %s10 = inlined_call_operand.vmem [shape: f32[1,64], index: 10, kind: input, shape index: {}]
  %s11 = inlined_call_operand.vmem [shape: bf16[64,4], index: 11, kind: input, shape index: {}]
  %s12 = inlined_call_operand.vmem [shape: f32[1,4], index: 12, kind: input, shape index: {}]
  %s13 = inlined_call_operand.hbm [shape: f32[2,4], index: 13, kind: output, shape index: {}]
  %s14 = sld [smem:[#allocation0]]
  $region70: #{tpu_custom_call.1} parent=0
    _
  %s16 = ssub.s32 1, %s14
  %s17 = scalar_select 0, %s16, %s14
  $region1: #{tpu_custom_call.1} parent=0
    #allocation3 [shape = 'u8[8192]{0}', space=vmem, size = 0x2000, scoped, tag = 'input window, operand 0, single buffered']
    #allocation4 [shape = 's32[1]{0}', space=sflag, size = 0x4, scoped, tag = 'scoped memory for tpu_custom_call.1']
    #allocation5 [shape = 's32[1]{0}', space=sflag, size = 0x4, scoped, tag = 'scoped memory for tpu_custom_call.1']
    #allocation6 [shape = 'u8[1024]{0}', space=vmem, size = 0x400, scoped, tag = 'input window, operand 3, single buffered']
    #allocation7 [shape = 's32[1]{0}', space=sflag, size = 0x4, scoped, tag = 'scoped memory for tpu_custom_call.1']
    #allocation8 [shape = 'u8[1024]{0}', space=vmem, size = 0x400, scoped, tag = 'output window, operand 0, single buffered']
    %18 = vsyncpa [#allocation4], 0
    %19 = vsyncpa [#allocation7], 0
    %20 = vsyncpa [#allocation5], 0
    // Predicated region
    $region2: #{tpu_custom_call.1} parent=1 // pred_check
      _
    $region3: #{tpu_custom_call.1} parent=1 // pred_check_branch
      %22 = sbr.rel (0) target = $region5
    $region4: #{tpu_custom_call.1} parent=1 // pred_region
      %s24 = ssub.s32 256, 256
      %25 = vsyncadd [#allocation4], %s24
      %s26 = sshll.u32 [#allocation3], 4
      %s27 = int_to_ptr.vmem [resolvable:$true] %s26
      %32 = dma.hbm_to_vmem [thread:$0]  %s0, 256, %s27, [#allocation4], 128, 128, 8
    $region5: #{tpu_custom_call.1} parent=1 // pred_fallthru
      _
    // Predicated region
    $region6: #{tpu_custom_call.1} parent=1 // pred_check
      _
    $region7: #{tpu_custom_call.1} parent=1 // pred_check_branch
      %34 = sbr.rel (0) target = $region9
    $region8: #{tpu_custom_call.1} parent=1 // pred_region
      _
    $region9: #{tpu_custom_call.1} parent=1 // pred_fallthru
      _
    // Predicated region
    $region10: #{tpu_custom_call.1} parent=1 // pred_check
      _
    $region11: #{tpu_custom_call.1} parent=1 // pred_check_branch
      %36 = sbr.rel (0) target = $region13
    $region12: #{tpu_custom_call.1} parent=1 // pred_region
      _
    $region13: #{tpu_custom_call.1} parent=1 // pred_fallthru
      _
    // Predicated region
    $region14: #{tpu_custom_call.1} parent=1 // pred_check
      _
    $region15: #{tpu_custom_call.1} parent=1 // pred_check_branch
      %38 = sbr.rel (0) target = $region17
    $region16: #{tpu_custom_call.1} parent=1 // pred_region
      %s40 = ssub.s32 32, 32
      %41 = vsyncadd [#allocation7], %s40
      %s43 = sshll.u32 [#allocation6], 4
      %s44 = int_to_ptr.vmem [resolvable:$true] %s43
      %46 = dma.hbm_to_vmem [thread:$0]  %s3, 32, %s44, [#allocation7]
    $region17: #{tpu_custom_call.1} parent=1 // pred_fallthru
      _
    // Predicated region
    $region18: #{tpu_custom_call.1} parent=1 // pred_check
      _
    $region19: #{tpu_custom_call.1} parent=1 // pred_check_branch
      %48 = sbr.rel (0) target = $region21
    $region20: #{tpu_custom_call.1} parent=1 // pred_region
      _
    $region21: #{tpu_custom_call.1} parent=1 // pred_fallthru
      _
    // Predicated region
    $region22: #{tpu_custom_call.1} parent=1 // pred_check
      _
    $region23: #{tpu_custom_call.1} parent=1 // pred_check_branch
      %50 = sbr.rel (0) target = $region25
    $region24: #{tpu_custom_call.1} parent=1 // pred_region
      _
    $region25: #{tpu_custom_call.1} parent=1 // pred_fallthru
      _
    // Predicated region
    $region26: #{tpu_custom_call.1} parent=1 // pred_check
      _
    $region27: #{tpu_custom_call.1} parent=1 // pred_check_branch
      %52 = sbr.rel (0) target = $region29
    $region28: #{tpu_custom_call.1} parent=1 // pred_region
      _
    $region29: #{tpu_custom_call.1} parent=1 // pred_fallthru
      _
    // Predicated region
    $region30: #{tpu_custom_call.1} parent=1 // pred_check
      _
    $region31: #{tpu_custom_call.1} parent=1 // pred_check_branch
      %54 = sbr.rel (0) target = $region33
    $region32: #{tpu_custom_call.1} parent=1 // pred_region
      _
    $region33: #{tpu_custom_call.1} parent=1 // pred_fallthru
      _
    // Predicated region
    $region34: #{tpu_custom_call.1} parent=1 // pred_check
      _
    $region35: #{tpu_custom_call.1} parent=1 // pred_check_branch
      %56 = sbr.rel (0) target = $region37
    $region36: #{tpu_custom_call.1} parent=1 // pred_region
      _
    $region37: #{tpu_custom_call.1} parent=1 // pred_fallthru
      _
    // Predicated region
    $region38: #{tpu_custom_call.1} parent=1 // pred_check
      _
    $region39: #{tpu_custom_call.1} parent=1 // pred_check_branch
      %58 = sbr.rel (0) target = $region41
    $region40: #{tpu_custom_call.1} parent=1 // pred_region
      _
    $region41: #{tpu_custom_call.1} parent=1 // pred_fallthru
      _
    // Predicated region
    $region42: #{tpu_custom_call.1} parent=1 // pred_check
      _
    $region43: #{tpu_custom_call.1} parent=1 // pred_check_branch
      %60 = sbr.rel (0) target = $region45
    $region44: #{tpu_custom_call.1} parent=1 // pred_region
      _
    $region45: #{tpu_custom_call.1} parent=1 // pred_fallthru
      _
    // Predicated region
    $region46: #{tpu_custom_call.1} parent=1 // pred_check
      _
    $region47: #{tpu_custom_call.1} parent=1 // pred_check_branch
      %62 = sbr.rel (0) target = $region49
    $region48: #{tpu_custom_call.1} parent=1 // pred_region
      _
    $region49: #{tpu_custom_call.1} parent=1 // pred_fallthru
      _
    // Predicated region
    $region50: #{tpu_custom_call.1} parent=1 // pred_check
      _
    $region51: #{tpu_custom_call.1} parent=1 // pred_check_branch
      %64 = sbr.rel (0) target = $region53
    $region52: #{tpu_custom_call.1} parent=1 // pred_region
      _
    $region53: #{tpu_custom_call.1} parent=1 // pred_fallthru
      _
    // Predicated region
    $region54: #{tpu_custom_call.1} parent=1 // pred_check
      _
    $region55: #{tpu_custom_call.1} parent=1 // pred_check_branch
      %66 = sbr.rel (0) target = $region57
    $region56: #{tpu_custom_call.1} parent=1 // pred_region
      %67 = dma.done [#allocation4], 256
    $region57: #{tpu_custom_call.1} parent=1 // pred_fallthru
      _
    // Predicated region
    $region58: #{tpu_custom_call.1} parent=1 // pred_check
      _
    $region59: #{tpu_custom_call.1} parent=1 // pred_check_branch
      %69 = sbr.rel (0) target = $region61
    $region60: #{tpu_custom_call.1} parent=1 // pred_region
      %70 = dma.done [#allocation7], 32
    $region61: #{tpu_custom_call.1} parent=1 // pred_fallthru
      _
    %vm72 = vcmask 1040384
    %vm73 = vsmask.f32 256
    %vm74 = vmand %vm72, %vm73
    %vm75 = vcmask 1044484
    %vm76 = vsmask.f32 4352
    %vm77 = vmand %vm75, %vm76
    %vm78 = vmor %vm77, %vm74
    %v79 = vld [vmem:[#allocation2] sm:$0x11]
    %v80 = vsel %vm78, 0, %v79
    %81 = vst [vmem:[#allocation2] sm:$0x11] %v80
    %v82 = vld [vmem:[#allocation2 + $0x10] sm:$0x11]
    %v83 = vsel %vm78, 0, %v82
    %84 = vst [vmem:[#allocation2 + $0x10] sm:$0x11] %v83
    %vm85 = vsmask.f32 7938
    %vm86 = vmand %vm72, %vm85
    %vm87 = vsmask.f32 7954
    %vm88 = vmand %vm75, %vm87
    %vm89 = vmor %vm88, %vm86
    %v90 = vld [vmem:[#allocation2 + $0x8] sm:$0x11]
    %v91 = vsel %vm89, 0, %v90
    %92 = vst [vmem:[#allocation2 + $0x8] sm:$0x11] %v91
    %v93 = vld [vmem:[#allocation2 + $0x18] sm:$0x11]
    %v94 = vsel %vm89, 0, %v93
    %95 = vst [vmem:[#allocation2 + $0x18] sm:$0x11] %v94
    %v96 = vld [vmem:[#allocation3] sm:$0xff]
    %v97 = vld [vmem:[#allocation3 + $0x8] sm:$0xff]
    %v99 = vshrl.u32 %v96, 16
    %v101 = vrot.slane %v99, 7
    %v102 = vshll.u32 %v96, 16
    %v104 = vor.u32 %v101, %v102
    %v105 = vrot.slane %v101, 4
    %v107 = vshrl.u32 %v97, 16
    %v109 = vrot.slane %v107, 7
    %v110 = vshll.u32 %v97, 16
    %v112 = vor.u32 %v109, %v110
    %v113 = vrot.slane %v109, 4
    %vm118 = vcmask 1043456
    %vm119 = vmand %vm118, %vm85
    %vm120 = vcmask 1047556
    %vm121 = vmand %vm120, %vm87
    %vm122 = vmor %vm121, %vm119
    %v123 = vld [vmem:[#allocation2] sm:$0xff]
    %v124 = vsel %vm122, %v104, %v123
    %125 = vst [vmem:[#allocation2] sm:$0xff] %v124
    %v126 = vld [vmem:[#allocation2 + $0x8] sm:$0x11]
    %v127 = vsel %vm78, %v105, %v126
    %128 = vst [vmem:[#allocation2 + $0x8] sm:$0x11] %v127
    %v129 = vld [vmem:[#allocation2 + $0x10] sm:$0xff]
    %v130 = vsel %vm122, %v112, %v129
    %131 = vst [vmem:[#allocation2 + $0x10] sm:$0xff] %v130
    %v132 = vld [vmem:[#allocation2 + $0x18] sm:$0x11]
    %v133 = vsel %vm78, %v113, %v132
    %134 = vst [vmem:[#allocation2 + $0x18] sm:$0x11] %v133
    %v135 = vld [vmem:[#allocation2] sm:$0xff]
    %v136 = vld [vmem:[#allocation2 + $0x10] sm:$0xff]
    %v137 = vld [vmem:[%s1] sm:$0xff]
    %v138 = vld [vmem:[%s1 + $0x8] sm:$0xff]
    %v139 = vld [vmem:[%s1 + $0x10] sm:$0xff]
    %v140 = vld [vmem:[%s1 + $0x18] sm:$0xff]
    %v141 = vld [vmem:[%s1 + $0x20] sm:$0xff]
    %v142 = vld [vmem:[%s1 + $0x28] sm:$0xff]
    %v143 = vld [vmem:[%s1 + $0x30] sm:$0xff]
    %v144 = vld [vmem:[%s1 + $0x38] sm:$0xff]
    %v145 = vld [vmem:[%s1 + $0x40] sm:$0xff]
    %v146 = vld [vmem:[%s1 + $0x48] sm:$0xff]
    %v147 = vld [vmem:[%s1 + $0x50] sm:$0xff]
    %v148 = vld [vmem:[%s1 + $0x58] sm:$0xff]
    %v149 = vld [vmem:[%s1 + $0x60] sm:$0xff]
    %v150 = vld [vmem:[%s1 + $0x68] sm:$0xff]
    %v151 = vld [vmem:[%s1 + $0x70] sm:$0xff]
    %v152 = vld [vmem:[%s1 + $0x78] sm:$0xff]
    %v153 = vld [vmem:[%s1 + $0x80] sm:$0xff]
    %v154 = vld [vmem:[%s1 + $0x88] sm:$0xff]
    %v155 = vld [vmem:[%s1 + $0x90] sm:$0xff]
    %v156 = vld [vmem:[%s1 + $0x98] sm:$0xff]
    %v157 = vld [vmem:[%s1 + $0xa0] sm:$0xff]
    %v158 = vld [vmem:[%s1 + $0xa8] sm:$0xff]
    %v159 = vld [vmem:[%s1 + $0xb0] sm:$0xff]
    %v160 = vld [vmem:[%s1 + $0xb8] sm:$0xff]
    %v161 = vld [vmem:[%s1 + $0xc0] sm:$0xff]
    %v162 = vld [vmem:[%s1 + $0xc8] sm:$0xff]
    %v163 = vld [vmem:[%s1 + $0xd0] sm:$0xff]
    %v164 = vld [vmem:[%s1 + $0xd8] sm:$0xff]
    %v165 = vld [vmem:[%s1 + $0xe0] sm:$0xff]
    %v166 = vld [vmem:[%s1 + $0xe8] sm:$0xff]
    %v167 = vld [vmem:[%s1 + $0xf0] sm:$0xff]
    %v168 = vld [vmem:[%s1 + $0xf8] sm:$0xff]
    %v169 = vld [vmem:[#allocation2 + $0x8] sm:$0x11]
    %v170 = vld [vmem:[#allocation2 + $0x18] sm:$0x11]
    %vm171 = vsmask.f32 3328
    %vm172 = vsmask.f32 7440
    %vm173 = vmor %vm171, %vm172
    %v175 = vshrl.u32 %v135, 16
    %v177 = vrot.slane %v175, 4
    %v178 = vshll.u32 %v135, 16
    %v180 = vrot.slane %v178, 5
    %v181 = vor.u32 %v177, %v180
    %v182 = vrot.slane %v181, 4
    %v184 = vshll.u32 %v169, 16
    %v186 = vrot.slane %v184, 5
    %v187 = vsel %vm173, %v182, %v186
    %v189 = vshrl.u32 %v136, 16
    %v191 = vrot.slane %v189, 4
    %v192 = vshll.u32 %v136, 16
    %v194 = vrot.slane %v192, 5
    %v195 = vor.u32 %v191, %v194
    %v196 = vrot.slane %v195, 4
    %v198 = vshll.u32 %v170, 16
    %v200 = vrot.slane %v198, 5
    %v201 = vsel %vm173, %v196, %v200
    %s202 = scalar_lea.vmem %s1, 256
    %v203 = vld [vmem:[%s202] sm:$0xff]
    %v204 = vld [vmem:[%s202 + $0x8] sm:$0xff]
    %v205 = vld [vmem:[%s202 + $0x10] sm:$0xff]
    %v206 = vld [vmem:[%s202 + $0x18] sm:$0xff]
    %v207 = vld [vmem:[%s202 + $0x20] sm:$0xff]
    %v208 = vld [vmem:[%s202 + $0x28] sm:$0xff]
    %v209 = vld [vmem:[%s202 + $0x30] sm:$0xff]
    %v210 = vld [vmem:[%s202 + $0x38] sm:$0xff]
    %v211 = vld [vmem:[%s202 + $0x40] sm:$0xff]
    %v212 = vld [vmem:[%s202 + $0x48] sm:$0xff]
    %v213 = vld [vmem:[%s202 + $0x50] sm:$0xff]
    %v214 = vld [vmem:[%s202 + $0x58] sm:$0xff]
    %v215 = vld [vmem:[%s202 + $0x60] sm:$0xff]
    %v216 = vld [vmem:[%s202 + $0x68] sm:$0xff]
    %v217 = vld [vmem:[%s202 + $0x70] sm:$0xff]
    %v218 = vld [vmem:[%s202 + $0x78] sm:$0xff]
    %v219 = vld [vmem:[%s202 + $0x80] sm:$0xff]
    %v220 = vld [vmem:[%s202 + $0x88] sm:$0xff]
    %v221 = vld [vmem:[%s202 + $0x90] sm:$0xff]
    %v222 = vld [vmem:[%s202 + $0x98] sm:$0xff]
    %v223 = vld [vmem:[%s202 + $0xa0] sm:$0xff]
    %v224 = vld [vmem:[%s202 + $0xa8] sm:$0xff]
    %v225 = vld [vmem:[%s202 + $0xb0] sm:$0xff]
    %v226 = vld [vmem:[%s202 + $0xb8] sm:$0xff]
    %v227 = vld [vmem:[%s202 + $0xc0] sm:$0xff]
    %v228 = vld [vmem:[%s202 + $0xc8] sm:$0xff]
    %v229 = vld [vmem:[%s202 + $0xd0] sm:$0xff]
    %v230 = vld [vmem:[%s202 + $0xd8] sm:$0xff]
    %v231 = vld [vmem:[%s202 + $0xe0] sm:$0xff]
    %v232 = vld [vmem:[%s202 + $0xe8] sm:$0xff]
    %v233 = vld [vmem:[%s202 + $0xf0] sm:$0xff]
    %v234 = vld [vmem:[%s202 + $0xf8] sm:$0xff]
    %v235 = vunpack.c.l.b16 %v187
    %v236 = vunpack.c.h.b16 %v187
    %v237 = vunpack.c.l.b16 %v201
    %v238 = vunpack.c.h.b16 %v201
    %v239 = vpack.c.b16 %v237, %v235
    %v240 = vpack.c.b16 %v238, %v236
    %v275 = vunpack.c.l.b16 %v203
    %v276 = vunpack.c.h.b16 %v203
    %v277 = vunpack.c.l.b16 %v204
    %v278 = vunpack.c.h.b16 %v204
    %v279 = vunpack.c.l.b16 %v205
    %v280 = vunpack.c.h.b16 %v205
    %v281 = vunpack.c.l.b16 %v206
    %v282 = vunpack.c.h.b16 %v206
    %v283 = vunpack.c.l.b16 %v207
    %v284 = vunpack.c.h.b16 %v207
    %v285 = vunpack.c.l.b16 %v208
    %v286 = vunpack.c.h.b16 %v208
    %v287 = vunpack.c.l.b16 %v209
    %v288 = vunpack.c.h.b16 %v209
    %v289 = vunpack.c.l.b16 %v210
    %v290 = vunpack.c.h.b16 %v210
    %v291 = vunpack.c.l.b16 %v211
    %v292 = vunpack.c.h.b16 %v211
    %v293 = vunpack.c.l.b16 %v212
    %v294 = vunpack.c.h.b16 %v212
    %v295 = vunpack.c.l.b16 %v213
    %v296 = vunpack.c.h.b16 %v213
    %v297 = vunpack.c.l.b16 %v214
    %v298 = vunpack.c.h.b16 %v214
    %v299 = vunpack.c.l.b16 %v215
    %v300 = vunpack.c.h.b16 %v215
    %v301 = vunpack.c.l.b16 %v216
    %v302 = vunpack.c.h.b16 %v216
    %v303 = vunpack.c.l.b16 %v217
    %v304 = vunpack.c.h.b16 %v217
    %v305 = vunpack.c.l.b16 %v218
    %v306 = vunpack.c.h.b16 %v218
    %v307 = vunpack.c.l.b16 %v219
    %v308 = vunpack.c.h.b16 %v219
    %v309 = vunpack.c.l.b16 %v220
    %v310 = vunpack.c.h.b16 %v220
    %v311 = vunpack.c.l.b16 %v221
    %v312 = vunpack.c.h.b16 %v221
    %v313 = vunpack.c.l.b16 %v222
    %v314 = vunpack.c.h.b16 %v222
    %v315 = vunpack.c.l.b16 %v223
    %v316 = vunpack.c.h.b16 %v223
    %v317 = vunpack.c.l.b16 %v224
    %v318 = vunpack.c.h.b16 %v224
    %v319 = vunpack.c.l.b16 %v225
    %v320 = vunpack.c.h.b16 %v225
    %v321 = vunpack.c.l.b16 %v226
    %v322 = vunpack.c.h.b16 %v226
    %v323 = vunpack.c.l.b16 %v227
    %v324 = vunpack.c.h.b16 %v227
    %v325 = vunpack.c.l.b16 %v228
    %v326 = vunpack.c.h.b16 %v228
    %v327 = vunpack.c.l.b16 %v229
    %v328 = vunpack.c.h.b16 %v229
    %v329 = vunpack.c.l.b16 %v230
    %v330 = vunpack.c.h.b16 %v230
    %v331 = vunpack.c.l.b16 %v231
    %v332 = vunpack.c.h.b16 %v231
    %v333 = vunpack.c.l.b16 %v232
    %v334 = vunpack.c.h.b16 %v232
    %v335 = vunpack.c.l.b16 %v233
    %v336 = vunpack.c.h.b16 %v233
    %v337 = vunpack.c.l.b16 %v234
    %v338 = vunpack.c.h.b16 %v234
    %v339 = vpack.c.b16 %v277, %v275
    %v340 = vpack.c.b16 %v278, %v276
    %v341 = vpack.c.b16 %v281, %v279
    %v342 = vpack.c.b16 %v282, %v280
    %v343 = vpack.c.b16 %v285, %v283
    %v344 = vpack.c.b16 %v286, %v284
    %v345 = vpack.c.b16 %v289, %v287
    %v346 = vpack.c.b16 %v290, %v288
    %v347 = vpack.c.b16 %v293, %v291
    %v348 = vpack.c.b16 %v294, %v292
    %v349 = vpack.c.b16 %v297, %v295
    %v350 = vpack.c.b16 %v298, %v296
    %v351 = vpack.c.b16 %v301, %v299
    %v352 = vpack.c.b16 %v302, %v300
    %v353 = vpack.c.b16 %v305, %v303
    %v354 = vpack.c.b16 %v306, %v304
    %v355 = vpack.c.b16 %v309, %v307
    %v356 = vpack.c.b16 %v310, %v308
    %v357 = vpack.c.b16 %v313, %v311
    %v358 = vpack.c.b16 %v314, %v312
    %v359 = vpack.c.b16 %v317, %v315
    %v360 = vpack.c.b16 %v318, %v316
    %v361 = vpack.c.b16 %v321, %v319
    %v362 = vpack.c.b16 %v322, %v320
    %v363 = vpack.c.b16 %v325, %v323
    %v364 = vpack.c.b16 %v326, %v324
    %v365 = vpack.c.b16 %v329, %v327
    %v366 = vpack.c.b16 %v330, %v328
    %v367 = vpack.c.b16 %v333, %v331
    %v368 = vpack.c.b16 %v334, %v332
    %v369 = vpack.c.b16 %v337, %v335
    %v370 = vpack.c.b16 %v338, %v336
    %403 = vmatprep.subr.bf16.mxu0 %v340
    %404 = vmatpush1.bf16.msra.mxu0 %v339
    %405 = vmatprep.subr.bf16.mxu0 %v342
    %406 = vmatpush1.bf16.msra.mxu0 %v341
    %407 = vmatprep.subr.bf16.mxu0 %v344
    %408 = vmatpush1.bf16.msra.mxu0 %v343
    %409 = vmatprep.subr.bf16.mxu0 %v346
    %410 = vmatpush1.bf16.msra.mxu0 %v345
    %411 = vmatprep.subr.bf16.mxu0 %v348
    %412 = vmatpush1.bf16.msra.mxu0 %v347
    %413 = vmatprep.subr.bf16.mxu0 %v350
    %414 = vmatpush1.bf16.msra.mxu0 %v349
    %415 = vmatprep.subr.bf16.mxu0 %v352
    %416 = vmatpush1.bf16.msra.mxu0 %v351
    %417 = vmatprep.subr.bf16.mxu0 %v354
    %418 = vmatpush1.bf16.msra.mxu0 %v353
    %419 = vmatprep.subr.bf16.mxu0 %v356
    %420 = vmatpush1.bf16.msra.mxu0 %v355
    %421 = vmatprep.subr.bf16.mxu0 %v358
    %422 = vmatpush1.bf16.msra.mxu0 %v357
    %423 = vmatprep.subr.bf16.mxu0 %v360
    %424 = vmatpush1.bf16.msra.mxu0 %v359
    %425 = vmatprep.subr.bf16.mxu0 %v362
    %426 = vmatpush1.bf16.msra.mxu0 %v361
    %427 = vmatprep.subr.bf16.mxu0 %v364
    %428 = vmatpush1.bf16.msra.mxu0 %v363
    %429 = vmatprep.subr.bf16.mxu0 %v366
    %430 = vmatpush1.bf16.msra.mxu0 %v365
    %431 = vmatprep.subr.bf16.mxu0 %v368
    %432 = vmatpush1.bf16.msra.mxu0 %v367
    %433 = vmatprep.subr.bf16.mxu0 %v370
    %434 = vmatpush1.bf16.msra.mxu0 %v369
    %435 = vmatprep.mubr.bf16.mxu0 %v240
    %436 = vmatmul.mubr.bf16.gmra.mrb[0].mxu0 %v239
    %v437 = vpop.f32.mrb[0].mxu0
    %v438 = vadd.f32 0.0, %v437
    %v439 = vpop.f32.mrb[0].mxu0
    %v440 = vadd.f32 0.0, %v439
    %v441 = vpop.f32.mrb[0].mxu0
    %v442 = vadd.f32 0.0, %v441
    %v443 = vpop.f32.mrb[0].mxu0
    %v444 = vadd.f32 0.0, %v443
    %445 = vdwg.mxu0
    %v448 = vunpack.c.l.b16 %v135
    %v449 = vunpack.c.h.b16 %v135
    %v450 = vunpack.c.l.b16 %v136
    %v451 = vunpack.c.h.b16 %v136
    %v452 = vpack.c.b16 %v450, %v448
    %v453 = vpack.c.b16 %v451, %v449
    %v488 = vunpack.c.l.b16 %v137
    %v489 = vunpack.c.h.b16 %v137
    %v490 = vunpack.c.l.b16 %v138
    %v491 = vunpack.c.h.b16 %v138
    %v492 = vunpack.c.l.b16 %v139
    %v493 = vunpack.c.h.b16 %v139
    %v494 = vunpack.c.l.b16 %v140
    %v495 = vunpack.c.h.b16 %v140
    %v496 = vunpack.c.l.b16 %v141
    %v497 = vunpack.c.h.b16 %v141
    %v498 = vunpack.c.l.b16 %v142
    %v499 = vunpack.c.h.b16 %v142
    %v500 = vunpack.c.l.b16 %v143
    %v501 = vunpack.c.h.b16 %v143
    %v502 = vunpack.c.l.b16 %v144
    %v503 = vunpack.c.h.b16 %v144
    %v504 = vunpack.c.l.b16 %v145
    %v505 = vunpack.c.h.b16 %v145
    %v506 = vunpack.c.l.b16 %v146
    %v507 = vunpack.c.h.b16 %v146
    %v508 = vunpack.c.l.b16 %v147
    %v509 = vunpack.c.h.b16 %v147
    %v510 = vunpack.c.l.b16 %v148
    %v511 = vunpack.c.h.b16 %v148
    %v512 = vunpack.c.l.b16 %v149
    %v513 = vunpack.c.h.b16 %v149
    %v514 = vunpack.c.l.b16 %v150
    %v515 = vunpack.c.h.b16 %v150
    %v516 = vunpack.c.l.b16 %v151
    %v517 = vunpack.c.h.b16 %v151
    %v518 = vunpack.c.l.b16 %v152
    %v519 = vunpack.c.h.b16 %v152
    %v520 = vunpack.c.l.b16 %v153
    %v521 = vunpack.c.h.b16 %v153
    %v522 = vunpack.c.l.b16 %v154
    %v523 = vunpack.c.h.b16 %v154
    %v524 = vunpack.c.l.b16 %v155
    %v525 = vunpack.c.h.b16 %v155
    %v526 = vunpack.c.l.b16 %v156
    %v527 = vunpack.c.h.b16 %v156
    %v528 = vunpack.c.l.b16 %v157
    %v529 = vunpack.c.h.b16 %v157
    %v530 = vunpack.c.l.b16 %v158
    %v531 = vunpack.c.h.b16 %v158
    %v532 = vunpack.c.l.b16 %v159
    %v533 = vunpack.c.h.b16 %v159
    %v534 = vunpack.c.l.b16 %v160
    %v535 = vunpack.c.h.b16 %v160
    %v536 = vunpack.c.l.b16 %v161
    %v537 = vunpack.c.h.b16 %v161
    %v538 = vunpack.c.l.b16 %v162
    %v539 = vunpack.c.h.b16 %v162
    %v540 = vunpack.c.l.b16 %v163
    %v541 = vunpack.c.h.b16 %v163
    %v542 = vunpack.c.l.b16 %v164
    %v543 = vunpack.c.h.b16 %v164
    %v544 = vunpack.c.l.b16 %v165
    %v545 = vunpack.c.h.b16 %v165
    %v546 = vunpack.c.l.b16 %v166
    %v547 = vunpack.c.h.b16 %v166
    %v548 = vunpack.c.l.b16 %v167
    %v549 = vunpack.c.h.b16 %v167
    %v550 = vunpack.c.l.b16 %v168
    %v551 = vunpack.c.h.b16 %v168
    %v552 = vpack.c.b16 %v490, %v488
    %v553 = vpack.c.b16 %v491, %v489
    %v554 = vpack.c.b16 %v494, %v492
    %v555 = vpack.c.b16 %v495, %v493
    %v556 = vpack.c.b16 %v498, %v496
    %v557 = vpack.c.b16 %v499, %v497
    %v558 = vpack.c.b16 %v502, %v500
    %v559 = vpack.c.b16 %v503, %v501
    %v560 = vpack.c.b16 %v506, %v504
    %v561 = vpack.c.b16 %v507, %v505
    %v562 = vpack.c.b16 %v510, %v508
    %v563 = vpack.c.b16 %v511, %v509
    %v564 = vpack.c.b16 %v514, %v512
    %v565 = vpack.c.b16 %v515, %v513
    %v566 = vpack.c.b16 %v518, %v516
    %v567 = vpack.c.b16 %v519, %v517
    %v568 = vpack.c.b16 %v522, %v520
    %v569 = vpack.c.b16 %v523, %v521
    %v570 = vpack.c.b16 %v526, %v524
    %v571 = vpack.c.b16 %v527, %v525
    %v572 = vpack.c.b16 %v530, %v528
    %v573 = vpack.c.b16 %v531, %v529
    %v574 = vpack.c.b16 %v534, %v532
    %v575 = vpack.c.b16 %v535, %v533
    %v576 = vpack.c.b16 %v538, %v536
    %v577 = vpack.c.b16 %v539, %v537
    %v578 = vpack.c.b16 %v542, %v540
    %v579 = vpack.c.b16 %v543, %v541
    %v580 = vpack.c.b16 %v546, %v544
    %v581 = vpack.c.b16 %v547, %v545
    %v582 = vpack.c.b16 %v550, %v548
    %v583 = vpack.c.b16 %v551, %v549
    %616 = vmatprep.subr.bf16.mxu0 %v553
    %617 = vmatpush1.bf16.msra.mxu0 %v552
    %618 = vmatprep.subr.bf16.mxu0 %v555
    %619 = vmatpush1.bf16.msra.mxu0 %v554
    %620 = vmatprep.subr.bf16.mxu0 %v557
    %621 = vmatpush1.bf16.msra.mxu0 %v556
    %622 = vmatprep.subr.bf16.mxu0 %v559
    %623 = vmatpush1.bf16.msra.mxu0 %v558
    %624 = vmatprep.subr.bf16.mxu0 %v561
    %625 = vmatpush1.bf16.msra.mxu0 %v560
    %626 = vmatprep.subr.bf16.mxu0 %v563
    %627 = vmatpush1.bf16.msra.mxu0 %v562
    %628 = vmatprep.subr.bf16.mxu0 %v565
    %629 = vmatpush1.bf16.msra.mxu0 %v564
    %630 = vmatprep.subr.bf16.mxu0 %v567
    %631 = vmatpush1.bf16.msra.mxu0 %v566
    %632 = vmatprep.subr.bf16.mxu0 %v569
    %633 = vmatpush1.bf16.msra.mxu0 %v568
    %634 = vmatprep.subr.bf16.mxu0 %v571
    %635 = vmatpush1.bf16.msra.mxu0 %v570
    %636 = vmatprep.subr.bf16.mxu0 %v573
    %637 = vmatpush1.bf16.msra.mxu0 %v572
    %638 = vmatprep.subr.bf16.mxu0 %v575
    %639 = vmatpush1.bf16.msra.mxu0 %v574
    %640 = vmatprep.subr.bf16.mxu0 %v577
    %641 = vmatpush1.bf16.msra.mxu0 %v576
    %642 = vmatprep.subr.bf16.mxu0 %v579
    %643 = vmatpush1.bf16.msra.mxu0 %v578
    %644 = vmatprep.subr.bf16.mxu0 %v581
    %645 = vmatpush1.bf16.msra.mxu0 %v580
    %646 = vmatprep.subr.bf16.mxu0 %v583
    %647 = vmatpush1.bf16.msra.mxu0 %v582
    %648 = vmatprep.mubr.bf16.mxu0 %v453
    %649 = vmatmul.mubr.bf16.gmra.mrb[0].mxu0 %v452
    %v650 = vpop.f32.mrb[0].mxu0
    %v651 = vadd.f32 %v438, %v650
    %v652 = vpop.f32.mrb[0].mxu0
    %v653 = vadd.f32 %v440, %v652
    %v654 = vpop.f32.mrb[0].mxu0
    %v655 = vadd.f32 %v442, %v654
    %v656 = vpop.f32.mrb[0].mxu0
    %v657 = vadd.f32 %v444, %v656
    %658 = vdwg.mxu0
    %v659 = vld [vmem:[#allocation2] sm:$0xee]
    %v660 = vld [vmem:[#allocation2 + $0x10] sm:$0xee]
    %vm665 = vcmask 1042432
    %vm666 = vcmask 1046532
    %vm667 = vmor %vm665, %vm666
    %v668 = vrot.slane %v659, 5
    %v669 = vrot.slane %v668, 4
    %v670 = vrot.slane %v169, 5
    %v671 = vsel %vm667, %v669, %v670
    %v672 = vrot.slane %v660, 5
    %v673 = vrot.slane %v672, 4
    %v674 = vrot.slane %v170, 5
    %v675 = vsel %vm667, %v673, %v674
    %s676 = scalar_lea.vmem %s1, 512
    %v677 = vld [vmem:[%s676] sm:$0xff]
    %v678 = vld [vmem:[%s676 + $0x8] sm:$0xff]
    %v679 = vld [vmem:[%s676 + $0x10] sm:$0xff]
    %v680 = vld [vmem:[%s676 + $0x18] sm:$0xff]
    %v681 = vld [vmem:[%s676 + $0x20] sm:$0xff]
    %v682 = vld [vmem:[%s676 + $0x28] sm:$0xff]
    %v683 = vld [vmem:[%s676 + $0x30] sm:$0xff]
    %v684 = vld [vmem:[%s676 + $0x38] sm:$0xff]
    %v685 = vld [vmem:[%s676 + $0x40] sm:$0xff]
    %v686 = vld [vmem:[%s676 + $0x48] sm:$0xff]
    %v687 = vld [vmem:[%s676 + $0x50] sm:$0xff]
    %v688 = vld [vmem:[%s676 + $0x58] sm:$0xff]
    %v689 = vld [vmem:[%s676 + $0x60] sm:$0xff]
    %v690 = vld [vmem:[%s676 + $0x68] sm:$0xff]
    %v691 = vld [vmem:[%s676 + $0x70] sm:$0xff]
    %v692 = vld [vmem:[%s676 + $0x78] sm:$0xff]
    %v693 = vld [vmem:[%s676 + $0x80] sm:$0xff]
    %v694 = vld [vmem:[%s676 + $0x88] sm:$0xff]
    %v695 = vld [vmem:[%s676 + $0x90] sm:$0xff]
    %v696 = vld [vmem:[%s676 + $0x98] sm:$0xff]
    %v697 = vld [vmem:[%s676 + $0xa0] sm:$0xff]
    %v698 = vld [vmem:[%s676 + $0xa8] sm:$0xff]
    %v699 = vld [vmem:[%s676 + $0xb0] sm:$0xff]
    %v700 = vld [vmem:[%s676 + $0xb8] sm:$0xff]
    %v701 = vld [vmem:[%s676 + $0xc0] sm:$0xff]
    %v702 = vld [vmem:[%s676 + $0xc8] sm:$0xff]
    %v703 = vld [vmem:[%s676 + $0xd0] sm:$0xff]
    %v704 = vld [vmem:[%s676 + $0xd8] sm:$0xff]
    %v705 = vld [vmem:[%s676 + $0xe0] sm:$0xff]
    %v706 = vld [vmem:[%s676 + $0xe8] sm:$0xff]
    %v707 = vld [vmem:[%s676 + $0xf0] sm:$0xff]
    %v708 = vld [vmem:[%s676 + $0xf8] sm:$0xff]
    %v709 = vunpack.c.l.b16 %v671
    %v710 = vunpack.c.h.b16 %v671
    %v711 = vunpack.c.l.b16 %v675
    %v712 = vunpack.c.h.b16 %v675
    %v713 = vpack.c.b16 %v711, %v709
    %v714 = vpack.c.b16 %v712, %v710
    %v749 = vunpack.c.l.b16 %v677
    %v750 = vunpack.c.h.b16 %v677
    %v751 = vunpack.c.l.b16 %v678
    %v752 = vunpack.c.h.b16 %v678
    %v753 = vunpack.c.l.b16 %v679
    %v754 = vunpack.c.h.b16 %v679
    %v755 = vunpack.c.l.b16 %v680
    %v756 = vunpack.c.h.b16 %v680
    %v757 = vunpack.c.l.b16 %v681
    %v758 = vunpack.c.h.b16 %v681
    %v759 = vunpack.c.l.b16 %v682
    %v760 = vunpack.c.h.b16 %v682
    %v761 = vunpack.c.l.b16 %v683
    %v762 = vunpack.c.h.b16 %v683
    %v763 = vunpack.c.l.b16 %v684
    %v764 = vunpack.c.h.b16 %v684
    %v765 = vunpack.c.l.b16 %v685
    %v766 = vunpack.c.h.b16 %v685
    %v767 = vunpack.c.l.b16 %v686
    %v768 = vunpack.c.h.b16 %v686
    %v769 = vunpack.c.l.b16 %v687
    %v770 = vunpack.c.h.b16 %v687
    %v771 = vunpack.c.l.b16 %v688
    %v772 = vunpack.c.h.b16 %v688
    %v773 = vunpack.c.l.b16 %v689
    %v774 = vunpack.c.h.b16 %v689
    %v775 = vunpack.c.l.b16 %v690
    %v776 = vunpack.c.h.b16 %v690
    %v777 = vunpack.c.l.b16 %v691
    %v778 = vunpack.c.h.b16 %v691
    %v779 = vunpack.c.l.b16 %v692
    %v780 = vunpack.c.h.b16 %v692
    %v781 = vunpack.c.l.b16 %v693
    %v782 = vunpack.c.h.b16 %v693
    %v783 = vunpack.c.l.b16 %v694
    %v784 = vunpack.c.h.b16 %v694
    %v785 = vunpack.c.l.b16 %v695
    %v786 = vunpack.c.h.b16 %v695
    %v787 = vunpack.c.l.b16 %v696
    %v788 = vunpack.c.h.b16 %v696
    %v789 = vunpack.c.l.b16 %v697
    %v790 = vunpack.c.h.b16 %v697
    %v791 = vunpack.c.l.b16 %v698
    %v792 = vunpack.c.h.b16 %v698
    %v793 = vunpack.c.l.b16 %v699
    %v794 = vunpack.c.h.b16 %v699
    %v795 = vunpack.c.l.b16 %v700
    %v796 = vunpack.c.h.b16 %v700
    %v797 = vunpack.c.l.b16 %v701
    %v798 = vunpack.c.h.b16 %v701
    %v799 = vunpack.c.l.b16 %v702
    %v800 = vunpack.c.h.b16 %v702
    %v801 = vunpack.c.l.b16 %v703
    %v802 = vunpack.c.h.b16 %v703
    %v803 = vunpack.c.l.b16 %v704
    %v804 = vunpack.c.h.b16 %v704
    %v805 = vunpack.c.l.b16 %v705
    %v806 = vunpack.c.h.b16 %v705
    %v807 = vunpack.c.l.b16 %v706
    %v808 = vunpack.c.h.b16 %v706
    %v809 = vunpack.c.l.b16 %v707
    %v810 = vunpack.c.h.b16 %v707
    %v811 = vunpack.c.l.b16 %v708
    %v812 = vunpack.c.h.b16 %v708
    %v813 = vpack.c.b16 %v751, %v749
    %v814 = vpack.c.b16 %v752, %v750
    %v815 = vpack.c.b16 %v755, %v753
    %v816 = vpack.c.b16 %v756, %v754
    %v817 = vpack.c.b16 %v759, %v757
    %v818 = vpack.c.b16 %v760, %v758
    %v819 = vpack.c.b16 %v763, %v761
    %v820 = vpack.c.b16 %v764, %v762
    %v821 = vpack.c.b16 %v767, %v765
    %v822 = vpack.c.b16 %v768, %v766
    %v823 = vpack.c.b16 %v771, %v769
    %v824 = vpack.c.b16 %v772, %v770
    %v825 = vpack.c.b16 %v775, %v773
    %v826 = vpack.c.b16 %v776, %v774
    %v827 = vpack.c.b16 %v779, %v777
    %v828 = vpack.c.b16 %v780, %v778
    %v829 = vpack.c.b16 %v783, %v781
    %v830 = vpack.c.b16 %v784, %v782
    %v831 = vpack.c.b16 %v787, %v785
    %v832 = vpack.c.b16 %v788, %v786
    %v833 = vpack.c.b16 %v791, %v789
    %v834 = vpack.c.b16 %v792, %v790
    %v835 = vpack.c.b16 %v795, %v793
    %v836 = vpack.c.b16 %v796, %v794
    %v837 = vpack.c.b16 %v799, %v797
    %v838 = vpack.c.b16 %v800, %v798
    %v839 = vpack.c.b16 %v803, %v801
    %v840 = vpack.c.b16 %v804, %v802
    %v841 = vpack.c.b16 %v807, %v805
    %v842 = vpack.c.b16 %v808, %v806
    %v843 = vpack.c.b16 %v811, %v809
    %v844 = vpack.c.b16 %v812, %v810
    %877 = vmatprep.subr.bf16.mxu0 %v814
    %878 = vmatpush1.bf16.msra.mxu0 %v813
    %879 = vmatprep.subr.bf16.mxu0 %v816
    %880 = vmatpush1.bf16.msra.mxu0 %v815
    %881 = vmatprep.subr.bf16.mxu0 %v818
    %882 = vmatpush1.bf16.msra.mxu0 %v817
    %883 = vmatprep.subr.bf16.mxu0 %v820
    %884 = vmatpush1.bf16.msra.mxu0 %v819
    %885 = vmatprep.subr.bf16.mxu0 %v822
    %886 = vmatpush1.bf16.msra.mxu0 %v821
    %887 = vmatprep.subr.bf16.mxu0 %v824
    %888 = vmatpush1.bf16.msra.mxu0 %v823
    %889 = vmatprep.subr.bf16.mxu0 %v826
    %890 = vmatpush1.bf16.msra.mxu0 %v825
    %891 = vmatprep.subr.bf16.mxu0 %v828
    %892 = vmatpush1.bf16.msra.mxu0 %v827
    %893 = vmatprep.subr.bf16.mxu0 %v830
    %894 = vmatpush1.bf16.msra.mxu0 %v829
    %895 = vmatprep.subr.bf16.mxu0 %v832
    %896 = vmatpush1.bf16.msra.mxu0 %v831
    %897 = vmatprep.subr.bf16.mxu0 %v834
    %898 = vmatpush1.bf16.msra.mxu0 %v833
    %899 = vmatprep.subr.bf16.mxu0 %v836
    %900 = vmatpush1.bf16.msra.mxu0 %v835
    %901 = vmatprep.subr.bf16.mxu0 %v838
    %902 = vmatpush1.bf16.msra.mxu0 %v837
    %903 = vmatprep.subr.bf16.mxu0 %v840
    %904 = vmatpush1.bf16.msra.mxu0 %v839
    %905 = vmatprep.subr.bf16.mxu0 %v842
    %906 = vmatpush1.bf16.msra.mxu0 %v841
    %907 = vmatprep.subr.bf16.mxu0 %v844
    %908 = vmatpush1.bf16.msra.mxu0 %v843
    %909 = vmatprep.mubr.bf16.mxu0 %v714
    %910 = vmatmul.mubr.bf16.gmra.mrb[0].mxu0 %v713
    %v911 = vpop.f32.mrb[0].mxu0
    %v912 = vadd.f32 0.0, %v911
    %v913 = vpop.f32.mrb[0].mxu0
    %v914 = vadd.f32 0.0, %v913
    %v915 = vpop.f32.mrb[0].mxu0
    %v916 = vadd.f32 0.0, %v915
    %v917 = vpop.f32.mrb[0].mxu0
    %v918 = vadd.f32 0.0, %v917
    %919 = vdwg.mxu0
    %v920 = vadd.f32 %v651, %v912
    %v921 = vadd.f32 %v653, %v914
    %v922 = vadd.f32 %v655, %v916
    %v923 = vadd.f32 %v657, %v918
    %v924 = vld [vmem:[%s2] sm:$0x3]
    %v926 = vlaneseq
    %v927 = vshrl.u32 %v926, 7
    %v928 = vsub.s32 0, %v927
    %v929 = vrot.slane %v924, %v928
    %v930 = vlaneseq
    %v931 = vshrl.u32 %v930, 7
    %v932 = vsub.s32 1, %v931
    %v933 = vrot.slane %v924, %v932
    %v936 = vmul.f32 %v920, %v929
    %v937 = vmul.f32 %v921, %v933
    %v938 = vmul.f32 %v922, %v929
    %v939 = vmul.f32 %v923, %v933
    %v940 = vld [vmem:[#allocation6] sm:$0x3]
    %v942 = vlaneseq
    %v943 = vshrl.u32 %v942, 7
    %v944 = vsub.s32 0, %v943
    %v945 = vrot.slane %v940, %v944
    %v946 = vlaneseq
    %v947 = vshrl.u32 %v946, 7
    %v948 = vsub.s32 1, %v947
    %v949 = vrot.slane %v940, %v948
    %v952 = vadd.f32 %v936, %v945
    %v953 = vadd.f32 %v937, %v949
    %v954 = vadd.f32 %v938, %v945
    %v955 = vadd.f32 %v939, %v949
    %v956 = vmax.f32 %v952, 0.0
    %v957 = vmax.f32 %v953, 0.0
    %v958 = vmax.f32 %v954, 0.0
    %v959 = vmax.f32 %v955, 0.0
    %v960 = vpack.c.bf16 %v956, %v956
    %v961 = vpack.c.bf16 %v957, %v957
    %v962 = vpack.c.bf16 %v958, %v958
    %v963 = vpack.c.bf16 %v959, %v959
    %v968 = vunpack.c.l.b16 %v960
    %v969 = vunpack.c.l.b16 %v961
    %v970 = vunpack.c.l.b16 %v962
    %v971 = vunpack.c.l.b16 %v963
    %v972 = vpack.c.b16 %v969, %v968
    %v973 = vpack.c.b16 %v971, %v970
    %v975 = vshrl.u32 %v972, 16
    %v977 = vrot.slane %v975, 7
    %v978 = vshll.u32 %v972, 16
    %v980 = vor.u32 %v977, %v978
    %v981 = vrot.slane %v977, 4
    %v983 = vshrl.u32 %v973, 16
    %v985 = vrot.slane %v983, 7
    %v986 = vshll.u32 %v973, 16
    %v988 = vor.u32 %v985, %v986
    %v989 = vrot.slane %v985, 4
    %v994 = vsel %vm122, %v980, %v135
    %995 = vst [vmem:[#allocation2] sm:$0xff] %v994
    %v996 = vld [vmem:[#allocation2 + $0x8] sm:$0x11]
    %v997 = vsel %vm78, %v981, %v996
    %998 = vst [vmem:[#allocation2 + $0x8] sm:$0x11] %v997
    %v999 = vld [vmem:[#allocation2 + $0x10] sm:$0xff]
    %v1000 = vsel %vm122, %v988, %v999
    %1001 = vst [vmem:[#allocation2 + $0x10] sm:$0xff] %v1000
    %v1002 = vld [vmem:[#allocation2 + $0x18] sm:$0x11]
    %v1003 = vsel %vm78, %v989, %v1002
    %1004 = vst [vmem:[#allocation2 + $0x18] sm:$0x11] %v1003
    %v1005 = vld [vmem:[#allocation2] sm:$0xff]
    %v1006 = vld [vmem:[#allocation2 + $0x10] sm:$0xff]
    %v1007 = vld [vmem:[%s4] sm:$0xff]
    %v1008 = vld [vmem:[%s4 + $0x8] sm:$0xff]
    %v1009 = vld [vmem:[%s4 + $0x10] sm:$0xff]
    %v1010 = vld [vmem:[%s4 + $0x18] sm:$0xff]
    %v1011 = vld [vmem:[%s4 + $0x20] sm:$0xff]
    %v1012 = vld [vmem:[%s4 + $0x28] sm:$0xff]
    %v1013 = vld [vmem:[%s4 + $0x30] sm:$0xff]
    %v1014 = vld [vmem:[%s4 + $0x38] sm:$0xff]
    %v1015 = vld [vmem:[%s4 + $0x40] sm:$0xff]
    %v1016 = vld [vmem:[%s4 + $0x48] sm:$0xff]
    %v1017 = vld [vmem:[%s4 + $0x50] sm:$0xff]
    %v1018 = vld [vmem:[%s4 + $0x58] sm:$0xff]
    %v1019 = vld [vmem:[%s4 + $0x60] sm:$0xff]
    %v1020 = vld [vmem:[%s4 + $0x68] sm:$0xff]
    %v1021 = vld [vmem:[%s4 + $0x70] sm:$0xff]
    %v1022 = vld [vmem:[%s4 + $0x78] sm:$0xff]
    %v1023 = vld [vmem:[%s4 + $0x80] sm:$0xff]
    %v1024 = vld [vmem:[%s4 + $0x88] sm:$0xff]
    %v1025 = vld [vmem:[%s4 + $0x90] sm:$0xff]
    %v1026 = vld [vmem:[%s4 + $0x98] sm:$0xff]
    %v1027 = vld [vmem:[%s4 + $0xa0] sm:$0xff]
    %v1028 = vld [vmem:[%s4 + $0xa8] sm:$0xff]
    %v1029 = vld [vmem:[%s4 + $0xb0] sm:$0xff]
    %v1030 = vld [vmem:[%s4 + $0xb8] sm:$0xff]
    %v1031 = vld [vmem:[%s4 + $0xc0] sm:$0xff]
    %v1032 = vld [vmem:[%s4 + $0xc8] sm:$0xff]
    %v1033 = vld [vmem:[%s4 + $0xd0] sm:$0xff]
    %v1034 = vld [vmem:[%s4 + $0xd8] sm:$0xff]
    %v1035 = vld [vmem:[%s4 + $0xe0] sm:$0xff]
    %v1036 = vld [vmem:[%s4 + $0xe8] sm:$0xff]
    %v1037 = vld [vmem:[%s4 + $0xf0] sm:$0xff]
    %v1038 = vld [vmem:[%s4 + $0xf8] sm:$0xff]
    %v1039 = vld [vmem:[#allocation2 + $0x8] sm:$0x11]
    %v1040 = vld [vmem:[#allocation2 + $0x18] sm:$0x11]
    %v1042 = vshrl.u32 %v1005, 16
    %v1044 = vrot.slane %v1042, 4
    %v1045 = vshll.u32 %v1005, 16
    %v1047 = vrot.slane %v1045, 5
    %v1048 = vor.u32 %v1044, %v1047
    %v1049 = vrot.slane %v1048, 4
    %v1051 = vshll.u32 %v1039, 16
    %v1053 = vrot.slane %v1051, 5
    %v1054 = vsel %vm173, %v1049, %v1053
    %v1056 = vshrl.u32 %v1006, 16
    %v1058 = vrot.slane %v1056, 4
    %v1059 = vshll.u32 %v1006, 16
    %v1061 = vrot.slane %v1059, 5
    %v1062 = vor.u32 %v1058, %v1061
    %v1063 = vrot.slane %v1062, 4
    %v1065 = vshll.u32 %v1040, 16
    %v1067 = vrot.slane %v1065, 5
    %v1068 = vsel %vm173, %v1063, %v1067
    %s1069 = scalar_lea.vmem %s4, 256
    %v1070 = vld [vmem:[%s1069] sm:$0xff]
    %v1071 = vld [vmem:[%s1069 + $0x8] sm:$0xff]
    %v1072 = vld [vmem:[%s1069 + $0x10] sm:$0xff]
    %v1073 = vld [vmem:[%s1069 + $0x18] sm:$0xff]
    %v1074 = vld [vmem:[%s1069 + $0x20] sm:$0xff]
    %v1075 = vld [vmem:[%s1069 + $0x28] sm:$0xff]
    %v1076 = vld [vmem:[%s1069 + $0x30] sm:$0xff]
    %v1077 = vld [vmem:[%s1069 + $0x38] sm:$0xff]
    %v1078 = vld [vmem:[%s1069 + $0x40] sm:$0xff]
    %v1079 = vld [vmem:[%s1069 + $0x48] sm:$0xff]
    %v1080 = vld [vmem:[%s1069 + $0x50] sm:$0xff]
    %v1081 = vld [vmem:[%s1069 + $0x58] sm:$0xff]
    %v1082 = vld [vmem:[%s1069 + $0x60] sm:$0xff]
    %v1083 = vld [vmem:[%s1069 + $0x68] sm:$0xff]
    %v1084 = vld [vmem:[%s1069 + $0x70] sm:$0xff]
    %v1085 = vld [vmem:[%s1069 + $0x78] sm:$0xff]
    %v1086 = vld [vmem:[%s1069 + $0x80] sm:$0xff]
    %v1087 = vld [vmem:[%s1069 + $0x88] sm:$0xff]
    %v1088 = vld [vmem:[%s1069 + $0x90] sm:$0xff]
    %v1089 = vld [vmem:[%s1069 + $0x98] sm:$0xff]
    %v1090 = vld [vmem:[%s1069 + $0xa0] sm:$0xff]
    %v1091 = vld [vmem:[%s1069 + $0xa8] sm:$0xff]
    %v1092 = vld [vmem:[%s1069 + $0xb0] sm:$0xff]
    %v1093 = vld [vmem:[%s1069 + $0xb8] sm:$0xff]
    %v1094 = vld [vmem:[%s1069 + $0xc0] sm:$0xff]
    %v1095 = vld [vmem:[%s1069 + $0xc8] sm:$0xff]
    %v1096 = vld [vmem:[%s1069 + $0xd0] sm:$0xff]
    %v1097 = vld [vmem:[%s1069 + $0xd8] sm:$0xff]
    %v1098 = vld [vmem:[%s1069 + $0xe0] sm:$0xff]
    %v1099 = vld [vmem:[%s1069 + $0xe8] sm:$0xff]
    %v1100 = vld [vmem:[%s1069 + $0xf0] sm:$0xff]
    %v1101 = vld [vmem:[%s1069 + $0xf8] sm:$0xff]
    %v1102 = vunpack.c.l.b16 %v1054
    %v1103 = vunpack.c.h.b16 %v1054
    %v1104 = vunpack.c.l.b16 %v1068
    %v1105 = vunpack.c.h.b16 %v1068
    %v1106 = vpack.c.b16 %v1104, %v1102
    %v1107 = vpack.c.b16 %v1105, %v1103
    %v1142 = vunpack.c.l.b16 %v1070
    %v1143 = vunpack.c.h.b16 %v1070
    %v1144 = vunpack.c.l.b16 %v1071
    %v1145 = vunpack.c.h.b16 %v1071
    %v1146 = vunpack.c.l.b16 %v1072
    %v1147 = vunpack.c.h.b16 %v1072
    %v1148 = vunpack.c.l.b16 %v1073
    %v1149 = vunpack.c.h.b16 %v1073
    %v1150 = vunpack.c.l.b16 %v1074
    %v1151 = vunpack.c.h.b16 %v1074
    %v1152 = vunpack.c.l.b16 %v1075
    %v1153 = vunpack.c.h.b16 %v1075
    %v1154 = vunpack.c.l.b16 %v1076
    %v1155 = vunpack.c.h.b16 %v1076
    %v1156 = vunpack.c.l.b16 %v1077
    %v1157 = vunpack.c.h.b16 %v1077
    %v1158 = vunpack.c.l.b16 %v1078
    %v1159 = vunpack.c.h.b16 %v1078
    %v1160 = vunpack.c.l.b16 %v1079
    %v1161 = vunpack.c.h.b16 %v1079
    %v1162 = vunpack.c.l.b16 %v1080
    %v1163 = vunpack.c.h.b16 %v1080
    %v1164 = vunpack.c.l.b16 %v1081
    %v1165 = vunpack.c.h.b16 %v1081
    %v1166 = vunpack.c.l.b16 %v1082
    %v1167 = vunpack.c.h.b16 %v1082
    %v1168 = vunpack.c.l.b16 %v1083
    %v1169 = vunpack.c.h.b16 %v1083
    %v1170 = vunpack.c.l.b16 %v1084
    %v1171 = vunpack.c.h.b16 %v1084
    %v1172 = vunpack.c.l.b16 %v1085
    %v1173 = vunpack.c.h.b16 %v1085
    %v1174 = vunpack.c.l.b16 %v1086
    %v1175 = vunpack.c.h.b16 %v1086
    %v1176 = vunpack.c.l.b16 %v1087
    %v1177 = vunpack.c.h.b16 %v1087
    %v1178 = vunpack.c.l.b16 %v1088
    %v1179 = vunpack.c.h.b16 %v1088
    %v1180 = vunpack.c.l.b16 %v1089
    %v1181 = vunpack.c.h.b16 %v1089
    %v1182 = vunpack.c.l.b16 %v1090
    %v1183 = vunpack.c.h.b16 %v1090
    %v1184 = vunpack.c.l.b16 %v1091
    %v1185 = vunpack.c.h.b16 %v1091
    %v1186 = vunpack.c.l.b16 %v1092
    %v1187 = vunpack.c.h.b16 %v1092
    %v1188 = vunpack.c.l.b16 %v1093
    %v1189 = vunpack.c.h.b16 %v1093
    %v1190 = vunpack.c.l.b16 %v1094
    %v1191 = vunpack.c.h.b16 %v1094
    %v1192 = vunpack.c.l.b16 %v1095
    %v1193 = vunpack.c.h.b16 %v1095
    %v1194 = vunpack.c.l.b16 %v1096
    %v1195 = vunpack.c.h.b16 %v1096
    %v1196 = vunpack.c.l.b16 %v1097
    %v1197 = vunpack.c.h.b16 %v1097
    %v1198 = vunpack.c.l.b16 %v1098
    %v1199 = vunpack.c.h.b16 %v1098
    %v1200 = vunpack.c.l.b16 %v1099
    %v1201 = vunpack.c.h.b16 %v1099
    %v1202 = vunpack.c.l.b16 %v1100
    %v1203 = vunpack.c.h.b16 %v1100
    %v1204 = vunpack.c.l.b16 %v1101
    %v1205 = vunpack.c.h.b16 %v1101
    %v1206 = vpack.c.b16 %v1144, %v1142
    %v1207 = vpack.c.b16 %v1145, %v1143
    %v1208 = vpack.c.b16 %v1148, %v1146
    %v1209 = vpack.c.b16 %v1149, %v1147
    %v1210 = vpack.c.b16 %v1152, %v1150
    %v1211 = vpack.c.b16 %v1153, %v1151
    %v1212 = vpack.c.b16 %v1156, %v1154
    %v1213 = vpack.c.b16 %v1157, %v1155
    %v1214 = vpack.c.b16 %v1160, %v1158
    %v1215 = vpack.c.b16 %v1161, %v1159
    %v1216 = vpack.c.b16 %v1164, %v1162
    %v1217 = vpack.c.b16 %v1165, %v1163
    %v1218 = vpack.c.b16 %v1168, %v1166
    %v1219 = vpack.c.b16 %v1169, %v1167
    %v1220 = vpack.c.b16 %v1172, %v1170
    %v1221 = vpack.c.b16 %v1173, %v1171
    %v1222 = vpack.c.b16 %v1176, %v1174
    %v1223 = vpack.c.b16 %v1177, %v1175
    %v1224 = vpack.c.b16 %v1180, %v1178
    %v1225 = vpack.c.b16 %v1181, %v1179
    %v1226 = vpack.c.b16 %v1184, %v1182
    %v1227 = vpack.c.b16 %v1185, %v1183
    %v1228 = vpack.c.b16 %v1188, %v1186
    %v1229 = vpack.c.b16 %v1189, %v1187
    %v1230 = vpack.c.b16 %v1192, %v1190
    %v1231 = vpack.c.b16 %v1193, %v1191
    %v1232 = vpack.c.b16 %v1196, %v1194
    %v1233 = vpack.c.b16 %v1197, %v1195
    %v1234 = vpack.c.b16 %v1200, %v1198
    %v1235 = vpack.c.b16 %v1201, %v1199
    %v1236 = vpack.c.b16 %v1204, %v1202
    %v1237 = vpack.c.b16 %v1205, %v1203
    %1270 = vmatprep.subr.bf16.mxu0 %v1207
    %1271 = vmatpush1.bf16.msra.mxu0 %v1206
    %1272 = vmatprep.subr.bf16.mxu0 %v1209
    %1273 = vmatpush1.bf16.msra.mxu0 %v1208
    %1274 = vmatprep.subr.bf16.mxu0 %v1211
    %1275 = vmatpush1.bf16.msra.mxu0 %v1210
    %1276 = vmatprep.subr.bf16.mxu0 %v1213
    %1277 = vmatpush1.bf16.msra.mxu0 %v1212
    %1278 = vmatprep.subr.bf16.mxu0 %v1215
    %1279 = vmatpush1.bf16.msra.mxu0 %v1214
    %1280 = vmatprep.subr.bf16.mxu0 %v1217
    %1281 = vmatpush1.bf16.msra.mxu0 %v1216
    %1282 = vmatprep.subr.bf16.mxu0 %v1219
    %1283 = vmatpush1.bf16.msra.mxu0 %v1218
    %1284 = vmatprep.subr.bf16.mxu0 %v1221
    %1285 = vmatpush1.bf16.msra.mxu0 %v1220
    %1286 = vmatprep.subr.bf16.mxu0 %v1223
    %1287 = vmatpush1.bf16.msra.mxu0 %v1222
    %1288 = vmatprep.subr.bf16.mxu0 %v1225
    %1289 = vmatpush1.bf16.msra.mxu0 %v1224
    %1290 = vmatprep.subr.bf16.mxu0 %v1227
    %1291 = vmatpush1.bf16.msra.mxu0 %v1226
    %1292 = vmatprep.subr.bf16.mxu0 %v1229
    %1293 = vmatpush1.bf16.msra.mxu0 %v1228
    %1294 = vmatprep.subr.bf16.mxu0 %v1231
    %1295 = vmatpush1.bf16.msra.mxu0 %v1230
    %1296 = vmatprep.subr.bf16.mxu0 %v1233
    %1297 = vmatpush1.bf16.msra.mxu0 %v1232
    %1298 = vmatprep.subr.bf16.mxu0 %v1235
    %1299 = vmatpush1.bf16.msra.mxu0 %v1234
    %1300 = vmatprep.subr.bf16.mxu0 %v1237
    %1301 = vmatpush1.bf16.msra.mxu0 %v1236
    %1302 = vmatprep.mubr.bf16.mxu0 %v1107
    %1303 = vmatmul.mubr.bf16.gmra.mrb[0].mxu0 %v1106
    %v1304 = vpop.f32.mrb[0].mxu0
    %v1305 = vadd.f32 0.0, %v1304
    %v1306 = vpop.f32.mrb[0].mxu0
    %v1307 = vadd.f32 0.0, %v1306
    %v1308 = vpop.f32.mrb[0].mxu0
    %v1309 = vadd.f32 0.0, %v1308
    %v1310 = vpop.f32.mrb[0].mxu0
    %v1311 = vadd.f32 0.0, %v1310
    %1312 = vdwg.mxu0
    %v1315 = vunpack.c.l.b16 %v1005
    %v1316 = vunpack.c.h.b16 %v1005
    %v1317 = vunpack.c.l.b16 %v1006
    %v1318 = vunpack.c.h.b16 %v1006
    %v1319 = vpack.c.b16 %v1317, %v1315
    %v1320 = vpack.c.b16 %v1318, %v1316
    %v1355 = vunpack.c.l.b16 %v1007
    %v1356 = vunpack.c.h.b16 %v1007
    %v1357 = vunpack.c.l.b16 %v1008
    %v1358 = vunpack.c.h.b16 %v1008
    %v1359 = vunpack.c.l.b16 %v1009
    %v1360 = vunpack.c.h.b16 %v1009
    %v1361 = vunpack.c.l.b16 %v1010
    %v1362 = vunpack.c.h.b16 %v1010
    %v1363 = vunpack.c.l.b16 %v1011
    %v1364 = vunpack.c.h.b16 %v1011
    %v1365 = vunpack.c.l.b16 %v1012
    %v1366 = vunpack.c.h.b16 %v1012
    %v1367 = vunpack.c.l.b16 %v1013
    %v1368 = vunpack.c.h.b16 %v1013
    %v1369 = vunpack.c.l.b16 %v1014
    %v1370 = vunpack.c.h.b16 %v1014
    %v1371 = vunpack.c.l.b16 %v1015
    %v1372 = vunpack.c.h.b16 %v1015
    %v1373 = vunpack.c.l.b16 %v1016
    %v1374 = vunpack.c.h.b16 %v1016
    %v1375 = vunpack.c.l.b16 %v1017
    %v1376 = vunpack.c.h.b16 %v1017
    %v1377 = vunpack.c.l.b16 %v1018
    %v1378 = vunpack.c.h.b16 %v1018
    %v1379 = vunpack.c.l.b16 %v1019
    %v1380 = vunpack.c.h.b16 %v1019
    %v1381 = vunpack.c.l.b16 %v1020
    %v1382 = vunpack.c.h.b16 %v1020
    %v1383 = vunpack.c.l.b16 %v1021
    %v1384 = vunpack.c.h.b16 %v1021
    %v1385 = vunpack.c.l.b16 %v1022
    %v1386 = vunpack.c.h.b16 %v1022
    %v1387 = vunpack.c.l.b16 %v1023
    %v1388 = vunpack.c.h.b16 %v1023
    %v1389 = vunpack.c.l.b16 %v1024
    %v1390 = vunpack.c.h.b16 %v1024
    %v1391 = vunpack.c.l.b16 %v1025
    %v1392 = vunpack.c.h.b16 %v1025
    %v1393 = vunpack.c.l.b16 %v1026
    %v1394 = vunpack.c.h.b16 %v1026
    %v1395 = vunpack.c.l.b16 %v1027
    %v1396 = vunpack.c.h.b16 %v1027
    %v1397 = vunpack.c.l.b16 %v1028
    %v1398 = vunpack.c.h.b16 %v1028
    %v1399 = vunpack.c.l.b16 %v1029
    %v1400 = vunpack.c.h.b16 %v1029
    %v1401 = vunpack.c.l.b16 %v1030
    %v1402 = vunpack.c.h.b16 %v1030
    %v1403 = vunpack.c.l.b16 %v1031
    %v1404 = vunpack.c.h.b16 %v1031
    %v1405 = vunpack.c.l.b16 %v1032
    %v1406 = vunpack.c.h.b16 %v1032
    %v1407 = vunpack.c.l.b16 %v1033
    %v1408 = vunpack.c.h.b16 %v1033
    %v1409 = vunpack.c.l.b16 %v1034
    %v1410 = vunpack.c.h.b16 %v1034
    %v1411 = vunpack.c.l.b16 %v1035
    %v1412 = vunpack.c.h.b16 %v1035
    %v1413 = vunpack.c.l.b16 %v1036
    %v1414 = vunpack.c.h.b16 %v1036
    %v1415 = vunpack.c.l.b16 %v1037
    %v1416 = vunpack.c.h.b16 %v1037
    %v1417 = vunpack.c.l.b16 %v1038
    %v1418 = vunpack.c.h.b16 %v1038
    %v1419 = vpack.c.b16 %v1357, %v1355
    %v1420 = vpack.c.b16 %v1358, %v1356
    %v1421 = vpack.c.b16 %v1361, %v1359
    %v1422 = vpack.c.b16 %v1362, %v1360
    %v1423 = vpack.c.b16 %v1365, %v1363
    %v1424 = vpack.c.b16 %v1366, %v1364
    %v1425 = vpack.c.b16 %v1369, %v1367
    %v1426 = vpack.c.b16 %v1370, %v1368
    %v1427 = vpack.c.b16 %v1373, %v1371
    %v1428 = vpack.c.b16 %v1374, %v1372
    %v1429 = vpack.c.b16 %v1377, %v1375
    %v1430 = vpack.c.b16 %v1378, %v1376
    %v1431 = vpack.c.b16 %v1381, %v1379
    %v1432 = vpack.c.b16 %v1382, %v1380
    %v1433 = vpack.c.b16 %v1385, %v1383
    %v1434 = vpack.c.b16 %v1386, %v1384
    %v1435 = vpack.c.b16 %v1389, %v1387
    %v1436 = vpack.c.b16 %v1390, %v1388
    %v1437 = vpack.c.b16 %v1393, %v1391
    %v1438 = vpack.c.b16 %v1394, %v1392
    %v1439 = vpack.c.b16 %v1397, %v1395
    %v1440 = vpack.c.b16 %v1398, %v1396
    %v1441 = vpack.c.b16 %v1401, %v1399
    %v1442 = vpack.c.b16 %v1402, %v1400
    %v1443 = vpack.c.b16 %v1405, %v1403
    %v1444 = vpack.c.b16 %v1406, %v1404
    %v1445 = vpack.c.b16 %v1409, %v1407
    %v1446 = vpack.c.b16 %v1410, %v1408
    %v1447 = vpack.c.b16 %v1413, %v1411
    %v1448 = vpack.c.b16 %v1414, %v1412
    %v1449 = vpack.c.b16 %v1417, %v1415
    %v1450 = vpack.c.b16 %v1418, %v1416
    %1483 = vmatprep.subr.bf16.mxu0 %v1420
    %1484 = vmatpush1.bf16.msra.mxu0 %v1419
    %1485 = vmatprep.subr.bf16.mxu0 %v1422
    %1486 = vmatpush1.bf16.msra.mxu0 %v1421
    %1487 = vmatprep.subr.bf16.mxu0 %v1424
    %1488 = vmatpush1.bf16.msra.mxu0 %v1423
    %1489 = vmatprep.subr.bf16.mxu0 %v1426
    %1490 = vmatpush1.bf16.msra.mxu0 %v1425
    %1491 = vmatprep.subr.bf16.mxu0 %v1428
    %1492 = vmatpush1.bf16.msra.mxu0 %v1427
    %1493 = vmatprep.subr.bf16.mxu0 %v1430
    %1494 = vmatpush1.bf16.msra.mxu0 %v1429
    %1495 = vmatprep.subr.bf16.mxu0 %v1432
    %1496 = vmatpush1.bf16.msra.mxu0 %v1431
    %1497 = vmatprep.subr.bf16.mxu0 %v1434
    %1498 = vmatpush1.bf16.msra.mxu0 %v1433
    %1499 = vmatprep.subr.bf16.mxu0 %v1436
    %1500 = vmatpush1.bf16.msra.mxu0 %v1435
    %1501 = vmatprep.subr.bf16.mxu0 %v1438
    %1502 = vmatpush1.bf16.msra.mxu0 %v1437
    %1503 = vmatprep.subr.bf16.mxu0 %v1440
    %1504 = vmatpush1.bf16.msra.mxu0 %v1439
    %1505 = vmatprep.subr.bf16.mxu0 %v1442
    %1506 = vmatpush1.bf16.msra.mxu0 %v1441
    %1507 = vmatprep.subr.bf16.mxu0 %v1444
    %1508 = vmatpush1.bf16.msra.mxu0 %v1443
    %1509 = vmatprep.subr.bf16.mxu0 %v1446
    %1510 = vmatpush1.bf16.msra.mxu0 %v1445
    %1511 = vmatprep.subr.bf16.mxu0 %v1448
    %1512 = vmatpush1.bf16.msra.mxu0 %v1447
    %1513 = vmatprep.subr.bf16.mxu0 %v1450
    %1514 = vmatpush1.bf16.msra.mxu0 %v1449
    %1515 = vmatprep.mubr.bf16.mxu0 %v1320
    %1516 = vmatmul.mubr.bf16.gmra.mrb[0].mxu0 %v1319
    %v1517 = vpop.f32.mrb[0].mxu0
    %v1518 = vadd.f32 %v1305, %v1517
    %v1519 = vpop.f32.mrb[0].mxu0
    %v1520 = vadd.f32 %v1307, %v1519
    %v1521 = vpop.f32.mrb[0].mxu0
    %v1522 = vadd.f32 %v1309, %v1521
    %v1523 = vpop.f32.mrb[0].mxu0
    %v1524 = vadd.f32 %v1311, %v1523
    %1525 = vdwg.mxu0
    %v1526 = vld [vmem:[#allocation2] sm:$0xee]
    %v1527 = vld [vmem:[#allocation2 + $0x10] sm:$0xee]
    %v1532 = vrot.slane %v1526, 5
    %v1533 = vrot.slane %v1532, 4
    %v1534 = vrot.slane %v1039, 5
    %v1535 = vsel %vm667, %v1533, %v1534
    %v1536 = vrot.slane %v1527, 5
    %v1537 = vrot.slane %v1536, 4
    %v1538 = vrot.slane %v1040, 5
    %v1539 = vsel %vm667, %v1537, %v1538
    %s1540 = scalar_lea.vmem %s4, 512
    %v1541 = vld [vmem:[%s1540] sm:$0xff]
    %v1542 = vld [vmem:[%s1540 + $0x8] sm:$0xff]
    %v1543 = vld [vmem:[%s1540 + $0x10] sm:$0xff]
    %v1544 = vld [vmem:[%s1540 + $0x18] sm:$0xff]
    %v1545 = vld [vmem:[%s1540 + $0x20] sm:$0xff]
    %v1546 = vld [vmem:[%s1540 + $0x28] sm:$0xff]
    %v1547 = vld [vmem:[%s1540 + $0x30] sm:$0xff]
    %v1548 = vld [vmem:[%s1540 + $0x38] sm:$0xff]
    %v1549 = vld [vmem:[%s1540 + $0x40] sm:$0xff]
    %v1550 = vld [vmem:[%s1540 + $0x48] sm:$0xff]
    %v1551 = vld [vmem:[%s1540 + $0x50] sm:$0xff]
    %v1552 = vld [vmem:[%s1540 + $0x58] sm:$0xff]
    %v1553 = vld [vmem:[%s1540 + $0x60] sm:$0xff]
    %v1554 = vld [vmem:[%s1540 + $0x68] sm:$0xff]
    %v1555 = vld [vmem:[%s1540 + $0x70] sm:$0xff]
    %v1556 = vld [vmem:[%s1540 + $0x78] sm:$0xff]
    %v1557 = vld [vmem:[%s1540 + $0x80] sm:$0xff]
    %v1558 = vld [vmem:[%s1540 + $0x88] sm:$0xff]
    %v1559 = vld [vmem:[%s1540 + $0x90] sm:$0xff]
    %v1560 = vld [vmem:[%s1540 + $0x98] sm:$0xff]
    %v1561 = vld [vmem:[%s1540 + $0xa0] sm:$0xff]
    %v1562 = vld [vmem:[%s1540 + $0xa8] sm:$0xff]
    %v1563 = vld [vmem:[%s1540 + $0xb0] sm:$0xff]
    %v1564 = vld [vmem:[%s1540 + $0xb8] sm:$0xff]
    %v1565 = vld [vmem:[%s1540 + $0xc0] sm:$0xff]
    %v1566 = vld [vmem:[%s1540 + $0xc8] sm:$0xff]
    %v1567 = vld [vmem:[%s1540 + $0xd0] sm:$0xff]
    %v1568 = vld [vmem:[%s1540 + $0xd8] sm:$0xff]
    %v1569 = vld [vmem:[%s1540 + $0xe0] sm:$0xff]
    %v1570 = vld [vmem:[%s1540 + $0xe8] sm:$0xff]
    %v1571 = vld [vmem:[%s1540 + $0xf0] sm:$0xff]
    %v1572 = vld [vmem:[%s1540 + $0xf8] sm:$0xff]
    %v1573 = vunpack.c.l.b16 %v1535
    %v1574 = vunpack.c.h.b16 %v1535
    %v1575 = vunpack.c.l.b16 %v1539
    %v1576 = vunpack.c.h.b16 %v1539
    %v1577 = vpack.c.b16 %v1575, %v1573
    %v1578 = vpack.c.b16 %v1576, %v1574
    %v1613 = vunpack.c.l.b16 %v1541
    %v1614 = vunpack.c.h.b16 %v1541
    %v1615 = vunpack.c.l.b16 %v1542
    %v1616 = vunpack.c.h.b16 %v1542
    %v1617 = vunpack.c.l.b16 %v1543
    %v1618 = vunpack.c.h.b16 %v1543
    %v1619 = vunpack.c.l.b16 %v1544
    %v1620 = vunpack.c.h.b16 %v1544
    %v1621 = vunpack.c.l.b16 %v1545
    %v1622 = vunpack.c.h.b16 %v1545
    %v1623 = vunpack.c.l.b16 %v1546
    %v1624 = vunpack.c.h.b16 %v1546
    %v1625 = vunpack.c.l.b16 %v1547
    %v1626 = vunpack.c.h.b16 %v1547
    %v1627 = vunpack.c.l.b16 %v1548
    %v1628 = vunpack.c.h.b16 %v1548
    %v1629 = vunpack.c.l.b16 %v1549
    %v1630 = vunpack.c.h.b16 %v1549
    %v1631 = vunpack.c.l.b16 %v1550
    %v1632 = vunpack.c.h.b16 %v1550
    %v1633 = vunpack.c.l.b16 %v1551
    %v1634 = vunpack.c.h.b16 %v1551
    %v1635 = vunpack.c.l.b16 %v1552
    %v1636 = vunpack.c.h.b16 %v1552
    %v1637 = vunpack.c.l.b16 %v1553
    %v1638 = vunpack.c.h.b16 %v1553
    %v1639 = vunpack.c.l.b16 %v1554
    %v1640 = vunpack.c.h.b16 %v1554
    %v1641 = vunpack.c.l.b16 %v1555
    %v1642 = vunpack.c.h.b16 %v1555
    %v1643 = vunpack.c.l.b16 %v1556
    %v1644 = vunpack.c.h.b16 %v1556
    %v1645 = vunpack.c.l.b16 %v1557
    %v1646 = vunpack.c.h.b16 %v1557
    %v1647 = vunpack.c.l.b16 %v1558
    %v1648 = vunpack.c.h.b16 %v1558
    %v1649 = vunpack.c.l.b16 %v1559
    %v1650 = vunpack.c.h.b16 %v1559
    %v1651 = vunpack.c.l.b16 %v1560
    %v1652 = vunpack.c.h.b16 %v1560
    %v1653 = vunpack.c.l.b16 %v1561
    %v1654 = vunpack.c.h.b16 %v1561
    %v1655 = vunpack.c.l.b16 %v1562
    %v1656 = vunpack.c.h.b16 %v1562
    %v1657 = vunpack.c.l.b16 %v1563
    %v1658 = vunpack.c.h.b16 %v1563
    %v1659 = vunpack.c.l.b16 %v1564
    %v1660 = vunpack.c.h.b16 %v1564
    %v1661 = vunpack.c.l.b16 %v1565
    %v1662 = vunpack.c.h.b16 %v1565
    %v1663 = vunpack.c.l.b16 %v1566
    %v1664 = vunpack.c.h.b16 %v1566
    %v1665 = vunpack.c.l.b16 %v1567
    %v1666 = vunpack.c.h.b16 %v1567
    %v1667 = vunpack.c.l.b16 %v1568
    %v1668 = vunpack.c.h.b16 %v1568
    %v1669 = vunpack.c.l.b16 %v1569
    %v1670 = vunpack.c.h.b16 %v1569
    %v1671 = vunpack.c.l.b16 %v1570
    %v1672 = vunpack.c.h.b16 %v1570
    %v1673 = vunpack.c.l.b16 %v1571
    %v1674 = vunpack.c.h.b16 %v1571
    %v1675 = vunpack.c.l.b16 %v1572
    %v1676 = vunpack.c.h.b16 %v1572
    %v1677 = vpack.c.b16 %v1615, %v1613
    %v1678 = vpack.c.b16 %v1616, %v1614
    %v1679 = vpack.c.b16 %v1619, %v1617
    %v1680 = vpack.c.b16 %v1620, %v1618
    %v1681 = vpack.c.b16 %v1623, %v1621
    %v1682 = vpack.c.b16 %v1624, %v1622
    %v1683 = vpack.c.b16 %v1627, %v1625
    %v1684 = vpack.c.b16 %v1628, %v1626
    %v1685 = vpack.c.b16 %v1631, %v1629
    %v1686 = vpack.c.b16 %v1632, %v1630
    %v1687 = vpack.c.b16 %v1635, %v1633
    %v1688 = vpack.c.b16 %v1636, %v1634
    %v1689 = vpack.c.b16 %v1639, %v1637
    %v1690 = vpack.c.b16 %v1640, %v1638
    %v1691 = vpack.c.b16 %v1643, %v1641
    %v1692 = vpack.c.b16 %v1644, %v1642
    %v1693 = vpack.c.b16 %v1647, %v1645
    %v1694 = vpack.c.b16 %v1648, %v1646
    %v1695 = vpack.c.b16 %v1651, %v1649
    %v1696 = vpack.c.b16 %v1652, %v1650
    %v1697 = vpack.c.b16 %v1655, %v1653
    %v1698 = vpack.c.b16 %v1656, %v1654
    %v1699 = vpack.c.b16 %v1659, %v1657
    %v1700 = vpack.c.b16 %v1660, %v1658
    %v1701 = vpack.c.b16 %v1663, %v1661
    %v1702 = vpack.c.b16 %v1664, %v1662
    %v1703 = vpack.c.b16 %v1667, %v1665
    %v1704 = vpack.c.b16 %v1668, %v1666
    %v1705 = vpack.c.b16 %v1671, %v1669
    %v1706 = vpack.c.b16 %v1672, %v1670
    %v1707 = vpack.c.b16 %v1675, %v1673
    %v1708 = vpack.c.b16 %v1676, %v1674
    %1741 = vmatprep.subr.bf16.mxu0 %v1678
    %1742 = vmatpush1.bf16.msra.mxu0 %v1677
    %1743 = vmatprep.subr.bf16.mxu0 %v1680
    %1744 = vmatpush1.bf16.msra.mxu0 %v1679
    %1745 = vmatprep.subr.bf16.mxu0 %v1682
    %1746 = vmatpush1.bf16.msra.mxu0 %v1681
    %1747 = vmatprep.subr.bf16.mxu0 %v1684
    %1748 = vmatpush1.bf16.msra.mxu0 %v1683
    %1749 = vmatprep.subr.bf16.mxu0 %v1686
    %1750 = vmatpush1.bf16.msra.mxu0 %v1685
    %1751 = vmatprep.subr.bf16.mxu0 %v1688
    %1752 = vmatpush1.bf16.msra.mxu0 %v1687
    %1753 = vmatprep.subr.bf16.mxu0 %v1690
    %1754 = vmatpush1.bf16.msra.mxu0 %v1689
    %1755 = vmatprep.subr.bf16.mxu0 %v1692
    %1756 = vmatpush1.bf16.msra.mxu0 %v1691
    %1757 = vmatprep.subr.bf16.mxu0 %v1694
    %1758 = vmatpush1.bf16.msra.mxu0 %v1693
    %1759 = vmatprep.subr.bf16.mxu0 %v1696
    %1760 = vmatpush1.bf16.msra.mxu0 %v1695
    %1761 = vmatprep.subr.bf16.mxu0 %v1698
    %1762 = vmatpush1.bf16.msra.mxu0 %v1697
    %1763 = vmatprep.subr.bf16.mxu0 %v1700
    %1764 = vmatpush1.bf16.msra.mxu0 %v1699
    %1765 = vmatprep.subr.bf16.mxu0 %v1702
    %1766 = vmatpush1.bf16.msra.mxu0 %v1701
    %1767 = vmatprep.subr.bf16.mxu0 %v1704
    %1768 = vmatpush1.bf16.msra.mxu0 %v1703
    %1769 = vmatprep.subr.bf16.mxu0 %v1706
    %1770 = vmatpush1.bf16.msra.mxu0 %v1705
    %1771 = vmatprep.subr.bf16.mxu0 %v1708
    %1772 = vmatpush1.bf16.msra.mxu0 %v1707
    %1773 = vmatprep.mubr.bf16.mxu0 %v1578
    %1774 = vmatmul.mubr.bf16.gmra.mrb[0].mxu0 %v1577
    %v1775 = vpop.f32.mrb[0].mxu0
    %v1776 = vadd.f32 0.0, %v1775
    %v1777 = vpop.f32.mrb[0].mxu0
    %v1778 = vadd.f32 0.0, %v1777
    %v1779 = vpop.f32.mrb[0].mxu0
    %v1780 = vadd.f32 0.0, %v1779
    %v1781 = vpop.f32.mrb[0].mxu0
    %v1782 = vadd.f32 0.0, %v1781
    %1783 = vdwg.mxu0
    %v1784 = vadd.f32 %v1518, %v1776
    %v1785 = vadd.f32 %v1520, %v1778
    %v1786 = vadd.f32 %v1522, %v1780
    %v1787 = vadd.f32 %v1524, %v1782
    %v1788 = vld [vmem:[%s5] sm:$0x3]
    %v1790 = vlaneseq
    %v1791 = vshrl.u32 %v1790, 7
    %v1792 = vsub.s32 0, %v1791
    %v1793 = vrot.slane %v1788, %v1792
    %v1794 = vlaneseq
    %v1795 = vshrl.u32 %v1794, 7
    %v1796 = vsub.s32 1, %v1795
    %v1797 = vrot.slane %v1788, %v1796
    %v1800 = vmul.f32 %v1784, %v1793
    %v1801 = vmul.f32 %v1785, %v1797
    %v1802 = vmul.f32 %v1786, %v1793
    %v1803 = vmul.f32 %v1787, %v1797
    %v1804 = vld [vmem:[%s6] sm:$0x3]
    %v1806 = vlaneseq
    %v1807 = vshrl.u32 %v1806, 7
    %v1808 = vsub.s32 0, %v1807
    %v1809 = vrot.slane %v1804, %v1808
    %v1810 = vlaneseq
    %v1811 = vshrl.u32 %v1810, 7
    %v1812 = vsub.s32 1, %v1811
    %v1813 = vrot.slane %v1804, %v1812
    %v1816 = vadd.f32 %v1800, %v1809
    %v1817 = vadd.f32 %v1801, %v1813
    %v1818 = vadd.f32 %v1802, %v1809
    %v1819 = vadd.f32 %v1803, %v1813
    %v1820 = vmax.f32 %v1816, 0.0
    %v1821 = vmax.f32 %v1817, 0.0
    %v1822 = vmax.f32 %v1818, 0.0
    %v1823 = vmax.f32 %v1819, 0.0
    %v1824 = vpack.c.bf16 %v1820, %v1820
    %v1825 = vpack.c.bf16 %v1821, %v1821
    %v1826 = vpack.c.bf16 %v1822, %v1822
    %v1827 = vpack.c.bf16 %v1823, %v1823
    %v1832 = vunpack.c.l.b16 %v1824
    %v1833 = vunpack.c.l.b16 %v1825
    %v1834 = vunpack.c.l.b16 %v1826
    %v1835 = vunpack.c.l.b16 %v1827
    %v1836 = vpack.c.b16 %v1833, %v1832
    %v1837 = vpack.c.b16 %v1835, %v1834
    %v1839 = vshrl.u32 %v1836, 16
    %v1841 = vrot.slane %v1839, 7
    %v1842 = vshll.u32 %v1836, 16
    %v1844 = vor.u32 %v1841, %v1842
    %v1845 = vrot.slane %v1841, 4
    %v1847 = vshrl.u32 %v1837, 16
    %v1849 = vrot.slane %v1847, 7
    %v1850 = vshll.u32 %v1837, 16
    %v1852 = vor.u32 %v1849, %v1850
    %v1853 = vrot.slane %v1849, 4
    %v1858 = vsel %vm122, %v1844, %v1005
    %1859 = vst [vmem:[#allocation2] sm:$0xff] %v1858
    %v1860 = vld [vmem:[#allocation2 + $0x8] sm:$0x11]
    %v1861 = vsel %vm78, %v1845, %v1860
    %1862 = vst [vmem:[#allocation2 + $0x8] sm:$0x11] %v1861
    %v1863 = vld [vmem:[#allocation2 + $0x10] sm:$0xff]
    %v1864 = vsel %vm122, %v1852, %v1863
    %1865 = vst [vmem:[#allocation2 + $0x10] sm:$0xff] %v1864
    %v1866 = vld [vmem:[#allocation2 + $0x18] sm:$0x11]
    %v1867 = vsel %vm78, %v1853, %v1866
    %1868 = vst [vmem:[#allocation2 + $0x18] sm:$0x11] %v1867
    %v1869 = vld [vmem:[#allocation2] sm:$0x11]
    %v1870 = vld [vmem:[#allocation2 + $0x10] sm:$0x11]
    %v1871 = vld [vmem:[%s7] sm:$0xf]
    %v1872 = vld [vmem:[%s7 + $0x4] sm:$0xf]
    %v1873 = vld [vmem:[%s7 + $0x8] sm:$0xf]
    %v1874 = vld [vmem:[%s7 + $0xc] sm:$0xf]
    %v1875 = vld [vmem:[%s7 + $0x10] sm:$0xf]
    %v1876 = vld [vmem:[%s7 + $0x14] sm:$0xf]
    %v1877 = vld [vmem:[%s7 + $0x18] sm:$0xf]
    %v1878 = vld [vmem:[%s7 + $0x1c] sm:$0xf]
    %v1879 = vld [vmem:[%s7 + $0x20] sm:$0xf]
    %v1880 = vld [vmem:[%s7 + $0x24] sm:$0xf]
    %v1881 = vld [vmem:[%s7 + $0x28] sm:$0xf]
    %v1882 = vld [vmem:[%s7 + $0x2c] sm:$0xf]
    %v1883 = vld [vmem:[%s7 + $0x30] sm:$0xf]
    %v1884 = vld [vmem:[%s7 + $0x34] sm:$0xf]
    %v1885 = vld [vmem:[%s7 + $0x38] sm:$0xf]
    %v1886 = vld [vmem:[%s7 + $0x3c] sm:$0xf]
    %v1887 = vld [vmem:[%s7 + $0x40] sm:$0xf]
    %v1888 = vld [vmem:[%s7 + $0x44] sm:$0xf]
    %v1889 = vld [vmem:[%s7 + $0x48] sm:$0xf]
    %v1890 = vld [vmem:[%s7 + $0x4c] sm:$0xf]
    %v1891 = vld [vmem:[%s7 + $0x50] sm:$0xf]
    %v1892 = vld [vmem:[%s7 + $0x54] sm:$0xf]
    %v1893 = vld [vmem:[%s7 + $0x58] sm:$0xf]
    %v1894 = vld [vmem:[%s7 + $0x5c] sm:$0xf]
    %v1895 = vld [vmem:[%s7 + $0x60] sm:$0xf]
    %v1896 = vld [vmem:[%s7 + $0x64] sm:$0xf]
    %v1897 = vld [vmem:[%s7 + $0x68] sm:$0xf]
    %v1898 = vld [vmem:[%s7 + $0x6c] sm:$0xf]
    %v1899 = vld [vmem:[%s7 + $0x70] sm:$0xf]
    %v1900 = vld [vmem:[%s7 + $0x74] sm:$0xf]
    %v1901 = vld [vmem:[%s7 + $0x78] sm:$0xf]
    %v1902 = vld [vmem:[%s7 + $0x7c] sm:$0xf]
    %v1903 = vld [vmem:[#allocation2] sm:$0x22]
    %v1904 = vld [vmem:[#allocation2 + $0x10] sm:$0x22]
    %s1905 = scalar_lea.vmem %s7, 128
    %v1906 = vld [vmem:[%s1905] sm:$0xf]
    %v1907 = vld [vmem:[%s1905 + $0x4] sm:$0xf]
    %v1908 = vld [vmem:[%s1905 + $0x8] sm:$0xf]
    %v1909 = vld [vmem:[%s1905 + $0xc] sm:$0xf]
    %v1910 = vld [vmem:[%s1905 + $0x10] sm:$0xf]
    %v1911 = vld [vmem:[%s1905 + $0x14] sm:$0xf]
    %v1912 = vld [vmem:[%s1905 + $0x18] sm:$0xf]
    %v1913 = vld [vmem:[%s1905 + $0x1c] sm:$0xf]
    %v1914 = vld [vmem:[%s1905 + $0x20] sm:$0xf]
    %v1915 = vld [vmem:[%s1905 + $0x24] sm:$0xf]
    %v1916 = vld [vmem:[%s1905 + $0x28] sm:$0xf]
    %v1917 = vld [vmem:[%s1905 + $0x2c] sm:$0xf]
    %v1918 = vld [vmem:[%s1905 + $0x30] sm:$0xf]
    %v1919 = vld [vmem:[%s1905 + $0x34] sm:$0xf]
    %v1920 = vld [vmem:[%s1905 + $0x38] sm:$0xf]
    %v1921 = vld [vmem:[%s1905 + $0x3c] sm:$0xf]
    %v1922 = vld [vmem:[%s1905 + $0x40] sm:$0xf]
    %v1923 = vld [vmem:[%s1905 + $0x44] sm:$0xf]
    %v1924 = vld [vmem:[%s1905 + $0x48] sm:$0xf]
    %v1925 = vld [vmem:[%s1905 + $0x4c] sm:$0xf]
    %v1926 = vld [vmem:[%s1905 + $0x50] sm:$0xf]
    %v1927 = vld [vmem:[%s1905 + $0x54] sm:$0xf]
    %v1928 = vld [vmem:[%s1905 + $0x58] sm:$0xf]
    %v1929 = vld [vmem:[%s1905 + $0x5c] sm:$0xf]
    %v1930 = vld [vmem:[%s1905 + $0x60] sm:$0xf]
    %v1931 = vld [vmem:[%s1905 + $0x64] sm:$0xf]
    %v1932 = vld [vmem:[%s1905 + $0x68] sm:$0xf]
    %v1933 = vld [vmem:[%s1905 + $0x6c] sm:$0xf]
    %v1934 = vld [vmem:[%s1905 + $0x70] sm:$0xf]
    %v1935 = vld [vmem:[%s1905 + $0x74] sm:$0xf]
    %v1936 = vld [vmem:[%s1905 + $0x78] sm:$0xf]
    %v1937 = vld [vmem:[%s1905 + $0x7c] sm:$0xf]
    %v1940 = vunpack.c.l.b16 %v1903
    %v1941 = vunpack.c.h.b16 %v1903
    %v1942 = vunpack.c.l.b16 %v1904
    %v1943 = vunpack.c.h.b16 %v1904
    %v1944 = vpack.c.b16 %v1940, %v1940
    %v1945 = vpack.c.b16 %v1941, %v1941
    %v1946 = vpack.c.b16 %v1942, %v1942
    %v1947 = vpack.c.b16 %v1943, %v1943
    %v1948 = vunpack.c.l.b16 %v1944
    %v1949 = vunpack.c.l.b16 %v1945
    %v1950 = vunpack.c.l.b16 %v1946
    %v1951 = vunpack.c.l.b16 %v1947
    %v1952 = vrot.slane %v1948, 2
    %v1953 = vrot.slane %v1950, 1
    %vm1954 = vcmask 1041409
    %v1955 = vsel %vm1954, %v1953, %v1952
    %v1956 = vrot.slane %v1949, 2
    %v1957 = vrot.slane %v1951, 1
    %v1958 = vsel %vm1954, %v1957, %v1956
    %v1959 = vpack.c.b16 %v1955, %v1955
    %v1960 = vpack.c.b16 %v1958, %v1958
    %v1995 = vunpack.c.l.b16 %v1906
    %v1996 = vunpack.c.l.b16 %v1907
    %v1997 = vunpack.c.l.b16 %v1908
    %v1998 = vunpack.c.l.b16 %v1909
    %v1999 = vunpack.c.l.b16 %v1910
    %v2000 = vunpack.c.l.b16 %v1911
    %v2001 = vunpack.c.l.b16 %v1912
    %v2002 = vunpack.c.l.b16 %v1913
    %v2003 = vunpack.c.l.b16 %v1914
    %v2004 = vunpack.c.l.b16 %v1915
    %v2005 = vunpack.c.l.b16 %v1916
    %v2006 = vunpack.c.l.b16 %v1917
    %v2007 = vunpack.c.l.b16 %v1918
    %v2008 = vunpack.c.l.b16 %v1919
    %v2009 = vunpack.c.l.b16 %v1920
    %v2010 = vunpack.c.l.b16 %v1921
    %v2011 = vunpack.c.l.b16 %v1922
    %v2012 = vunpack.c.l.b16 %v1923
    %v2013 = vunpack.c.l.b16 %v1924
    %v2014 = vunpack.c.l.b16 %v1925
    %v2015 = vunpack.c.l.b16 %v1926
    %v2016 = vunpack.c.l.b16 %v1927
    %v2017 = vunpack.c.l.b16 %v1928
    %v2018 = vunpack.c.l.b16 %v1929
    %v2019 = vunpack.c.l.b16 %v1930
    %v2020 = vunpack.c.l.b16 %v1931
    %v2021 = vunpack.c.l.b16 %v1932
    %v2022 = vunpack.c.l.b16 %v1933
    %v2023 = vunpack.c.l.b16 %v1934
    %v2024 = vunpack.c.l.b16 %v1935
    %v2025 = vunpack.c.l.b16 %v1936
    %v2026 = vunpack.c.l.b16 %v1937
    %v2027 = vpack.c.b16 %v1996, %v1995
    %v2028 = vpack.c.b16 %v1998, %v1997
    %v2029 = vpack.c.b16 %v2000, %v1999
    %v2030 = vpack.c.b16 %v2002, %v2001
    %v2031 = vpack.c.b16 %v2004, %v2003
    %v2032 = vpack.c.b16 %v2006, %v2005
    %v2033 = vpack.c.b16 %v2008, %v2007
    %v2034 = vpack.c.b16 %v2010, %v2009
    %v2035 = vpack.c.b16 %v2012, %v2011
    %v2036 = vpack.c.b16 %v2014, %v2013
    %v2037 = vpack.c.b16 %v2016, %v2015
    %v2038 = vpack.c.b16 %v2018, %v2017
    %v2039 = vpack.c.b16 %v2020, %v2019
    %v2040 = vpack.c.b16 %v2022, %v2021
    %v2041 = vpack.c.b16 %v2024, %v2023
    %v2042 = vpack.c.b16 %v2026, %v2025
    %2059 = vmatprep.subr.bf16.mxu0 0
    %2060 = vmatpush1.bf16.msra.mxu0 %v2027
    %2061 = vmatprep.subr.bf16.mxu0 0
    %2062 = vmatpush1.bf16.msra.mxu0 %v2028
    %2063 = vmatprep.subr.bf16.mxu0 0
    %2064 = vmatpush1.bf16.msra.mxu0 %v2029
    %2065 = vmatprep.subr.bf16.mxu0 0
    %2066 = vmatpush1.bf16.msra.mxu0 %v2030
    %2067 = vmatprep.subr.bf16.mxu0 0
    %2068 = vmatpush1.bf16.msra.mxu0 %v2031
    %2069 = vmatprep.subr.bf16.mxu0 0
    %2070 = vmatpush1.bf16.msra.mxu0 %v2032
    %2071 = vmatprep.subr.bf16.mxu0 0
    %2072 = vmatpush1.bf16.msra.mxu0 %v2033
    %2073 = vmatprep.subr.bf16.mxu0 0
    %2074 = vmatpush1.bf16.msra.mxu0 %v2034
    %2075 = vmatprep.subr.bf16.mxu0 0
    %2076 = vmatpush1.bf16.msra.mxu0 %v2035
    %2077 = vmatprep.subr.bf16.mxu0 0
    %2078 = vmatpush1.bf16.msra.mxu0 %v2036
    %2079 = vmatprep.subr.bf16.mxu0 0
    %2080 = vmatpush1.bf16.msra.mxu0 %v2037
    %2081 = vmatprep.subr.bf16.mxu0 0
    %2082 = vmatpush1.bf16.msra.mxu0 %v2038
    %2083 = vmatprep.subr.bf16.mxu0 0
    %2084 = vmatpush1.bf16.msra.mxu0 %v2039
    %2085 = vmatprep.subr.bf16.mxu0 0
    %2086 = vmatpush1.bf16.msra.mxu0 %v2040
    %2087 = vmatprep.subr.bf16.mxu0 0
    %2088 = vmatpush1.bf16.msra.mxu0 %v2041
    %2089 = vmatprep.subr.bf16.mxu0 0
    %2090 = vmatpush1.bf16.msra.mxu0 %v2042
    %2091 = vmatprep.mubr.bf16.mxu0 %v1960
    %2092 = vmatmul.mubr.bf16.gmra.mrb[0].mxu0 %v1959
    %v2093 = vpop.f32.mrb[0].mxu0
    %v2094 = vadd.f32 0.0, %v2093
    %v2095 = vpop.f32.mrb[0].mxu0
    %v2096 = vpop.f32.mrb[0].mxu0
    %v2097 = vpop.f32.mrb[0].mxu0
    %2098 = vdwg.mxu0
    %v2101 = vunpack.c.l.b16 %v1869
    %v2102 = vunpack.c.h.b16 %v1869
    %v2103 = vunpack.c.l.b16 %v1870
    %v2104 = vunpack.c.h.b16 %v1870
    %v2105 = vpack.c.b16 %v2101, %v2101
    %v2106 = vpack.c.b16 %v2102, %v2102
    %v2107 = vpack.c.b16 %v2103, %v2103
    %v2108 = vpack.c.b16 %v2104, %v2104
    %v2109 = vunpack.c.l.b16 %v2105
    %v2110 = vunpack.c.l.b16 %v2106
    %v2111 = vunpack.c.l.b16 %v2107
    %v2112 = vunpack.c.l.b16 %v2108
    %v2113 = vrot.slane %v2109, 1
    %v2114 = vsel %vm1954, %v2111, %v2113
    %v2115 = vrot.slane %v2110, 1
    %v2116 = vsel %vm1954, %v2112, %v2115
    %v2117 = vpack.c.b16 %v2114, %v2114
    %v2118 = vpack.c.b16 %v2116, %v2116
    %v2153 = vunpack.c.l.b16 %v1871
    %v2154 = vunpack.c.l.b16 %v1872
    %v2155 = vunpack.c.l.b16 %v1873
    %v2156 = vunpack.c.l.b16 %v1874
    %v2157 = vunpack.c.l.b16 %v1875
    %v2158 = vunpack.c.l.b16 %v1876
    %v2159 = vunpack.c.l.b16 %v1877
    %v2160 = vunpack.c.l.b16 %v1878
    %v2161 = vunpack.c.l.b16 %v1879
    %v2162 = vunpack.c.l.b16 %v1880
    %v2163 = vunpack.c.l.b16 %v1881
    %v2164 = vunpack.c.l.b16 %v1882
    %v2165 = vunpack.c.l.b16 %v1883
    %v2166 = vunpack.c.l.b16 %v1884
    %v2167 = vunpack.c.l.b16 %v1885
    %v2168 = vunpack.c.l.b16 %v1886
    %v2169 = vunpack.c.l.b16 %v1887
    %v2170 = vunpack.c.l.b16 %v1888
    %v2171 = vunpack.c.l.b16 %v1889
    %v2172 = vunpack.c.l.b16 %v1890
    %v2173 = vunpack.c.l.b16 %v1891
    %v2174 = vunpack.c.l.b16 %v1892
    %v2175 = vunpack.c.l.b16 %v1893
    %v2176 = vunpack.c.l.b16 %v1894
    %v2177 = vunpack.c.l.b16 %v1895
    %v2178 = vunpack.c.l.b16 %v1896
    %v2179 = vunpack.c.l.b16 %v1897
    %v2180 = vunpack.c.l.b16 %v1898
    %v2181 = vunpack.c.l.b16 %v1899
    %v2182 = vunpack.c.l.b16 %v1900
    %v2183 = vunpack.c.l.b16 %v1901
    %v2184 = vunpack.c.l.b16 %v1902
    %v2185 = vpack.c.b16 %v2154, %v2153
    %v2186 = vpack.c.b16 %v2156, %v2155
    %v2187 = vpack.c.b16 %v2158, %v2157
    %v2188 = vpack.c.b16 %v2160, %v2159
    %v2189 = vpack.c.b16 %v2162, %v2161
    %v2190 = vpack.c.b16 %v2164, %v2163
    %v2191 = vpack.c.b16 %v2166, %v2165
    %v2192 = vpack.c.b16 %v2168, %v2167
    %v2193 = vpack.c.b16 %v2170, %v2169
    %v2194 = vpack.c.b16 %v2172, %v2171
    %v2195 = vpack.c.b16 %v2174, %v2173
    %v2196 = vpack.c.b16 %v2176, %v2175
    %v2197 = vpack.c.b16 %v2178, %v2177
    %v2198 = vpack.c.b16 %v2180, %v2179
    %v2199 = vpack.c.b16 %v2182, %v2181
    %v2200 = vpack.c.b16 %v2184, %v2183
    %2217 = vmatprep.subr.bf16.mxu0 0
    %2218 = vmatpush1.bf16.msra.mxu0 %v2185
    %2219 = vmatprep.subr.bf16.mxu0 0
    %2220 = vmatpush1.bf16.msra.mxu0 %v2186
    %2221 = vmatprep.subr.bf16.mxu0 0
    %2222 = vmatpush1.bf16.msra.mxu0 %v2187
    %2223 = vmatprep.subr.bf16.mxu0 0
    %2224 = vmatpush1.bf16.msra.mxu0 %v2188
    %2225 = vmatprep.subr.bf16.mxu0 0
    %2226 = vmatpush1.bf16.msra.mxu0 %v2189
    %2227 = vmatprep.subr.bf16.mxu0 0
    %2228 = vmatpush1.bf16.msra.mxu0 %v2190
    %2229 = vmatprep.subr.bf16.mxu0 0
    %2230 = vmatpush1.bf16.msra.mxu0 %v2191
    %2231 = vmatprep.subr.bf16.mxu0 0
    %2232 = vmatpush1.bf16.msra.mxu0 %v2192
    %2233 = vmatprep.subr.bf16.mxu0 0
    %2234 = vmatpush1.bf16.msra.mxu0 %v2193
    %2235 = vmatprep.subr.bf16.mxu0 0
    %2236 = vmatpush1.bf16.msra.mxu0 %v2194
    %2237 = vmatprep.subr.bf16.mxu0 0
    %2238 = vmatpush1.bf16.msra.mxu0 %v2195
    %2239 = vmatprep.subr.bf16.mxu0 0
    %2240 = vmatpush1.bf16.msra.mxu0 %v2196
    %2241 = vmatprep.subr.bf16.mxu0 0
    %2242 = vmatpush1.bf16.msra.mxu0 %v2197
    %2243 = vmatprep.subr.bf16.mxu0 0
    %2244 = vmatpush1.bf16.msra.mxu0 %v2198
    %2245 = vmatprep.subr.bf16.mxu0 0
    %2246 = vmatpush1.bf16.msra.mxu0 %v2199
    %2247 = vmatprep.subr.bf16.mxu0 0
    %2248 = vmatpush1.bf16.msra.mxu0 %v2200
    %2249 = vmatprep.mubr.bf16.mxu0 %v2118
    %2250 = vmatmul.mubr.bf16.gmra.mrb[0].mxu0 %v2117
    %v2251 = vpop.f32.mrb[0].mxu0
    %v2252 = vadd.f32 %v2094, %v2251
    %v2253 = vpop.f32.mrb[0].mxu0
    %v2254 = vpop.f32.mrb[0].mxu0
    %v2255 = vpop.f32.mrb[0].mxu0
    %2256 = vdwg.mxu0
    %s2257 = scalar_lea.vmem %s7, 256
    %v2258 = vld [vmem:[%s2257] sm:$0xf]
    %v2259 = vld [vmem:[%s2257 + $0x4] sm:$0xf]
    %v2260 = vld [vmem:[%s2257 + $0x8] sm:$0xf]
    %v2261 = vld [vmem:[%s2257 + $0xc] sm:$0xf]
    %v2262 = vld [vmem:[%s2257 + $0x10] sm:$0xf]
    %v2263 = vld [vmem:[%s2257 + $0x14] sm:$0xf]
    %v2264 = vld [vmem:[%s2257 + $0x18] sm:$0xf]
    %v2265 = vld [vmem:[%s2257 + $0x1c] sm:$0xf]
    %v2266 = vld [vmem:[%s2257 + $0x20] sm:$0xf]
    %v2267 = vld [vmem:[%s2257 + $0x24] sm:$0xf]
    %v2268 = vld [vmem:[%s2257 + $0x28] sm:$0xf]
    %v2269 = vld [vmem:[%s2257 + $0x2c] sm:$0xf]
    %v2270 = vld [vmem:[%s2257 + $0x30] sm:$0xf]
    %v2271 = vld [vmem:[%s2257 + $0x34] sm:$0xf]
    %v2272 = vld [vmem:[%s2257 + $0x38] sm:$0xf]
    %v2273 = vld [vmem:[%s2257 + $0x3c] sm:$0xf]
    %v2274 = vld [vmem:[%s2257 + $0x40] sm:$0xf]
    %v2275 = vld [vmem:[%s2257 + $0x44] sm:$0xf]
    %v2276 = vld [vmem:[%s2257 + $0x48] sm:$0xf]
    %v2277 = vld [vmem:[%s2257 + $0x4c] sm:$0xf]
    %v2278 = vld [vmem:[%s2257 + $0x50] sm:$0xf]
    %v2279 = vld [vmem:[%s2257 + $0x54] sm:$0xf]
    %v2280 = vld [vmem:[%s2257 + $0x58] sm:$0xf]
    %v2281 = vld [vmem:[%s2257 + $0x5c] sm:$0xf]
    %v2282 = vld [vmem:[%s2257 + $0x60] sm:$0xf]
    %v2283 = vld [vmem:[%s2257 + $0x64] sm:$0xf]
    %v2284 = vld [vmem:[%s2257 + $0x68] sm:$0xf]
    %v2285 = vld [vmem:[%s2257 + $0x6c] sm:$0xf]
    %v2286 = vld [vmem:[%s2257 + $0x70] sm:$0xf]
    %v2287 = vld [vmem:[%s2257 + $0x74] sm:$0xf]
    %v2288 = vld [vmem:[%s2257 + $0x78] sm:$0xf]
    %v2289 = vld [vmem:[%s2257 + $0x7c] sm:$0xf]
    %v2290 = vrot.slane %v1948, 3
    %v2291 = vrot.slane %v1950, 2
    %v2292 = vsel %vm1954, %v2291, %v2290
    %v2293 = vrot.slane %v1949, 3
    %v2294 = vrot.slane %v1951, 2
    %v2295 = vsel %vm1954, %v2294, %v2293
    %v2296 = vpack.c.b16 %v2292, %v2292
    %v2297 = vpack.c.b16 %v2295, %v2295
    %v2332 = vunpack.c.l.b16 %v2258
    %v2333 = vunpack.c.l.b16 %v2259
    %v2334 = vunpack.c.l.b16 %v2260
    %v2335 = vunpack.c.l.b16 %v2261
    %v2336 = vunpack.c.l.b16 %v2262
    %v2337 = vunpack.c.l.b16 %v2263
    %v2338 = vunpack.c.l.b16 %v2264
    %v2339 = vunpack.c.l.b16 %v2265
    %v2340 = vunpack.c.l.b16 %v2266
    %v2341 = vunpack.c.l.b16 %v2267
    %v2342 = vunpack.c.l.b16 %v2268
    %v2343 = vunpack.c.l.b16 %v2269
    %v2344 = vunpack.c.l.b16 %v2270
    %v2345 = vunpack.c.l.b16 %v2271
    %v2346 = vunpack.c.l.b16 %v2272
    %v2347 = vunpack.c.l.b16 %v2273
    %v2348 = vunpack.c.l.b16 %v2274
    %v2349 = vunpack.c.l.b16 %v2275
    %v2350 = vunpack.c.l.b16 %v2276
    %v2351 = vunpack.c.l.b16 %v2277
    %v2352 = vunpack.c.l.b16 %v2278
    %v2353 = vunpack.c.l.b16 %v2279
    %v2354 = vunpack.c.l.b16 %v2280
    %v2355 = vunpack.c.l.b16 %v2281
    %v2356 = vunpack.c.l.b16 %v2282
    %v2357 = vunpack.c.l.b16 %v2283
    %v2358 = vunpack.c.l.b16 %v2284
    %v2359 = vunpack.c.l.b16 %v2285
    %v2360 = vunpack.c.l.b16 %v2286
    %v2361 = vunpack.c.l.b16 %v2287
    %v2362 = vunpack.c.l.b16 %v2288
    %v2363 = vunpack.c.l.b16 %v2289
    %v2364 = vpack.c.b16 %v2333, %v2332
    %v2365 = vpack.c.b16 %v2335, %v2334
    %v2366 = vpack.c.b16 %v2337, %v2336
    %v2367 = vpack.c.b16 %v2339, %v2338
    %v2368 = vpack.c.b16 %v2341, %v2340
    %v2369 = vpack.c.b16 %v2343, %v2342
    %v2370 = vpack.c.b16 %v2345, %v2344
    %v2371 = vpack.c.b16 %v2347, %v2346
    %v2372 = vpack.c.b16 %v2349, %v2348
    %v2373 = vpack.c.b16 %v2351, %v2350
    %v2374 = vpack.c.b16 %v2353, %v2352
    %v2375 = vpack.c.b16 %v2355, %v2354
    %v2376 = vpack.c.b16 %v2357, %v2356
    %v2377 = vpack.c.b16 %v2359, %v2358
    %v2378 = vpack.c.b16 %v2361, %v2360
    %v2379 = vpack.c.b16 %v2363, %v2362
    %2396 = vmatprep.subr.bf16.mxu0 0
    %2397 = vmatpush1.bf16.msra.mxu0 %v2364
    %2398 = vmatprep.subr.bf16.mxu0 0
    %2399 = vmatpush1.bf16.msra.mxu0 %v2365
    %2400 = vmatprep.subr.bf16.mxu0 0
    %2401 = vmatpush1.bf16.msra.mxu0 %v2366
    %2402 = vmatprep.subr.bf16.mxu0 0
    %2403 = vmatpush1.bf16.msra.mxu0 %v2367
    %2404 = vmatprep.subr.bf16.mxu0 0
    %2405 = vmatpush1.bf16.msra.mxu0 %v2368
    %2406 = vmatprep.subr.bf16.mxu0 0
    %2407 = vmatpush1.bf16.msra.mxu0 %v2369
    %2408 = vmatprep.subr.bf16.mxu0 0
    %2409 = vmatpush1.bf16.msra.mxu0 %v2370
    %2410 = vmatprep.subr.bf16.mxu0 0
    %2411 = vmatpush1.bf16.msra.mxu0 %v2371
    %2412 = vmatprep.subr.bf16.mxu0 0
    %2413 = vmatpush1.bf16.msra.mxu0 %v2372
    %2414 = vmatprep.subr.bf16.mxu0 0
    %2415 = vmatpush1.bf16.msra.mxu0 %v2373
    %2416 = vmatprep.subr.bf16.mxu0 0
    %2417 = vmatpush1.bf16.msra.mxu0 %v2374
    %2418 = vmatprep.subr.bf16.mxu0 0
    %2419 = vmatpush1.bf16.msra.mxu0 %v2375
    %2420 = vmatprep.subr.bf16.mxu0 0
    %2421 = vmatpush1.bf16.msra.mxu0 %v2376
    %2422 = vmatprep.subr.bf16.mxu0 0
    %2423 = vmatpush1.bf16.msra.mxu0 %v2377
    %2424 = vmatprep.subr.bf16.mxu0 0
    %2425 = vmatpush1.bf16.msra.mxu0 %v2378
    %2426 = vmatprep.subr.bf16.mxu0 0
    %2427 = vmatpush1.bf16.msra.mxu0 %v2379
    %2428 = vmatprep.mubr.bf16.mxu0 %v2297
    %2429 = vmatmul.mubr.bf16.gmra.mrb[0].mxu0 %v2296
    %v2430 = vpop.f32.mrb[0].mxu0
    %v2431 = vadd.f32 0.0, %v2430
    %v2432 = vpop.f32.mrb[0].mxu0
    %v2433 = vpop.f32.mrb[0].mxu0
    %v2434 = vpop.f32.mrb[0].mxu0
    %2435 = vdwg.mxu0
    %v2436 = vadd.f32 %v2252, %v2431
    %v2437 = vld [vmem:[#allocation2] sm:$0x44]
    %v2438 = vld [vmem:[#allocation2 + $0x10] sm:$0x44]
    %s2439 = scalar_lea.vmem %s7, 384
    %v2440 = vld [vmem:[%s2439] sm:$0xf]
    %v2441 = vld [vmem:[%s2439 + $0x4] sm:$0xf]
    %v2442 = vld [vmem:[%s2439 + $0x8] sm:$0xf]
    %v2443 = vld [vmem:[%s2439 + $0xc] sm:$0xf]
    %v2444 = vld [vmem:[%s2439 + $0x10] sm:$0xf]
    %v2445 = vld [vmem:[%s2439 + $0x14] sm:$0xf]
    %v2446 = vld [vmem:[%s2439 + $0x18] sm:$0xf]
    %v2447 = vld [vmem:[%s2439 + $0x1c] sm:$0xf]
    %v2448 = vld [vmem:[%s2439 + $0x20] sm:$0xf]
    %v2449 = vld [vmem:[%s2439 + $0x24] sm:$0xf]
    %v2450 = vld [vmem:[%s2439 + $0x28] sm:$0xf]
    %v2451 = vld [vmem:[%s2439 + $0x2c] sm:$0xf]
    %v2452 = vld [vmem:[%s2439 + $0x30] sm:$0xf]
    %v2453 = vld [vmem:[%s2439 + $0x34] sm:$0xf]
    %v2454 = vld [vmem:[%s2439 + $0x38] sm:$0xf]
    %v2455 = vld [vmem:[%s2439 + $0x3c] sm:$0xf]
    %v2456 = vld [vmem:[%s2439 + $0x40] sm:$0xf]
    %v2457 = vld [vmem:[%s2439 + $0x44] sm:$0xf]
    %v2458 = vld [vmem:[%s2439 + $0x48] sm:$0xf]
    %v2459 = vld [vmem:[%s2439 + $0x4c] sm:$0xf]
    %v2460 = vld [vmem:[%s2439 + $0x50] sm:$0xf]
    %v2461 = vld [vmem:[%s2439 + $0x54] sm:$0xf]
    %v2462 = vld [vmem:[%s2439 + $0x58] sm:$0xf]
    %v2463 = vld [vmem:[%s2439 + $0x5c] sm:$0xf]
    %v2464 = vld [vmem:[%s2439 + $0x60] sm:$0xf]
    %v2465 = vld [vmem:[%s2439 + $0x64] sm:$0xf]
    %v2466 = vld [vmem:[%s2439 + $0x68] sm:$0xf]
    %v2467 = vld [vmem:[%s2439 + $0x6c] sm:$0xf]
    %v2468 = vld [vmem:[%s2439 + $0x70] sm:$0xf]
    %v2469 = vld [vmem:[%s2439 + $0x74] sm:$0xf]
    %v2470 = vld [vmem:[%s2439 + $0x78] sm:$0xf]
    %v2471 = vld [vmem:[%s2439 + $0x7c] sm:$0xf]
    %v2474 = vunpack.c.l.b16 %v2437
    %v2475 = vunpack.c.h.b16 %v2437
    %v2476 = vunpack.c.l.b16 %v2438
    %v2477 = vunpack.c.h.b16 %v2438
    %v2478 = vpack.c.b16 %v2474, %v2474
    %v2479 = vpack.c.b16 %v2475, %v2475
    %v2480 = vpack.c.b16 %v2476, %v2476
    %v2481 = vpack.c.b16 %v2477, %v2477
    %v2482 = vunpack.c.l.b16 %v2478
    %v2483 = vunpack.c.l.b16 %v2479
    %v2484 = vunpack.c.l.b16 %v2480
    %v2485 = vunpack.c.l.b16 %v2481
    %v2486 = vrot.slane %v2482, 4
    %v2487 = vrot.slane %v2484, 3
    %v2488 = vsel %vm1954, %v2487, %v2486
    %v2489 = vrot.slane %v2483, 4
    %v2490 = vrot.slane %v2485, 3
    %v2491 = vsel %vm1954, %v2490, %v2489
    %v2492 = vpack.c.b16 %v2488, %v2488
    %v2493 = vpack.c.b16 %v2491, %v2491
    %v2528 = vunpack.c.l.b16 %v2440
    %v2529 = vunpack.c.l.b16 %v2441
    %v2530 = vunpack.c.l.b16 %v2442
    %v2531 = vunpack.c.l.b16 %v2443
    %v2532 = vunpack.c.l.b16 %v2444
    %v2533 = vunpack.c.l.b16 %v2445
    %v2534 = vunpack.c.l.b16 %v2446
    %v2535 = vunpack.c.l.b16 %v2447
    %v2536 = vunpack.c.l.b16 %v2448
    %v2537 = vunpack.c.l.b16 %v2449
    %v2538 = vunpack.c.l.b16 %v2450
    %v2539 = vunpack.c.l.b16 %v2451
    %v2540 = vunpack.c.l.b16 %v2452
    %v2541 = vunpack.c.l.b16 %v2453
    %v2542 = vunpack.c.l.b16 %v2454
    %v2543 = vunpack.c.l.b16 %v2455
    %v2544 = vunpack.c.l.b16 %v2456
    %v2545 = vunpack.c.l.b16 %v2457
    %v2546 = vunpack.c.l.b16 %v2458
    %v2547 = vunpack.c.l.b16 %v2459
    %v2548 = vunpack.c.l.b16 %v2460
    %v2549 = vunpack.c.l.b16 %v2461
    %v2550 = vunpack.c.l.b16 %v2462
    %v2551 = vunpack.c.l.b16 %v2463
    %v2552 = vunpack.c.l.b16 %v2464
    %v2553 = vunpack.c.l.b16 %v2465
    %v2554 = vunpack.c.l.b16 %v2466
    %v2555 = vunpack.c.l.b16 %v2467
    %v2556 = vunpack.c.l.b16 %v2468
    %v2557 = vunpack.c.l.b16 %v2469
    %v2558 = vunpack.c.l.b16 %v2470
    %v2559 = vunpack.c.l.b16 %v2471
    %v2560 = vpack.c.b16 %v2529, %v2528
    %v2561 = vpack.c.b16 %v2531, %v2530
    %v2562 = vpack.c.b16 %v2533, %v2532
    %v2563 = vpack.c.b16 %v2535, %v2534
    %v2564 = vpack.c.b16 %v2537, %v2536
    %v2565 = vpack.c.b16 %v2539, %v2538
    %v2566 = vpack.c.b16 %v2541, %v2540
    %v2567 = vpack.c.b16 %v2543, %v2542
    %v2568 = vpack.c.b16 %v2545, %v2544
    %v2569 = vpack.c.b16 %v2547, %v2546
    %v2570 = vpack.c.b16 %v2549, %v2548
    %v2571 = vpack.c.b16 %v2551, %v2550
    %v2572 = vpack.c.b16 %v2553, %v2552
    %v2573 = vpack.c.b16 %v2555, %v2554
    %v2574 = vpack.c.b16 %v2557, %v2556
    %v2575 = vpack.c.b16 %v2559, %v2558
    %2592 = vmatprep.subr.bf16.mxu0 0
    %2593 = vmatpush1.bf16.msra.mxu0 %v2560
    %2594 = vmatprep.subr.bf16.mxu0 0
    %2595 = vmatpush1.bf16.msra.mxu0 %v2561
    %2596 = vmatprep.subr.bf16.mxu0 0
    %2597 = vmatpush1.bf16.msra.mxu0 %v2562
    %2598 = vmatprep.subr.bf16.mxu0 0
    %2599 = vmatpush1.bf16.msra.mxu0 %v2563
    %2600 = vmatprep.subr.bf16.mxu0 0
    %2601 = vmatpush1.bf16.msra.mxu0 %v2564
    %2602 = vmatprep.subr.bf16.mxu0 0
    %2603 = vmatpush1.bf16.msra.mxu0 %v2565
    %2604 = vmatprep.subr.bf16.mxu0 0
    %2605 = vmatpush1.bf16.msra.mxu0 %v2566
    %2606 = vmatprep.subr.bf16.mxu0 0
    %2607 = vmatpush1.bf16.msra.mxu0 %v2567
    %2608 = vmatprep.subr.bf16.mxu0 0
    %2609 = vmatpush1.bf16.msra.mxu0 %v2568
    %2610 = vmatprep.subr.bf16.mxu0 0
    %2611 = vmatpush1.bf16.msra.mxu0 %v2569
    %2612 = vmatprep.subr.bf16.mxu0 0
    %2613 = vmatpush1.bf16.msra.mxu0 %v2570
    %2614 = vmatprep.subr.bf16.mxu0 0
    %2615 = vmatpush1.bf16.msra.mxu0 %v2571
    %2616 = vmatprep.subr.bf16.mxu0 0
    %2617 = vmatpush1.bf16.msra.mxu0 %v2572
    %2618 = vmatprep.subr.bf16.mxu0 0
    %2619 = vmatpush1.bf16.msra.mxu0 %v2573
    %2620 = vmatprep.subr.bf16.mxu0 0
    %2621 = vmatpush1.bf16.msra.mxu0 %v2574
    %2622 = vmatprep.subr.bf16.mxu0 0
    %2623 = vmatpush1.bf16.msra.mxu0 %v2575
    %2624 = vmatprep.mubr.bf16.mxu0 %v2493
    %2625 = vmatmul.mubr.bf16.gmra.mrb[0].mxu0 %v2492
    %v2626 = vpop.f32.mrb[0].mxu0
    %v2627 = vadd.f32 0.0, %v2626
    %v2628 = vpop.f32.mrb[0].mxu0
    %v2629 = vpop.f32.mrb[0].mxu0
    %v2630 = vpop.f32.mrb[0].mxu0
    %2631 = vdwg.mxu0
    %v2632 = vadd.f32 %v2436, %v2627
    %s2633 = scalar_lea.vmem %s7, 512
    %v2634 = vld [vmem:[%s2633] sm:$0xf]
    %v2635 = vld [vmem:[%s2633 + $0x4] sm:$0xf]
    %v2636 = vld [vmem:[%s2633 + $0x8] sm:$0xf]
    %v2637 = vld [vmem:[%s2633 + $0xc] sm:$0xf]
    %v2638 = vld [vmem:[%s2633 + $0x10] sm:$0xf]
    %v2639 = vld [vmem:[%s2633 + $0x14] sm:$0xf]
    %v2640 = vld [vmem:[%s2633 + $0x18] sm:$0xf]
    %v2641 = vld [vmem:[%s2633 + $0x1c] sm:$0xf]
    %v2642 = vld [vmem:[%s2633 + $0x20] sm:$0xf]
    %v2643 = vld [vmem:[%s2633 + $0x24] sm:$0xf]
    %v2644 = vld [vmem:[%s2633 + $0x28] sm:$0xf]
    %v2645 = vld [vmem:[%s2633 + $0x2c] sm:$0xf]
    %v2646 = vld [vmem:[%s2633 + $0x30] sm:$0xf]
    %v2647 = vld [vmem:[%s2633 + $0x34] sm:$0xf]
    %v2648 = vld [vmem:[%s2633 + $0x38] sm:$0xf]
    %v2649 = vld [vmem:[%s2633 + $0x3c] sm:$0xf]
    %v2650 = vld [vmem:[%s2633 + $0x40] sm:$0xf]
    %v2651 = vld [vmem:[%s2633 + $0x44] sm:$0xf]
    %v2652 = vld [vmem:[%s2633 + $0x48] sm:$0xf]
    %v2653 = vld [vmem:[%s2633 + $0x4c] sm:$0xf]
    %v2654 = vld [vmem:[%s2633 + $0x50] sm:$0xf]
    %v2655 = vld [vmem:[%s2633 + $0x54] sm:$0xf]
    %v2656 = vld [vmem:[%s2633 + $0x58] sm:$0xf]
    %v2657 = vld [vmem:[%s2633 + $0x5c] sm:$0xf]
    %v2658 = vld [vmem:[%s2633 + $0x60] sm:$0xf]
    %v2659 = vld [vmem:[%s2633 + $0x64] sm:$0xf]
    %v2660 = vld [vmem:[%s2633 + $0x68] sm:$0xf]
    %v2661 = vld [vmem:[%s2633 + $0x6c] sm:$0xf]
    %v2662 = vld [vmem:[%s2633 + $0x70] sm:$0xf]
    %v2663 = vld [vmem:[%s2633 + $0x74] sm:$0xf]
    %v2664 = vld [vmem:[%s2633 + $0x78] sm:$0xf]
    %v2665 = vld [vmem:[%s2633 + $0x7c] sm:$0xf]
    %v2666 = vrot.slane %v2482, 5
    %v2667 = vrot.slane %v2484, 4
    %v2668 = vsel %vm1954, %v2667, %v2666
    %v2669 = vrot.slane %v2483, 5
    %v2670 = vrot.slane %v2485, 4
    %v2671 = vsel %vm1954, %v2670, %v2669
    %v2672 = vpack.c.b16 %v2668, %v2668
    %v2673 = vpack.c.b16 %v2671, %v2671
    %v2708 = vunpack.c.l.b16 %v2634
    %v2709 = vunpack.c.l.b16 %v2635
    %v2710 = vunpack.c.l.b16 %v2636
    %v2711 = vunpack.c.l.b16 %v2637
    %v2712 = vunpack.c.l.b16 %v2638
    %v2713 = vunpack.c.l.b16 %v2639
    %v2714 = vunpack.c.l.b16 %v2640
    %v2715 = vunpack.c.l.b16 %v2641
    %v2716 = vunpack.c.l.b16 %v2642
    %v2717 = vunpack.c.l.b16 %v2643
    %v2718 = vunpack.c.l.b16 %v2644
    %v2719 = vunpack.c.l.b16 %v2645
    %v2720 = vunpack.c.l.b16 %v2646
    %v2721 = vunpack.c.l.b16 %v2647
    %v2722 = vunpack.c.l.b16 %v2648
    %v2723 = vunpack.c.l.b16 %v2649
    %v2724 = vunpack.c.l.b16 %v2650
    %v2725 = vunpack.c.l.b16 %v2651
    %v2726 = vunpack.c.l.b16 %v2652
    %v2727 = vunpack.c.l.b16 %v2653
    %v2728 = vunpack.c.l.b16 %v2654
    %v2729 = vunpack.c.l.b16 %v2655
    %v2730 = vunpack.c.l.b16 %v2656
    %v2731 = vunpack.c.l.b16 %v2657
    %v2732 = vunpack.c.l.b16 %v2658
    %v2733 = vunpack.c.l.b16 %v2659
    %v2734 = vunpack.c.l.b16 %v2660
    %v2735 = vunpack.c.l.b16 %v2661
    %v2736 = vunpack.c.l.b16 %v2662
    %v2737 = vunpack.c.l.b16 %v2663
    %v2738 = vunpack.c.l.b16 %v2664
    %v2739 = vunpack.c.l.b16 %v2665
    %v2740 = vpack.c.b16 %v2709, %v2708
    %v2741 = vpack.c.b16 %v2711, %v2710
    %v2742 = vpack.c.b16 %v2713, %v2712
    %v2743 = vpack.c.b16 %v2715, %v2714
    %v2744 = vpack.c.b16 %v2717, %v2716
    %v2745 = vpack.c.b16 %v2719, %v2718
    %v2746 = vpack.c.b16 %v2721, %v2720
    %v2747 = vpack.c.b16 %v2723, %v2722
    %v2748 = vpack.c.b16 %v2725, %v2724
    %v2749 = vpack.c.b16 %v2727, %v2726
    %v2750 = vpack.c.b16 %v2729, %v2728
    %v2751 = vpack.c.b16 %v2731, %v2730
    %v2752 = vpack.c.b16 %v2733, %v2732
    %v2753 = vpack.c.b16 %v2735, %v2734
    %v2754 = vpack.c.b16 %v2737, %v2736
    %v2755 = vpack.c.b16 %v2739, %v2738
    %2772 = vmatprep.subr.bf16.mxu0 0
    %2773 = vmatpush1.bf16.msra.mxu0 %v2740
    %2774 = vmatprep.subr.bf16.mxu0 0
    %2775 = vmatpush1.bf16.msra.mxu0 %v2741
    %2776 = vmatprep.subr.bf16.mxu0 0
    %2777 = vmatpush1.bf16.msra.mxu0 %v2742
    %2778 = vmatprep.subr.bf16.mxu0 0
    %2779 = vmatpush1.bf16.msra.mxu0 %v2743
    %2780 = vmatprep.subr.bf16.mxu0 0
    %2781 = vmatpush1.bf16.msra.mxu0 %v2744
    %2782 = vmatprep.subr.bf16.mxu0 0
    %2783 = vmatpush1.bf16.msra.mxu0 %v2745
    %2784 = vmatprep.subr.bf16.mxu0 0
    %2785 = vmatpush1.bf16.msra.mxu0 %v2746
    %2786 = vmatprep.subr.bf16.mxu0 0
    %2787 = vmatpush1.bf16.msra.mxu0 %v2747
    %2788 = vmatprep.subr.bf16.mxu0 0
    %2789 = vmatpush1.bf16.msra.mxu0 %v2748
    %2790 = vmatprep.subr.bf16.mxu0 0
    %2791 = vmatpush1.bf16.msra.mxu0 %v2749
    %2792 = vmatprep.subr.bf16.mxu0 0
    %2793 = vmatpush1.bf16.msra.mxu0 %v2750
    %2794 = vmatprep.subr.bf16.mxu0 0
    %2795 = vmatpush1.bf16.msra.mxu0 %v2751
    %2796 = vmatprep.subr.bf16.mxu0 0
    %2797 = vmatpush1.bf16.msra.mxu0 %v2752
    %2798 = vmatprep.subr.bf16.mxu0 0
    %2799 = vmatpush1.bf16.msra.mxu0 %v2753
    %2800 = vmatprep.subr.bf16.mxu0 0
    %2801 = vmatpush1.bf16.msra.mxu0 %v2754
    %2802 = vmatprep.subr.bf16.mxu0 0
    %2803 = vmatpush1.bf16.msra.mxu0 %v2755
    %2804 = vmatprep.mubr.bf16.mxu0 %v2673
    %2805 = vmatmul.mubr.bf16.gmra.mrb[0].mxu0 %v2672
    %v2806 = vpop.f32.mrb[0].mxu0
    %v2807 = vadd.f32 0.0, %v2806
    %v2808 = vpop.f32.mrb[0].mxu0
    %v2809 = vpop.f32.mrb[0].mxu0
    %v2810 = vpop.f32.mrb[0].mxu0
    %2811 = vdwg.mxu0
    %v2812 = vadd.f32 %v2632, %v2807
    %v2813 = vld [vmem:[#allocation2] sm:$0x88]
    %v2814 = vld [vmem:[#allocation2 + $0x10] sm:$0x88]
    %s2815 = scalar_lea.vmem %s7, 640
    %v2816 = vld [vmem:[%s2815] sm:$0xf]
    %v2817 = vld [vmem:[%s2815 + $0x4] sm:$0xf]
    %v2818 = vld [vmem:[%s2815 + $0x8] sm:$0xf]
    %v2819 = vld [vmem:[%s2815 + $0xc] sm:$0xf]
    %v2820 = vld [vmem:[%s2815 + $0x10] sm:$0xf]
    %v2821 = vld [vmem:[%s2815 + $0x14] sm:$0xf]
    %v2822 = vld [vmem:[%s2815 + $0x18] sm:$0xf]
    %v2823 = vld [vmem:[%s2815 + $0x1c] sm:$0xf]
    %v2824 = vld [vmem:[%s2815 + $0x20] sm:$0xf]
    %v2825 = vld [vmem:[%s2815 + $0x24] sm:$0xf]
    %v2826 = vld [vmem:[%s2815 + $0x28] sm:$0xf]
    %v2827 = vld [vmem:[%s2815 + $0x2c] sm:$0xf]
    %v2828 = vld [vmem:[%s2815 + $0x30] sm:$0xf]
    %v2829 = vld [vmem:[%s2815 + $0x34] sm:$0xf]
    %v2830 = vld [vmem:[%s2815 + $0x38] sm:$0xf]
    %v2831 = vld [vmem:[%s2815 + $0x3c] sm:$0xf]
    %v2832 = vld [vmem:[%s2815 + $0x40] sm:$0xf]
    %v2833 = vld [vmem:[%s2815 + $0x44] sm:$0xf]
    %v2834 = vld [vmem:[%s2815 + $0x48] sm:$0xf]
    %v2835 = vld [vmem:[%s2815 + $0x4c] sm:$0xf]
    %v2836 = vld [vmem:[%s2815 + $0x50] sm:$0xf]
    %v2837 = vld [vmem:[%s2815 + $0x54] sm:$0xf]
    %v2838 = vld [vmem:[%s2815 + $0x58] sm:$0xf]
    %v2839 = vld [vmem:[%s2815 + $0x5c] sm:$0xf]
    %v2840 = vld [vmem:[%s2815 + $0x60] sm:$0xf]
    %v2841 = vld [vmem:[%s2815 + $0x64] sm:$0xf]
    %v2842 = vld [vmem:[%s2815 + $0x68] sm:$0xf]
    %v2843 = vld [vmem:[%s2815 + $0x6c] sm:$0xf]
    %v2844 = vld [vmem:[%s2815 + $0x70] sm:$0xf]
    %v2845 = vld [vmem:[%s2815 + $0x74] sm:$0xf]
    %v2846 = vld [vmem:[%s2815 + $0x78] sm:$0xf]
    %v2847 = vld [vmem:[%s2815 + $0x7c] sm:$0xf]
    %v2850 = vunpack.c.l.b16 %v2813
    %v2851 = vunpack.c.h.b16 %v2813
    %v2852 = vunpack.c.l.b16 %v2814
    %v2853 = vunpack.c.h.b16 %v2814
    %v2854 = vpack.c.b16 %v2850, %v2850
    %v2855 = vpack.c.b16 %v2851, %v2851
    %v2856 = vpack.c.b16 %v2852, %v2852
    %v2857 = vpack.c.b16 %v2853, %v2853
    %v2858 = vunpack.c.l.b16 %v2854
    %v2859 = vunpack.c.l.b16 %v2855
    %v2860 = vunpack.c.l.b16 %v2856
    %v2861 = vunpack.c.l.b16 %v2857
    %v2862 = vrot.slane %v2858, 6
    %v2863 = vrot.slane %v2860, 5
    %v2864 = vsel %vm1954, %v2863, %v2862
    %v2865 = vrot.slane %v2859, 6
    %v2866 = vrot.slane %v2861, 5
    %v2867 = vsel %vm1954, %v2866, %v2865
    %v2868 = vpack.c.b16 %v2864, %v2864
    %v2869 = vpack.c.b16 %v2867, %v2867
    %v2904 = vunpack.c.l.b16 %v2816
    %v2905 = vunpack.c.l.b16 %v2817
    %v2906 = vunpack.c.l.b16 %v2818
    %v2907 = vunpack.c.l.b16 %v2819
    %v2908 = vunpack.c.l.b16 %v2820
    %v2909 = vunpack.c.l.b16 %v2821
    %v2910 = vunpack.c.l.b16 %v2822
    %v2911 = vunpack.c.l.b16 %v2823
    %v2912 = vunpack.c.l.b16 %v2824
    %v2913 = vunpack.c.l.b16 %v2825
    %v2914 = vunpack.c.l.b16 %v2826
    %v2915 = vunpack.c.l.b16 %v2827
    %v2916 = vunpack.c.l.b16 %v2828
    %v2917 = vunpack.c.l.b16 %v2829
    %v2918 = vunpack.c.l.b16 %v2830
    %v2919 = vunpack.c.l.b16 %v2831
    %v2920 = vunpack.c.l.b16 %v2832
    %v2921 = vunpack.c.l.b16 %v2833
    %v2922 = vunpack.c.l.b16 %v2834
    %v2923 = vunpack.c.l.b16 %v2835
    %v2924 = vunpack.c.l.b16 %v2836
    %v2925 = vunpack.c.l.b16 %v2837
    %v2926 = vunpack.c.l.b16 %v2838
    %v2927 = vunpack.c.l.b16 %v2839
    %v2928 = vunpack.c.l.b16 %v2840
    %v2929 = vunpack.c.l.b16 %v2841
    %v2930 = vunpack.c.l.b16 %v2842
    %v2931 = vunpack.c.l.b16 %v2843
    %v2932 = vunpack.c.l.b16 %v2844
    %v2933 = vunpack.c.l.b16 %v2845
    %v2934 = vunpack.c.l.b16 %v2846
    %v2935 = vunpack.c.l.b16 %v2847
    %v2936 = vpack.c.b16 %v2905, %v2904
    %v2937 = vpack.c.b16 %v2907, %v2906
    %v2938 = vpack.c.b16 %v2909, %v2908
    %v2939 = vpack.c.b16 %v2911, %v2910
    %v2940 = vpack.c.b16 %v2913, %v2912
    %v2941 = vpack.c.b16 %v2915, %v2914
    %v2942 = vpack.c.b16 %v2917, %v2916
    %v2943 = vpack.c.b16 %v2919, %v2918
    %v2944 = vpack.c.b16 %v2921, %v2920
    %v2945 = vpack.c.b16 %v2923, %v2922
    %v2946 = vpack.c.b16 %v2925, %v2924
    %v2947 = vpack.c.b16 %v2927, %v2926
    %v2948 = vpack.c.b16 %v2929, %v2928
    %v2949 = vpack.c.b16 %v2931, %v2930
    %v2950 = vpack.c.b16 %v2933, %v2932
    %v2951 = vpack.c.b16 %v2935, %v2934
    %2968 = vmatprep.subr.bf16.mxu0 0
    %2969 = vmatpush1.bf16.msra.mxu0 %v2936
    %2970 = vmatprep.subr.bf16.mxu0 0
    %2971 = vmatpush1.bf16.msra.mxu0 %v2937
    %2972 = vmatprep.subr.bf16.mxu0 0
    %2973 = vmatpush1.bf16.msra.mxu0 %v2938
    %2974 = vmatprep.subr.bf16.mxu0 0
    %2975 = vmatpush1.bf16.msra.mxu0 %v2939
    %2976 = vmatprep.subr.bf16.mxu0 0
    %2977 = vmatpush1.bf16.msra.mxu0 %v2940
    %2978 = vmatprep.subr.bf16.mxu0 0
    %2979 = vmatpush1.bf16.msra.mxu0 %v2941
    %2980 = vmatprep.subr.bf16.mxu0 0
    %2981 = vmatpush1.bf16.msra.mxu0 %v2942
    %2982 = vmatprep.subr.bf16.mxu0 0
    %2983 = vmatpush1.bf16.msra.mxu0 %v2943
    %2984 = vmatprep.subr.bf16.mxu0 0
    %2985 = vmatpush1.bf16.msra.mxu0 %v2944
    %2986 = vmatprep.subr.bf16.mxu0 0
    %2987 = vmatpush1.bf16.msra.mxu0 %v2945
    %2988 = vmatprep.subr.bf16.mxu0 0
    %2989 = vmatpush1.bf16.msra.mxu0 %v2946
    %2990 = vmatprep.subr.bf16.mxu0 0
    %2991 = vmatpush1.bf16.msra.mxu0 %v2947
    %2992 = vmatprep.subr.bf16.mxu0 0
    %2993 = vmatpush1.bf16.msra.mxu0 %v2948
    %2994 = vmatprep.subr.bf16.mxu0 0
    %2995 = vmatpush1.bf16.msra.mxu0 %v2949
    %2996 = vmatprep.subr.bf16.mxu0 0
    %2997 = vmatpush1.bf16.msra.mxu0 %v2950
    %2998 = vmatprep.subr.bf16.mxu0 0
    %2999 = vmatpush1.bf16.msra.mxu0 %v2951
    %3000 = vmatprep.mubr.bf16.mxu0 %v2869
    %3001 = vmatmul.mubr.bf16.gmra.mrb[0].mxu0 %v2868
    %v3002 = vpop.f32.mrb[0].mxu0
    %v3003 = vadd.f32 0.0, %v3002
    %v3004 = vpop.f32.mrb[0].mxu0
    %v3005 = vpop.f32.mrb[0].mxu0
    %v3006 = vpop.f32.mrb[0].mxu0
    %3007 = vdwg.mxu0
    %v3008 = vadd.f32 %v2812, %v3003
    %s3009 = scalar_lea.vmem %s7, 768
    %v3010 = vld [vmem:[%s3009] sm:$0xf]
    %v3011 = vld [vmem:[%s3009 + $0x4] sm:$0xf]
    %v3012 = vld [vmem:[%s3009 + $0x8] sm:$0xf]
    %v3013 = vld [vmem:[%s3009 + $0xc] sm:$0xf]
    %v3014 = vld [vmem:[%s3009 + $0x10] sm:$0xf]
    %v3015 = vld [vmem:[%s3009 + $0x14] sm:$0xf]
    %v3016 = vld [vmem:[%s3009 + $0x18] sm:$0xf]
    %v3017 = vld [vmem:[%s3009 + $0x1c] sm:$0xf]
    %v3018 = vld [vmem:[%s3009 + $0x20] sm:$0xf]
    %v3019 = vld [vmem:[%s3009 + $0x24] sm:$0xf]
    %v3020 = vld [vmem:[%s3009 + $0x28] sm:$0xf]
    %v3021 = vld [vmem:[%s3009 + $0x2c] sm:$0xf]
    %v3022 = vld [vmem:[%s3009 + $0x30] sm:$0xf]
    %v3023 = vld [vmem:[%s3009 + $0x34] sm:$0xf]
    %v3024 = vld [vmem:[%s3009 + $0x38] sm:$0xf]
    %v3025 = vld [vmem:[%s3009 + $0x3c] sm:$0xf]
    %v3026 = vld [vmem:[%s3009 + $0x40] sm:$0xf]
    %v3027 = vld [vmem:[%s3009 + $0x44] sm:$0xf]
    %v3028 = vld [vmem:[%s3009 + $0x48] sm:$0xf]
    %v3029 = vld [vmem:[%s3009 + $0x4c] sm:$0xf]
    %v3030 = vld [vmem:[%s3009 + $0x50] sm:$0xf]
    %v3031 = vld [vmem:[%s3009 + $0x54] sm:$0xf]
    %v3032 = vld [vmem:[%s3009 + $0x58] sm:$0xf]
    %v3033 = vld [vmem:[%s3009 + $0x5c] sm:$0xf]
    %v3034 = vld [vmem:[%s3009 + $0x60] sm:$0xf]
    %v3035 = vld [vmem:[%s3009 + $0x64] sm:$0xf]
    %v3036 = vld [vmem:[%s3009 + $0x68] sm:$0xf]
    %v3037 = vld [vmem:[%s3009 + $0x6c] sm:$0xf]
    %v3038 = vld [vmem:[%s3009 + $0x70] sm:$0xf]
    %v3039 = vld [vmem:[%s3009 + $0x74] sm:$0xf]
    %v3040 = vld [vmem:[%s3009 + $0x78] sm:$0xf]
    %v3041 = vld [vmem:[%s3009 + $0x7c] sm:$0xf]
    %v3042 = vrot.slane %v2858, 7
    %v3043 = vrot.slane %v2860, 6
    %v3044 = vsel %vm1954, %v3043, %v3042
    %v3045 = vrot.slane %v2859, 7
    %v3046 = vrot.slane %v2861, 6
    %v3047 = vsel %vm1954, %v3046, %v3045
    %v3048 = vpack.c.b16 %v3044, %v3044
    %v3049 = vpack.c.b16 %v3047, %v3047
    %v3084 = vunpack.c.l.b16 %v3010
    %v3085 = vunpack.c.l.b16 %v3011
    %v3086 = vunpack.c.l.b16 %v3012
    %v3087 = vunpack.c.l.b16 %v3013
    %v3088 = vunpack.c.l.b16 %v3014
    %v3089 = vunpack.c.l.b16 %v3015
    %v3090 = vunpack.c.l.b16 %v3016
    %v3091 = vunpack.c.l.b16 %v3017
    %v3092 = vunpack.c.l.b16 %v3018
    %v3093 = vunpack.c.l.b16 %v3019
    %v3094 = vunpack.c.l.b16 %v3020
    %v3095 = vunpack.c.l.b16 %v3021
    %v3096 = vunpack.c.l.b16 %v3022
    %v3097 = vunpack.c.l.b16 %v3023
    %v3098 = vunpack.c.l.b16 %v3024
    %v3099 = vunpack.c.l.b16 %v3025
    %v3100 = vunpack.c.l.b16 %v3026
    %v3101 = vunpack.c.l.b16 %v3027
    %v3102 = vunpack.c.l.b16 %v3028
    %v3103 = vunpack.c.l.b16 %v3029
    %v3104 = vunpack.c.l.b16 %v3030
    %v3105 = vunpack.c.l.b16 %v3031
    %v3106 = vunpack.c.l.b16 %v3032
    %v3107 = vunpack.c.l.b16 %v3033
    %v3108 = vunpack.c.l.b16 %v3034
    %v3109 = vunpack.c.l.b16 %v3035
    %v3110 = vunpack.c.l.b16 %v3036
    %v3111 = vunpack.c.l.b16 %v3037
    %v3112 = vunpack.c.l.b16 %v3038
    %v3113 = vunpack.c.l.b16 %v3039
    %v3114 = vunpack.c.l.b16 %v3040
    %v3115 = vunpack.c.l.b16 %v3041
    %v3116 = vpack.c.b16 %v3085, %v3084
    %v3117 = vpack.c.b16 %v3087, %v3086
    %v3118 = vpack.c.b16 %v3089, %v3088
    %v3119 = vpack.c.b16 %v3091, %v3090
    %v3120 = vpack.c.b16 %v3093, %v3092
    %v3121 = vpack.c.b16 %v3095, %v3094
    %v3122 = vpack.c.b16 %v3097, %v3096
    %v3123 = vpack.c.b16 %v3099, %v3098
    %v3124 = vpack.c.b16 %v3101, %v3100
    %v3125 = vpack.c.b16 %v3103, %v3102
    %v3126 = vpack.c.b16 %v3105, %v3104
    %v3127 = vpack.c.b16 %v3107, %v3106
    %v3128 = vpack.c.b16 %v3109, %v3108
    %v3129 = vpack.c.b16 %v3111, %v3110
    %v3130 = vpack.c.b16 %v3113, %v3112
    %v3131 = vpack.c.b16 %v3115, %v3114
    %3148 = vmatprep.subr.bf16.mxu0 0
    %3149 = vmatpush1.bf16.msra.mxu0 %v3116
    %3150 = vmatprep.subr.bf16.mxu0 0
    %3151 = vmatpush1.bf16.msra.mxu0 %v3117
    %3152 = vmatprep.subr.bf16.mxu0 0
    %3153 = vmatpush1.bf16.msra.mxu0 %v3118
    %3154 = vmatprep.subr.bf16.mxu0 0
    %3155 = vmatpush1.bf16.msra.mxu0 %v3119
    %3156 = vmatprep.subr.bf16.mxu0 0
    %3157 = vmatpush1.bf16.msra.mxu0 %v3120
    %3158 = vmatprep.subr.bf16.mxu0 0
    %3159 = vmatpush1.bf16.msra.mxu0 %v3121
    %3160 = vmatprep.subr.bf16.mxu0 0
    %3161 = vmatpush1.bf16.msra.mxu0 %v3122
    %3162 = vmatprep.subr.bf16.mxu0 0
    %3163 = vmatpush1.bf16.msra.mxu0 %v3123
    %3164 = vmatprep.subr.bf16.mxu0 0
    %3165 = vmatpush1.bf16.msra.mxu0 %v3124
    %3166 = vmatprep.subr.bf16.mxu0 0
    %3167 = vmatpush1.bf16.msra.mxu0 %v3125
    %3168 = vmatprep.subr.bf16.mxu0 0
    %3169 = vmatpush1.bf16.msra.mxu0 %v3126
    %3170 = vmatprep.subr.bf16.mxu0 0
    %3171 = vmatpush1.bf16.msra.mxu0 %v3127
    %3172 = vmatprep.subr.bf16.mxu0 0
    %3173 = vmatpush1.bf16.msra.mxu0 %v3128
    %3174 = vmatprep.subr.bf16.mxu0 0
    %3175 = vmatpush1.bf16.msra.mxu0 %v3129
    %3176 = vmatprep.subr.bf16.mxu0 0
    %3177 = vmatpush1.bf16.msra.mxu0 %v3130
    %3178 = vmatprep.subr.bf16.mxu0 0
    %3179 = vmatpush1.bf16.msra.mxu0 %v3131
    %3180 = vmatprep.mubr.bf16.mxu0 %v3049
    %3181 = vmatmul.mubr.bf16.gmra.mrb[0].mxu0 %v3048
    %v3182 = vpop.f32.mrb[0].mxu0
    %v3183 = vadd.f32 0.0, %v3182
    %v3184 = vpop.f32.mrb[0].mxu0
    %v3185 = vpop.f32.mrb[0].mxu0
    %v3186 = vpop.f32.mrb[0].mxu0
    %3187 = vdwg.mxu0
    %v3188 = vadd.f32 %v3008, %v3183
    %v3189 = vld [vmem:[#allocation2 + $0x8] sm:$0x11]
    %v3190 = vld [vmem:[#allocation2 + $0x18] sm:$0x11]
    %s3191 = scalar_lea.vmem %s7, 896
    %v3192 = vld [vmem:[%s3191] sm:$0xf]
    %v3193 = vld [vmem:[%s3191 + $0x4] sm:$0xf]
    %v3194 = vld [vmem:[%s3191 + $0x8] sm:$0xf]
    %v3195 = vld [vmem:[%s3191 + $0xc] sm:$0xf]
    %v3196 = vld [vmem:[%s3191 + $0x10] sm:$0xf]
    %v3197 = vld [vmem:[%s3191 + $0x14] sm:$0xf]
    %v3198 = vld [vmem:[%s3191 + $0x18] sm:$0xf]
    %v3199 = vld [vmem:[%s3191 + $0x1c] sm:$0xf]
    %v3200 = vld [vmem:[%s3191 + $0x20] sm:$0xf]
    %v3201 = vld [vmem:[%s3191 + $0x24] sm:$0xf]
    %v3202 = vld [vmem:[%s3191 + $0x28] sm:$0xf]
    %v3203 = vld [vmem:[%s3191 + $0x2c] sm:$0xf]
    %v3204 = vld [vmem:[%s3191 + $0x30] sm:$0xf]
    %v3205 = vld [vmem:[%s3191 + $0x34] sm:$0xf]
    %v3206 = vld [vmem:[%s3191 + $0x38] sm:$0xf]
    %v3207 = vld [vmem:[%s3191 + $0x3c] sm:$0xf]
    %v3208 = vld [vmem:[%s3191 + $0x40] sm:$0xf]
    %v3209 = vld [vmem:[%s3191 + $0x44] sm:$0xf]
    %v3210 = vld [vmem:[%s3191 + $0x48] sm:$0xf]
    %v3211 = vld [vmem:[%s3191 + $0x4c] sm:$0xf]
    %v3212 = vld [vmem:[%s3191 + $0x50] sm:$0xf]
    %v3213 = vld [vmem:[%s3191 + $0x54] sm:$0xf]
    %v3214 = vld [vmem:[%s3191 + $0x58] sm:$0xf]
    %v3215 = vld [vmem:[%s3191 + $0x5c] sm:$0xf]
    %v3216 = vld [vmem:[%s3191 + $0x60] sm:$0xf]
    %v3217 = vld [vmem:[%s3191 + $0x64] sm:$0xf]
    %v3218 = vld [vmem:[%s3191 + $0x68] sm:$0xf]
    %v3219 = vld [vmem:[%s3191 + $0x6c] sm:$0xf]
    %v3220 = vld [vmem:[%s3191 + $0x70] sm:$0xf]
    %v3221 = vld [vmem:[%s3191 + $0x74] sm:$0xf]
    %v3222 = vld [vmem:[%s3191 + $0x78] sm:$0xf]
    %v3223 = vld [vmem:[%s3191 + $0x7c] sm:$0xf]
    %v3226 = vunpack.c.l.b16 %v3189
    %v3227 = vunpack.c.h.b16 %v3189
    %v3228 = vunpack.c.l.b16 %v3190
    %v3229 = vunpack.c.h.b16 %v3190
    %v3230 = vpack.c.b16 %v3226, %v3226
    %v3231 = vpack.c.b16 %v3227, %v3227
    %v3232 = vpack.c.b16 %v3228, %v3228
    %v3233 = vpack.c.b16 %v3229, %v3229
    %v3234 = vunpack.c.l.b16 %v3230
    %v3235 = vunpack.c.l.b16 %v3231
    %v3236 = vunpack.c.l.b16 %v3232
    %v3237 = vunpack.c.l.b16 %v3233
    %v3238 = vrot.slane %v3236, 7
    %v3239 = vsel %vm1954, %v3238, %v3234
    %v3240 = vrot.slane %v3237, 7
    %v3241 = vsel %vm1954, %v3240, %v3235
    %v3242 = vpack.c.b16 %v3239, %v3239
    %v3243 = vpack.c.b16 %v3241, %v3241
    %v3278 = vunpack.c.l.b16 %v3192
    %v3279 = vunpack.c.l.b16 %v3193
    %v3280 = vunpack.c.l.b16 %v3194
    %v3281 = vunpack.c.l.b16 %v3195
    %v3282 = vunpack.c.l.b16 %v3196
    %v3283 = vunpack.c.l.b16 %v3197
    %v3284 = vunpack.c.l.b16 %v3198
    %v3285 = vunpack.c.l.b16 %v3199
    %v3286 = vunpack.c.l.b16 %v3200
    %v3287 = vunpack.c.l.b16 %v3201
    %v3288 = vunpack.c.l.b16 %v3202
    %v3289 = vunpack.c.l.b16 %v3203
    %v3290 = vunpack.c.l.b16 %v3204
    %v3291 = vunpack.c.l.b16 %v3205
    %v3292 = vunpack.c.l.b16 %v3206
    %v3293 = vunpack.c.l.b16 %v3207
    %v3294 = vunpack.c.l.b16 %v3208
    %v3295 = vunpack.c.l.b16 %v3209
    %v3296 = vunpack.c.l.b16 %v3210
    %v3297 = vunpack.c.l.b16 %v3211
    %v3298 = vunpack.c.l.b16 %v3212
    %v3299 = vunpack.c.l.b16 %v3213
    %v3300 = vunpack.c.l.b16 %v3214
    %v3301 = vunpack.c.l.b16 %v3215
    %v3302 = vunpack.c.l.b16 %v3216
    %v3303 = vunpack.c.l.b16 %v3217
    %v3304 = vunpack.c.l.b16 %v3218
    %v3305 = vunpack.c.l.b16 %v3219
    %v3306 = vunpack.c.l.b16 %v3220
    %v3307 = vunpack.c.l.b16 %v3221
    %v3308 = vunpack.c.l.b16 %v3222
    %v3309 = vunpack.c.l.b16 %v3223
    %v3310 = vpack.c.b16 %v3279, %v3278
    %v3311 = vpack.c.b16 %v3281, %v3280
    %v3312 = vpack.c.b16 %v3283, %v3282
    %v3313 = vpack.c.b16 %v3285, %v3284
    %v3314 = vpack.c.b16 %v3287, %v3286
    %v3315 = vpack.c.b16 %v3289, %v3288
    %v3316 = vpack.c.b16 %v3291, %v3290
    %v3317 = vpack.c.b16 %v3293, %v3292
    %v3318 = vpack.c.b16 %v3295, %v3294
    %v3319 = vpack.c.b16 %v3297, %v3296
    %v3320 = vpack.c.b16 %v3299, %v3298
    %v3321 = vpack.c.b16 %v3301, %v3300
    %v3322 = vpack.c.b16 %v3303, %v3302
    %v3323 = vpack.c.b16 %v3305, %v3304
    %v3324 = vpack.c.b16 %v3307, %v3306
    %v3325 = vpack.c.b16 %v3309, %v3308
    %3342 = vmatprep.subr.bf16.mxu0 0
    %3343 = vmatpush1.bf16.msra.mxu0 %v3310
    %3344 = vmatprep.subr.bf16.mxu0 0
    %3345 = vmatpush1.bf16.msra.mxu0 %v3311
    %3346 = vmatprep.subr.bf16.mxu0 0
    %3347 = vmatpush1.bf16.msra.mxu0 %v3312
    %3348 = vmatprep.subr.bf16.mxu0 0
    %3349 = vmatpush1.bf16.msra.mxu0 %v3313
    %3350 = vmatprep.subr.bf16.mxu0 0
    %3351 = vmatpush1.bf16.msra.mxu0 %v3314
    %3352 = vmatprep.subr.bf16.mxu0 0
    %3353 = vmatpush1.bf16.msra.mxu0 %v3315
    %3354 = vmatprep.subr.bf16.mxu0 0
    %3355 = vmatpush1.bf16.msra.mxu0 %v3316
    %3356 = vmatprep.subr.bf16.mxu0 0
    %3357 = vmatpush1.bf16.msra.mxu0 %v3317
    %3358 = vmatprep.subr.bf16.mxu0 0
    %3359 = vmatpush1.bf16.msra.mxu0 %v3318
    %3360 = vmatprep.subr.bf16.mxu0 0
    %3361 = vmatpush1.bf16.msra.mxu0 %v3319
    %3362 = vmatprep.subr.bf16.mxu0 0
    %3363 = vmatpush1.bf16.msra.mxu0 %v3320
    %3364 = vmatprep.subr.bf16.mxu0 0
    %3365 = vmatpush1.bf16.msra.mxu0 %v3321
    %3366 = vmatprep.subr.bf16.mxu0 0
    %3367 = vmatpush1.bf16.msra.mxu0 %v3322
    %3368 = vmatprep.subr.bf16.mxu0 0
    %3369 = vmatpush1.bf16.msra.mxu0 %v3323
    %3370 = vmatprep.subr.bf16.mxu0 0
    %3371 = vmatpush1.bf16.msra.mxu0 %v3324
    %3372 = vmatprep.subr.bf16.mxu0 0
    %3373 = vmatpush1.bf16.msra.mxu0 %v3325
    %3374 = vmatprep.mubr.bf16.mxu0 %v3243
    %3375 = vmatmul.mubr.bf16.gmra.mrb[0].mxu0 %v3242
    %v3376 = vpop.f32.mrb[0].mxu0
    %v3377 = vadd.f32 0.0, %v3376
    %v3378 = vpop.f32.mrb[0].mxu0
    %v3379 = vpop.f32.mrb[0].mxu0
    %v3380 = vpop.f32.mrb[0].mxu0
    %3381 = vdwg.mxu0
    %v3382 = vadd.f32 %v3188, %v3377
    %v3383 = vld [vmem:[%s8] sm:$0x1]
    %v3385 = vlaneseq
    %v3386 = vshrl.u32 %v3385, 7
    %v3387 = vsub.s32 0, %v3386
    %v3388 = vrot.slane %v3383, %v3387
    %v3390 = vadd.f32 %v3382, %v3388
    %v3391 = vmax.f32 %v3390, 0.0
    %v3392 = vpack.c.bf16 %v3391, %v3391
    %v3393 = vld [vmem:[%s9] sm:$0xf]
    %v3394 = vld [vmem:[%s9 + $0x4] sm:$0xf]
    %v3395 = vld [vmem:[%s9 + $0x8] sm:$0xf]
    %v3396 = vld [vmem:[%s9 + $0xc] sm:$0xf]
    %v3397 = vld [vmem:[%s9 + $0x10] sm:$0xf]
    %v3398 = vld [vmem:[%s9 + $0x14] sm:$0xf]
    %v3399 = vld [vmem:[%s9 + $0x18] sm:$0xf]
    %v3400 = vld [vmem:[%s9 + $0x1c] sm:$0xf]
    %v3401 = vld [vmem:[%s10] sm:$0x1]
    %v3403 = vlaneseq
    %v3404 = vshrl.u32 %v3403, 7
    %v3405 = vsub.s32 0, %v3404
    %v3406 = vrot.slane %v3401, %v3405
    %v3416 = vunpack.c.l.b16 %v3393
    %v3417 = vunpack.c.l.b16 %v3394
    %v3418 = vunpack.c.l.b16 %v3395
    %v3419 = vunpack.c.l.b16 %v3396
    %v3420 = vunpack.c.l.b16 %v3397
    %v3421 = vunpack.c.l.b16 %v3398
    %v3422 = vunpack.c.l.b16 %v3399
    %v3423 = vunpack.c.l.b16 %v3400
    %v3424 = vpack.c.b16 %v3417, %v3416
    %v3425 = vpack.c.b16 %v3419, %v3418
    %v3426 = vpack.c.b16 %v3421, %v3420
    %v3427 = vpack.c.b16 %v3423, %v3422
    %vm3432 = vcmask 523264
    %v3434 = vsel %vm3432, %v3392, 0
    %3436 = vmatprep.subr.bf16.mxu0 0
    %3437 = vmatpush1.bf16.msra.mxu0 %v3424
    %3438 = vmatprep.subr.bf16.mxu0 0
    %3439 = vmatpush1.bf16.msra.mxu0 %v3425
    %3440 = vmatprep.subr.bf16.mxu0 0
    %3441 = vmatpush1.bf16.msra.mxu0 %v3426
    %3442 = vmatprep.subr.bf16.mxu0 0
    %3443 = vmatpush1.bf16.msra.mxu0 %v3427
    %3444 = vmatprep.subr.bf16.mxu0 0
    %3445 = vmatpush1.bf16.msra.mxu0 0
    %3446 = vmatprep.subr.bf16.mxu0 0
    %3447 = vmatpush1.bf16.msra.mxu0 0
    %3448 = vmatprep.subr.bf16.mxu0 0
    %3449 = vmatpush1.bf16.msra.mxu0 0
    %3450 = vmatprep.subr.bf16.mxu0 0
    %3451 = vmatpush1.bf16.msra.mxu0 0
    %3452 = vmatprep.subr.bf16.mxu0 0
    %3453 = vmatpush1.bf16.msra.mxu0 0
    %3454 = vmatprep.subr.bf16.mxu0 0
    %3455 = vmatpush1.bf16.msra.mxu0 0
    %3456 = vmatprep.subr.bf16.mxu0 0
    %3457 = vmatpush1.bf16.msra.mxu0 0
    %3458 = vmatprep.subr.bf16.mxu0 0
    %3459 = vmatpush1.bf16.msra.mxu0 0
    %3460 = vmatprep.subr.bf16.mxu0 0
    %3461 = vmatpush1.bf16.msra.mxu0 0
    %3462 = vmatprep.subr.bf16.mxu0 0
    %3463 = vmatpush1.bf16.msra.mxu0 0
    %3464 = vmatprep.subr.bf16.mxu0 0
    %3465 = vmatpush1.bf16.msra.mxu0 0
    %3466 = vmatprep.subr.bf16.mxu0 0
    %3467 = vmatpush1.bf16.msra.mxu0 0
    %3468 = vmatprep.mubr.bf16.mxu0 0
    %3469 = vmatmul.mubr.bf16.gmra.mrb[0].mxu0 %v3434
    %v3470 = vpop.f32.mrb[0].mxu0
    %v3471 = vadd.f32 %v3406, %v3470
    %v3472 = vpop.f32.mrb[0].mxu0
    %v3473 = vpop.f32.mrb[0].mxu0
    %v3474 = vpop.f32.mrb[0].mxu0
    %3475 = vdwg.mxu0
    %v3476 = vmax.f32 %v3471, 0.0
    %v3477 = vpack.c.bf16 %v3476, %v3476
    %v3478 = vld [vmem:[%s11] sm:$0xf]
    %v3479 = vld [vmem:[%s11 + $0x4] sm:$0xf]
    %v3480 = vld [vmem:[%s11 + $0x8] sm:$0xf]
    %v3481 = vld [vmem:[%s11 + $0xc] sm:$0xf]
    %v3482 = vld [vmem:[%s11 + $0x10] sm:$0xf]
    %v3483 = vld [vmem:[%s11 + $0x14] sm:$0xf]
    %v3484 = vld [vmem:[%s11 + $0x18] sm:$0xf]
    %v3485 = vld [vmem:[%s11 + $0x1c] sm:$0xf]
    %v3486 = vld [vmem:[%s12] sm:$0x1]
    %v3488 = vlaneseq
    %v3489 = vshrl.u32 %v3488, 7
    %v3490 = vsub.s32 0, %v3489
    %v3491 = vrot.slane %v3486, %v3490
    %v3501 = vunpack.c.l.b16 %v3478
    %v3502 = vunpack.c.l.b16 %v3479
    %v3503 = vunpack.c.l.b16 %v3480
    %v3504 = vunpack.c.l.b16 %v3481
    %v3505 = vunpack.c.l.b16 %v3482
    %v3506 = vunpack.c.l.b16 %v3483
    %v3507 = vunpack.c.l.b16 %v3484
    %v3508 = vunpack.c.l.b16 %v3485
    %v3509 = vpack.c.b16 %v3502, %v3501
    %v3510 = vpack.c.b16 %v3504, %v3503
    %v3511 = vpack.c.b16 %v3506, %v3505
    %v3512 = vpack.c.b16 %v3508, %v3507
    %v3518 = vsel %vm3432, %v3477, 0
    %3520 = vmatprep.subr.bf16.mxu0 0
    %3521 = vmatpush1.bf16.msra.mxu0 %v3509
    %3522 = vmatprep.subr.bf16.mxu0 0
    %3523 = vmatpush1.bf16.msra.mxu0 %v3510
    %3524 = vmatprep.subr.bf16.mxu0 0
    %3525 = vmatpush1.bf16.msra.mxu0 %v3511
    %3526 = vmatprep.subr.bf16.mxu0 0
    %3527 = vmatpush1.bf16.msra.mxu0 %v3512
    %3528 = vmatprep.subr.bf16.mxu0 0
    %3529 = vmatpush1.bf16.msra.mxu0 0
    %3530 = vmatprep.subr.bf16.mxu0 0
    %3531 = vmatpush1.bf16.msra.mxu0 0
    %3532 = vmatprep.subr.bf16.mxu0 0
    %3533 = vmatpush1.bf16.msra.mxu0 0
    %3534 = vmatprep.subr.bf16.mxu0 0
    %3535 = vmatpush1.bf16.msra.mxu0 0
    %3536 = vmatprep.subr.bf16.mxu0 0
    %3537 = vmatpush1.bf16.msra.mxu0 0
    %3538 = vmatprep.subr.bf16.mxu0 0
    %3539 = vmatpush1.bf16.msra.mxu0 0
    %3540 = vmatprep.subr.bf16.mxu0 0
    %3541 = vmatpush1.bf16.msra.mxu0 0
    %3542 = vmatprep.subr.bf16.mxu0 0
    %3543 = vmatpush1.bf16.msra.mxu0 0
    %3544 = vmatprep.subr.bf16.mxu0 0
    %3545 = vmatpush1.bf16.msra.mxu0 0
    %3546 = vmatprep.subr.bf16.mxu0 0
    %3547 = vmatpush1.bf16.msra.mxu0 0
    %3548 = vmatprep.subr.bf16.mxu0 0
    %3549 = vmatpush1.bf16.msra.mxu0 0
    %3550 = vmatprep.subr.bf16.mxu0 0
    %3551 = vmatpush1.bf16.msra.mxu0 0
    %3552 = vmatprep.mubr.bf16.mxu0 0
    %3553 = vmatmul.mubr.bf16.gmra.mrb[0].mxu0 %v3518
    %v3554 = vpop.f32.mrb[0].mxu0
    %v3555 = vadd.f32 %v3491, %v3554
    %v3556 = vpop.f32.mrb[0].mxu0
    %v3557 = vpop.f32.mrb[0].mxu0
    %v3558 = vpop.f32.mrb[0].mxu0
    %3559 = vdwg.mxu0
    %vm3560 = vcmask 25600
    %3561 = vst.msk [vmem:[#allocation8] sm:$0x3] %vm3560, %v3555
    // Predicated region
    $region62: #{tpu_custom_call.1} parent=1 // pred_check
      _
    $region63: #{tpu_custom_call.1} parent=1 // pred_check_branch
      %3563 = sbr.rel (0) target = $region65
    $region64: #{tpu_custom_call.1} parent=1 // pred_region
      %s3565 = ssub.s32 32, 32
      %3566 = vsyncadd [#allocation5], %s3565
      %s3568 = sshll.u32 [#allocation8], 4
      %s3569 = int_to_ptr.vmem [resolvable:$true] %s3568
      %3571 = dma.vmem_to_hbm [thread:$0]  %s3569, 32, %s13, [#allocation5]
    $region65: #{tpu_custom_call.1} parent=1 // pred_fallthru
      _
    // Predicated region
    $region66: #{tpu_custom_call.1} parent=1 // pred_check
      _
    $region67: #{tpu_custom_call.1} parent=1 // pred_check_branch
      %3573 = sbr.rel (0) target = $region69
    $region68: #{tpu_custom_call.1} parent=1 // pred_region
      %3574 = dma.done [#allocation5], 32
    $region69: #{tpu_custom_call.1} parent=1 // pred_fallthru
      _
    %3575 = vsyncpa [#allocation4], 1
    %3576 = vsyncpa [#allocation7], 1
    %3577 = vsyncpa [#allocation5], 1

</llo_original>
